<compile_context>
chip_gen: v5e
topology: v5e:2x2
jax: 0.10.0
libtpu: 0.0.40
codegen_flags: <defaults>
</compile_context>

<pallas_src>
import functools

import jax
import jax.numpy as jnp
from jax import lax
from jax.experimental import pallas as pl
from jax.experimental.pallas import tpu as pltpu


def _round_up(x, m):
    return (x + m - 1) // m * m


# ------------------------------ fused kernel -------------------------------

def upsample_kernel(up_ref, sc_ref, w1u_ref, w1s_ref, b1_ref, w3_ref, b3_ref,
                    wd_ref, bd_ref, o_ref, ypad_ref, zpad_ref, *,
                    H, W, WS, Cin, Cout, mm_dtype):
    ROWS = H + 3          # H + 2 zero-pad rows + 1 overrun row for shifted windows
    Mo = H * WS           # flattened rows at stride WS (cols W..WS-1 are garbage)

    # Fresh zero scratch every step (borders must be zero; interiors overwritten).
    ypad_ref[...] = jnp.zeros_like(ypad_ref)
    zpad_ref[...] = jnp.zeros_like(zpad_ref)

    # ---- conv1x1 + ReLU; channel concat folded into two partial matmuls ----
    y = (jnp.dot(up_ref[0], w1u_ref[...], preferred_element_type=jnp.float32)
         + jnp.dot(sc_ref[0], w1s_ref[...], preferred_element_type=jnp.float32))
    y = jnp.maximum(y + b1_ref[...], 0.0)                       # (H*W, Cin) f32

    # ---- zero-pad (pad=1) into VMEM scratch with 8-aligned row stride ----
    ypad_ref[1:H + 1, 1:W + 1, :] = y.reshape(H, W, Cin)

    # ---- conv3x3 + ReLU: 9 shifted flat windows, f32 accumulation ----
    yflat = ypad_ref[...].reshape(ROWS * WS, Cin)
    acc = jnp.zeros((Mo, Cout), jnp.float32)
    for kh in range(3):
        for kw in range(3):
            off = kh * WS + kw
            win = yflat[off:off + Mo, :].astype(mm_dtype)
            acc = acc + jnp.dot(win, w3_ref[kh * 3 + kw],
                                preferred_element_type=jnp.float32)
    z = jnp.maximum(acc + b3_ref[...], 0.0)                     # (Mo, Cout) f32

    # ---- zero-pad z for the transposed conv ----
    zpad_ref[1:H + 1, 1:W + 1, :] = z.reshape(H, WS, Cout)[:, :W, :]

    # ---- ConvTranspose2d(k=4,s=2,p=1): 9 taps, 4 sub-pixel phases packed into
    #      the matmul output (lane) dim -> one lane-denser store ----
    zflat = zpad_ref[...].reshape(ROWS * WS, Cout)
    acc2 = jnp.zeros((Mo, 4 * Cout), jnp.float32)
    for r in range(3):
        for s in range(3):
            off = r * WS + s
            win = zflat[off:off + Mo, :].astype(mm_dtype)
            acc2 = acc2 + jnp.dot(win, wd_ref[r * 3 + s],
                                  preferred_element_type=jnp.float32)
    o_ref[...] = (acc2 + bd_ref[...])[None]                     # (1, Mo, 4*Cout)


# ------------------------------ weight packing ------------------------------

def build_deconv_tap_weights(wdec):
    # wdec: (C_in, C_out, 4, 4), PyTorch ConvTranspose2d layout.
    # out[2i+a, 2j+b, co] = bias[co] +
    #   sum_{tr,tc in {0,1}} zpad[i+a+tr, j+b+tc, ci] * wdec[ci, co, 3-a-2tr, 3-b-2tc]
    # Reparametrize r=a+tr, s=b+tc in {0,1,2}: 9 taps, with (a,b) packed into the
    # weight's output columns -> V[r*3+s] has shape (C, 4C), columns = (a,b,co).
    C = wdec.shape[0]
    taps = []
    for r in range(3):
        for s in range(3):
            cols = []
            for a in range(2):
                for b in range(2):
                    tr, tc = r - a, s - b
                    if 0 <= tr <= 1 and 0 <= tc <= 1:
                        cols.append(wdec[:, :, 3 - a - 2 * tr, 3 - b - 2 * tc])
                    else:
                        cols.append(jnp.zeros((C, C), wdec.dtype))
            taps.append(jnp.concatenate(cols, axis=1))          # (C, 4C)
    return jnp.stack(taps, axis=0)                              # (9, C, 4C)


# --------------------------------- wrapper ----------------------------------

def upsample_forward(upsampled, shortcut, params, compute_dtype=jnp.bfloat16):
    N, C_up, H, W = upsampled.shape
    C_sc = shortcut.shape[1]
    Cin = C_up + C_sc
    Cout = params["b3"].shape[-1]
    WS = _round_up(W + 2, 8)      # 8-aligned row stride for the padded scratch
    ROWS = H + 3
    Mo = H * WS

    def to_rows(t):               # NCHW -> (N, H*W, C) channels-last rows
        return jnp.transpose(t, (0, 2, 3, 1)).reshape(N, H * W, t.shape[1])

    up = to_rows(upsampled).astype(compute_dtype)
    sc = to_rows(shortcut).astype(compute_dtype)

    w1u = params["w1"][:C_up].astype(compute_dtype)             # (C_up, Cin)
    w1s = params["w1"][C_up:].astype(compute_dtype)             # (C_sc, Cin)
    b1 = params["b1"].astype(jnp.float32)                       # (1, Cin)
    w3 = params["w3"].reshape(9, Cin, Cout).astype(compute_dtype)
    b3 = params["b3"].astype(jnp.float32)                       # (1, Cout)
    wd = build_deconv_tap_weights(params["wdec"]).astype(compute_dtype)  # (9, C, 4C)
    bd = jnp.tile(params["bdec"].astype(jnp.float32), (1, 4))   # (1, 4*Cout)

    kernel = functools.partial(upsample_kernel, H=H, W=W, WS=WS,
                               Cin=Cin, Cout=Cout, mm_dtype=compute_dtype)

    o = pl.pallas_call(
        kernel,
        out_shape=jax.ShapeDtypeStruct((N, Mo, 4 * Cout), jnp.float32),
        grid=(N,),
        in_specs=[
            pl.BlockSpec((1, H * W, C_up), lambda n: (n, 0, 0)),
            pl.BlockSpec((1, H * W, C_sc), lambda n: (n, 0, 0)),
            pl.BlockSpec((C_up, Cin), lambda n: (0, 0)),
            pl.BlockSpec((C_sc, Cin), lambda n: (0, 0)),
            pl.BlockSpec((1, Cin), lambda n: (0, 0)),
            pl.BlockSpec((9, Cin, Cout), lambda n: (0, 0, 0)),
            pl.BlockSpec((1, Cout), lambda n: (0, 0)),
            pl.BlockSpec((9, Cout, 4 * Cout), lambda n: (0, 0, 0)),
            pl.BlockSpec((1, 4 * Cout), lambda n: (0, 0)),
        ],
        out_specs=pl.BlockSpec((1, Mo, 4 * Cout), lambda n: (n, 0, 0)),
        scratch_shapes=[
            pltpu.VMEM((ROWS, WS, Cin), jnp.float32),    # zero-padded conv1x1 output
            pltpu.VMEM((ROWS, WS, Cout), jnp.float32),   # zero-padded conv3x3 output
        ],
        compiler_params=pltpu.CompilerParams(dimension_semantics=("parallel",)),
    )(up, sc, w1u, w1s, b1, w3, b3, wd, bd)

    # Unscramble (single fused XLA copy): rows = i*WS + j, lanes = (2a+b)*C + c.
    o = o.reshape(N, H, WS, 2, 2, Cout)[:, :, :W]                # (n, i, j, a, b, c)
    o = jnp.transpose(o, (0, 5, 1, 3, 2, 4)).reshape(N, Cout, 2 * H, 2 * W)
    return o                                                     # NCHW


# ----------------------- pure-JAX reference (check) -------------------------

def reference_forward(upsampled, shortcut, params, dtype=jnp.float32):
    # dtype=bf16 reproduces the kernel's casting points (f32 accumulation).
    cast = lambda t: t.astype(dtype)
    x = jnp.concatenate([upsampled, shortcut], axis=1)
    x = jnp.transpose(x, (0, 2, 3, 1)).astype(jnp.float32)
    y = jnp.einsum("nhwc,cd->nhwd", cast(x), cast(params["w1"]),
                   preferred_element_type=jnp.float32)
    y = jax.nn.relu(y + params["b1"][0])
    z = lax.conv_general_dilated(cast(y), cast(params["w3"]), (1, 1),
                                 [(1, 1), (1, 1)],
                                 dimension_numbers=("NHWC", "HWIO", "NHWC"),
                                 preferred_element_type=jnp.float32)
    z = jax.nn.relu(z + params["b3"][0])
    wflip = jnp.transpose(params["wdec"][:, :, ::-1, ::-1], (2, 3, 0, 1))  # HWIO
    o = lax.conv_general_dilated(cast(z), cast(wflip), (1, 1),
                                 [(2, 2), (2, 2)], lhs_dilation=(2, 2),
                                 dimension_numbers=("NHWC", "HWIO", "NHWC"),
                                 preferred_element_type=jnp.float32)
    o = o + params["bdec"][0]
    return jnp.transpose(o, (0, 3, 1, 2))


# ----------------------------------- main ------------------------------------

if __name__ == "__main__":
    N, C_up, C_sc, H, W = 2, 2, 2, 16, 16
    Cin = C_up + C_sc          # module in_channels (channels after concat)
    Cout = 4                   # module out_channels

    key = jax.random.PRNGKey(0)
    ks = jax.random.split(key, 8)
    params = {
        "w1": 0.2 * jax.random.normal(ks[0], (Cin, Cin), jnp.float32),        # (in, out)
        "b1": 0.1 * jax.random.normal(ks[1], (1, Cin), jnp.float32),
        "w3": 0.2 * jax.random.normal(ks[2], (3, 3, Cin, Cout), jnp.float32),  # HWIO
        "b3": 0.1 * jax.random.normal(ks[3], (1, Cout), jnp.float32),
        "wdec": 0.2 * jax.random.normal(ks[4], (Cout, Cout, 4, 4), jnp.float32),
        "bdec": 0.1 * jax.random.normal(ks[5], (1, Cout), jnp.float32),
    }
    upsampled = jax.random.normal(ks[6], (N, C_up, H, W), jnp.float32)
    shortcut = jax.random.normal(ks[7], (N, C_sc, H, W), jnp.float32)

    out = jax.block_until_ready(jax.jit(upsample_forward)(upsampled, shortcut, params))
    ref_bf16 = jax.block_until_ready(
        reference_forward(upsampled, shortcut, params, jnp.bfloat16))
    ref_f32 = jax.block_until_ready(
        reference_forward(upsampled, shortcut, params, jnp.float32))

    assert out.shape == (N, Cout, 2 * H, 2 * W), out.shape
    # apples-to-apples check (same bf16 cast points, f32 accumulation)
    err_b = float(jnp.max(jnp.abs(out - ref_bf16)))
    assert err_b < 2e-3, err_b
    # sanity band against the pure-f32 module semantics (bf16 quantization noise)
    err_f = float(jnp.max(jnp.abs(out - ref_f32)))
    assert err_f < 1e-1, err_f
    print("KERNEL_OK")
</pallas_src>

<mosaic_0001>
module attributes {stable_mosaic.version = 11 : i64} {
  func.func @upsample_kernel(%arg0: i32, %arg1: memref<1x256x2xbf16, #tpu.memory_space<vmem>>, %arg2: memref<1x256x2xbf16, #tpu.memory_space<vmem>>, %arg3: memref<2x4xbf16, #tpu.memory_space<vmem>>, %arg4: memref<2x4xbf16, #tpu.memory_space<vmem>>, %arg5: memref<1x4xf32, #tpu.memory_space<vmem>>, %arg6: memref<9x4x4xbf16, #tpu.memory_space<vmem>>, %arg7: memref<1x4xf32, #tpu.memory_space<vmem>>, %arg8: memref<9x4x16xbf16, #tpu.memory_space<vmem>>, %arg9: memref<1x16xf32, #tpu.memory_space<vmem>>, %arg10: memref<1x384x16xf32, #tpu.memory_space<vmem>>, %arg11: memref<19x24x4xf32, #tpu.memory_space<vmem>>, %arg12: memref<19x24x4xf32, #tpu.memory_space<vmem>>) attributes {dimension_semantics = [#tpu.dimension_semantics<parallel>], iteration_bounds = array<i64: 2>, scalar_prefetch = 0 : i64, scratch_operands = 2 : i64, tpu.core_type = #tpu.core_type<tc>, window_params = [{transform_indices = @transform_0, window_bounds = array<i64: 1, 256, 2>}, {transform_indices = @transform_1, window_bounds = array<i64: 1, 256, 2>}, {pipeline_mode = #tpu.pipeline_mode<synchronous>, transform_indices = @transform_2, window_bounds = array<i64: 2, 4>}, {pipeline_mode = #tpu.pipeline_mode<synchronous>, transform_indices = @transform_3, window_bounds = array<i64: 2, 4>}, {pipeline_mode = #tpu.pipeline_mode<synchronous>, transform_indices = @transform_4, window_bounds = array<i64: 1, 4>}, {pipeline_mode = #tpu.pipeline_mode<synchronous>, transform_indices = @transform_5, window_bounds = array<i64: 9, 4, 4>}, {pipeline_mode = #tpu.pipeline_mode<synchronous>, transform_indices = @transform_6, window_bounds = array<i64: 1, 4>}, {pipeline_mode = #tpu.pipeline_mode<synchronous>, transform_indices = @transform_7, window_bounds = array<i64: 9, 4, 16>}, {pipeline_mode = #tpu.pipeline_mode<synchronous>, transform_indices = @transform_8, window_bounds = array<i64: 1, 16>}, {transform_indices = @transform_9, window_bounds = array<i64: 1, 384, 16>}]} {
    %cst = arith.constant 0.000000e+00 : f32
    %0 = vector.broadcast %cst : f32 to vector<19x24x4xf32>
    %c0 = arith.constant 0 : index
    %c0_0 = arith.constant 0 : index
    %c0_1 = arith.constant 0 : index
    %1 = vector.load %arg11[%c0, %c0_0, %c0_1] : memref<19x24x4xf32, #tpu.memory_space<vmem>>, vector<19x24x4xf32>
    tpu.vector_store %arg11[%c0, %c0_0, %c0_1], %0 {strides = array<i32>} : memref<19x24x4xf32, #tpu.memory_space<vmem>>, vector<19x24x4xf32>,
    %cst_2 = arith.constant 0.000000e+00 : f32
    %2 = vector.broadcast %cst_2 : f32 to vector<19x24x4xf32>
    %c0_3 = arith.constant 0 : index
    %c0_4 = arith.constant 0 : index
    %c0_5 = arith.constant 0 : index
    %3 = vector.load %arg12[%c0_3, %c0_4, %c0_5] : memref<19x24x4xf32, #tpu.memory_space<vmem>>, vector<19x24x4xf32>
    tpu.vector_store %arg12[%c0_3, %c0_4, %c0_5], %2 {strides = array<i32>} : memref<19x24x4xf32, #tpu.memory_space<vmem>>, vector<19x24x4xf32>,
    %c0_6 = arith.constant 0 : index
    %c0_7 = arith.constant 0 : index
    %c0_8 = arith.constant 0 : index
    %4 = vector.load %arg1[%c0_6, %c0_7, %c0_8] : memref<1x256x2xbf16, #tpu.memory_space<vmem>>, vector<1x256x2xbf16>
    %5 = vector.shape_cast %4 : vector<1x256x2xbf16> to vector<256x2xbf16>
    %c0_9 = arith.constant 0 : index
    %c0_10 = arith.constant 0 : index
    %6 = vector.load %arg3[%c0_9, %c0_10] : memref<2x4xbf16, #tpu.memory_space<vmem>>, vector<2x4xbf16>
    %cst_11 = arith.constant dense<0.000000e+00> : vector<256x4xf32>
    %7 = tpu.matmul %5, %6, %cst_11 {dimension_numbers = #tpu.dot_dimension_numbers<[1], [0], [0], [1], [0, 0, 1, 1], [], []>} : vector<256x2xbf16>, vector<2x4xbf16>, vector<256x4xf32> -> vector<256x4xf32>
    %c0_12 = arith.constant 0 : index
    %c0_13 = arith.constant 0 : index
    %c0_14 = arith.constant 0 : index
    %8 = vector.load %arg2[%c0_12, %c0_13, %c0_14] : memref<1x256x2xbf16, #tpu.memory_space<vmem>>, vector<1x256x2xbf16>
    %9 = vector.shape_cast %8 : vector<1x256x2xbf16> to vector<256x2xbf16>
    %c0_15 = arith.constant 0 : index
    %c0_16 = arith.constant 0 : index
    %10 = vector.load %arg4[%c0_15, %c0_16] : memref<2x4xbf16, #tpu.memory_space<vmem>>, vector<2x4xbf16>
    %cst_17 = arith.constant dense<0.000000e+00> : vector<256x4xf32>
    %11 = tpu.matmul %9, %10, %cst_17 {dimension_numbers = #tpu.dot_dimension_numbers<[1], [0], [0], [1], [0, 0, 1, 1], [], []>} : vector<256x2xbf16>, vector<2x4xbf16>, vector<256x4xf32> -> vector<256x4xf32>
    %12 = arith.addf %7, %11 : vector<256x4xf32>
    %c0_18 = arith.constant 0 : index
    %c0_19 = arith.constant 0 : index
    %13 = vector.load %arg5[%c0_18, %c0_19] : memref<1x4xf32, #tpu.memory_space<vmem>>, vector<1x4xf32>
    %14 = vector.broadcast %13 : vector<1x4xf32> to vector<256x4xf32>
    %15 = arith.addf %12, %14 : vector<256x4xf32>
    %cst_20 = arith.constant 0.000000e+00 : f32
    %16 = vector.broadcast %cst_20 : f32 to vector<256x4xf32>
    %17 = arith.maximumf %15, %16 : vector<256x4xf32>
    %18 = vector.shape_cast %17 : vector<256x4xf32> to vector<16x16x4xf32>
    %c1 = arith.constant 1 : index
    %c1_21 = arith.constant 1 : index
    %c0_22 = arith.constant 0 : index
    %19 = vector.load %arg11[%c1, %c1_21, %c0_22] : memref<19x24x4xf32, #tpu.memory_space<vmem>>, vector<16x16x4xf32>
    tpu.vector_store %arg11[%c1, %c1_21, %c0_22], %18 {strides = array<i32>} : memref<19x24x4xf32, #tpu.memory_space<vmem>>, vector<16x16x4xf32>,
    %c0_23 = arith.constant 0 : index
    %c0_24 = arith.constant 0 : index
    %c0_25 = arith.constant 0 : index
    %20 = vector.load %arg11[%c0_23, %c0_24, %c0_25] : memref<19x24x4xf32, #tpu.memory_space<vmem>>, vector<19x24x4xf32>
    %21 = vector.shape_cast %20 : vector<19x24x4xf32> to vector<456x4xf32>
    %cst_26 = arith.constant 0.000000e+00 : f32
    %22 = vector.broadcast %cst_26 : f32 to vector<384x4xf32>
    %23 = vector.extract_strided_slice %21 {offsets = [0, 0], sizes = [384, 4], strides = [1, 1]} : vector<456x4xf32> to vector<384x4xf32>
    %24 = arith.truncf %23 : vector<384x4xf32> to vector<384x4xbf16>
    %c0_27 = arith.constant 0 : index
    %c0_28 = arith.constant 0 : index
    %c0_29 = arith.constant 0 : index
    %25 = vector.load %arg6[%c0_27, %c0_28, %c0_29] : memref<9x4x4xbf16, #tpu.memory_space<vmem>>, vector<1x4x4xbf16>
    %26 = vector.shape_cast %25 : vector<1x4x4xbf16> to vector<4x4xbf16>
    %cst_30 = arith.constant dense<0.000000e+00> : vector<384x4xf32>
    %27 = tpu.matmul %24, %26, %cst_30 {dimension_numbers = #tpu.dot_dimension_numbers<[1], [0], [0], [1], [0, 0, 1, 1], [], []>} : vector<384x4xbf16>, vector<4x4xbf16>, vector<384x4xf32> -> vector<384x4xf32>
    %28 = arith.addf %22, %27 : vector<384x4xf32>
    %29 = vector.extract_strided_slice %21 {offsets = [1, 0], sizes = [384, 4], strides = [1, 1]} : vector<456x4xf32> to vector<384x4xf32>
    %30 = arith.truncf %29 : vector<384x4xf32> to vector<384x4xbf16>
    %c1_31 = arith.constant 1 : index
    %c0_32 = arith.constant 0 : index
    %c0_33 = arith.constant 0 : index
    %31 = vector.load %arg6[%c1_31, %c0_32, %c0_33] : memref<9x4x4xbf16, #tpu.memory_space<vmem>>, vector<1x4x4xbf16>
    %32 = vector.shape_cast %31 : vector<1x4x4xbf16> to vector<4x4xbf16>
    %cst_34 = arith.constant dense<0.000000e+00> : vector<384x4xf32>
    %33 = tpu.matmul %30, %32, %cst_34 {dimension_numbers = #tpu.dot_dimension_numbers<[1], [0], [0], [1], [0, 0, 1, 1], [], []>} : vector<384x4xbf16>, vector<4x4xbf16>, vector<384x4xf32> -> vector<384x4xf32>
    %34 = arith.addf %28, %33 : vector<384x4xf32>
    %35 = vector.extract_strided_slice %21 {offsets = [2, 0], sizes = [384, 4], strides = [1, 1]} : vector<456x4xf32> to vector<384x4xf32>
    %36 = arith.truncf %35 : vector<384x4xf32> to vector<384x4xbf16>
    %c2 = arith.constant 2 : index
    %c0_35 = arith.constant 0 : index
    %c0_36 = arith.constant 0 : index
    %37 = vector.load %arg6[%c2, %c0_35, %c0_36] : memref<9x4x4xbf16, #tpu.memory_space<vmem>>, vector<1x4x4xbf16>
    %38 = vector.shape_cast %37 : vector<1x4x4xbf16> to vector<4x4xbf16>
    %cst_37 = arith.constant dense<0.000000e+00> : vector<384x4xf32>
    %39 = tpu.matmul %36, %38, %cst_37 {dimension_numbers = #tpu.dot_dimension_numbers<[1], [0], [0], [1], [0, 0, 1, 1], [], []>} : vector<384x4xbf16>, vector<4x4xbf16>, vector<384x4xf32> -> vector<384x4xf32>
    %40 = arith.addf %34, %39 : vector<384x4xf32>
    %41 = vector.extract_strided_slice %21 {offsets = [24, 0], sizes = [384, 4], strides = [1, 1]} : vector<456x4xf32> to vector<384x4xf32>
    %42 = arith.truncf %41 : vector<384x4xf32> to vector<384x4xbf16>
    %c3 = arith.constant 3 : index
    %c0_38 = arith.constant 0 : index
    %c0_39 = arith.constant 0 : index
    %43 = vector.load %arg6[%c3, %c0_38, %c0_39] : memref<9x4x4xbf16, #tpu.memory_space<vmem>>, vector<1x4x4xbf16>
    %44 = vector.shape_cast %43 : vector<1x4x4xbf16> to vector<4x4xbf16>
    %cst_40 = arith.constant dense<0.000000e+00> : vector<384x4xf32>
    %45 = tpu.matmul %42, %44, %cst_40 {dimension_numbers = #tpu.dot_dimension_numbers<[1], [0], [0], [1], [0, 0, 1, 1], [], []>} : vector<384x4xbf16>, vector<4x4xbf16>, vector<384x4xf32> -> vector<384x4xf32>
    %46 = arith.addf %40, %45 : vector<384x4xf32>
    %47 = vector.extract_strided_slice %21 {offsets = [25, 0], sizes = [384, 4], strides = [1, 1]} : vector<456x4xf32> to vector<384x4xf32>
    %48 = arith.truncf %47 : vector<384x4xf32> to vector<384x4xbf16>
    %c4 = arith.constant 4 : index
    %c0_41 = arith.constant 0 : index
    %c0_42 = arith.constant 0 : index
    %49 = vector.load %arg6[%c4, %c0_41, %c0_42] : memref<9x4x4xbf16, #tpu.memory_space<vmem>>, vector<1x4x4xbf16>
    %50 = vector.shape_cast %49 : vector<1x4x4xbf16> to vector<4x4xbf16>
    %cst_43 = arith.constant dense<0.000000e+00> : vector<384x4xf32>
    %51 = tpu.matmul %48, %50, %cst_43 {dimension_numbers = #tpu.dot_dimension_numbers<[1], [0], [0], [1], [0, 0, 1, 1], [], []>} : vector<384x4xbf16>, vector<4x4xbf16>, vector<384x4xf32> -> vector<384x4xf32>
    %52 = arith.addf %46, %51 : vector<384x4xf32>
    %53 = vector.extract_strided_slice %21 {offsets = [26, 0], sizes = [384, 4], strides = [1, 1]} : vector<456x4xf32> to vector<384x4xf32>
    %54 = arith.truncf %53 : vector<384x4xf32> to vector<384x4xbf16>
    %c5 = arith.constant 5 : index
    %c0_44 = arith.constant 0 : index
    %c0_45 = arith.constant 0 : index
    %55 = vector.load %arg6[%c5, %c0_44, %c0_45] : memref<9x4x4xbf16, #tpu.memory_space<vmem>>, vector<1x4x4xbf16>
    %56 = vector.shape_cast %55 : vector<1x4x4xbf16> to vector<4x4xbf16>
    %cst_46 = arith.constant dense<0.000000e+00> : vector<384x4xf32>
    %57 = tpu.matmul %54, %56, %cst_46 {dimension_numbers = #tpu.dot_dimension_numbers<[1], [0], [0], [1], [0, 0, 1, 1], [], []>} : vector<384x4xbf16>, vector<4x4xbf16>, vector<384x4xf32> -> vector<384x4xf32>
    %58 = arith.addf %52, %57 : vector<384x4xf32>
    %59 = vector.extract_strided_slice %21 {offsets = [48, 0], sizes = [384, 4], strides = [1, 1]} : vector<456x4xf32> to vector<384x4xf32>
    %60 = arith.truncf %59 : vector<384x4xf32> to vector<384x4xbf16>
    %c6 = arith.constant 6 : index
    %c0_47 = arith.constant 0 : index
    %c0_48 = arith.constant 0 : index
    %61 = vector.load %arg6[%c6, %c0_47, %c0_48] : memref<9x4x4xbf16, #tpu.memory_space<vmem>>, vector<1x4x4xbf16>
    %62 = vector.shape_cast %61 : vector<1x4x4xbf16> to vector<4x4xbf16>
    %cst_49 = arith.constant dense<0.000000e+00> : vector<384x4xf32>
    %63 = tpu.matmul %60, %62, %cst_49 {dimension_numbers = #tpu.dot_dimension_numbers<[1], [0], [0], [1], [0, 0, 1, 1], [], []>} : vector<384x4xbf16>, vector<4x4xbf16>, vector<384x4xf32> -> vector<384x4xf32>
    %64 = arith.addf %58, %63 : vector<384x4xf32>
    %65 = vector.extract_strided_slice %21 {offsets = [49, 0], sizes = [384, 4], strides = [1, 1]} : vector<456x4xf32> to vector<384x4xf32>
    %66 = arith.truncf %65 : vector<384x4xf32> to vector<384x4xbf16>
    %c7 = arith.constant 7 : index
    %c0_50 = arith.constant 0 : index
    %c0_51 = arith.constant 0 : index
    %67 = vector.load %arg6[%c7, %c0_50, %c0_51] : memref<9x4x4xbf16, #tpu.memory_space<vmem>>, vector<1x4x4xbf16>
    %68 = vector.shape_cast %67 : vector<1x4x4xbf16> to vector<4x4xbf16>
    %cst_52 = arith.constant dense<0.000000e+00> : vector<384x4xf32>
    %69 = tpu.matmul %66, %68, %cst_52 {dimension_numbers = #tpu.dot_dimension_numbers<[1], [0], [0], [1], [0, 0, 1, 1], [], []>} : vector<384x4xbf16>, vector<4x4xbf16>, vector<384x4xf32> -> vector<384x4xf32>
    %70 = arith.addf %64, %69 : vector<384x4xf32>
    %71 = vector.extract_strided_slice %21 {offsets = [50, 0], sizes = [384, 4], strides = [1, 1]} : vector<456x4xf32> to vector<384x4xf32>
    %72 = arith.truncf %71 : vector<384x4xf32> to vector<384x4xbf16>
    %c8 = arith.constant 8 : index
    %c0_53 = arith.constant 0 : index
    %c0_54 = arith.constant 0 : index
    %73 = vector.load %arg6[%c8, %c0_53, %c0_54] : memref<9x4x4xbf16, #tpu.memory_space<vmem>>, vector<1x4x4xbf16>
    %74 = vector.shape_cast %73 : vector<1x4x4xbf16> to vector<4x4xbf16>
    %cst_55 = arith.constant dense<0.000000e+00> : vector<384x4xf32>
    %75 = tpu.matmul %72, %74, %cst_55 {dimension_numbers = #tpu.dot_dimension_numbers<[1], [0], [0], [1], [0, 0, 1, 1], [], []>} : vector<384x4xbf16>, vector<4x4xbf16>, vector<384x4xf32> -> vector<384x4xf32>
    %76 = arith.addf %70, %75 : vector<384x4xf32>
    %c0_56 = arith.constant 0 : index
    %c0_57 = arith.constant 0 : index
    %77 = vector.load %arg7[%c0_56, %c0_57] : memref<1x4xf32, #tpu.memory_space<vmem>>, vector<1x4xf32>
    %78 = vector.broadcast %77 : vector<1x4xf32> to vector<384x4xf32>
    %79 = arith.addf %76, %78 : vector<384x4xf32>
    %cst_58 = arith.constant 0.000000e+00 : f32
    %80 = vector.broadcast %cst_58 : f32 to vector<384x4xf32>
    %81 = arith.maximumf %79, %80 : vector<384x4xf32>
    %82 = vector.shape_cast %81 : vector<384x4xf32> to vector<16x24x4xf32>
    %83 = vector.extract_strided_slice %82 {offsets = [0, 0, 0], sizes = [16, 16, 4], strides = [1, 1, 1]} : vector<16x24x4xf32> to vector<16x16x4xf32>
    %c1_59 = arith.constant 1 : index
    %c1_60 = arith.constant 1 : index
    %c0_61 = arith.constant 0 : index
    %84 = vector.load %arg12[%c1_59, %c1_60, %c0_61] : memref<19x24x4xf32, #tpu.memory_space<vmem>>, vector<16x16x4xf32>
    tpu.vector_store %arg12[%c1_59, %c1_60, %c0_61], %83 {strides = array<i32>} : memref<19x24x4xf32, #tpu.memory_space<vmem>>, vector<16x16x4xf32>,
    %c0_62 = arith.constant 0 : index
    %c0_63 = arith.constant 0 : index
    %c0_64 = arith.constant 0 : index
    %85 = vector.load %arg12[%c0_62, %c0_63, %c0_64] : memref<19x24x4xf32, #tpu.memory_space<vmem>>, vector<19x24x4xf32>
    %86 = vector.shape_cast %85 : vector<19x24x4xf32> to vector<456x4xf32>
    %cst_65 = arith.constant 0.000000e+00 : f32
    %87 = vector.broadcast %cst_65 : f32 to vector<384x16xf32>
    %88 = vector.extract_strided_slice %86 {offsets = [0, 0], sizes = [384, 4], strides = [1, 1]} : vector<456x4xf32> to vector<384x4xf32>
    %89 = arith.truncf %88 : vector<384x4xf32> to vector<384x4xbf16>
    %c0_66 = arith.constant 0 : index
    %c0_67 = arith.constant 0 : index
    %c0_68 = arith.constant 0 : index
    %90 = vector.load %arg8[%c0_66, %c0_67, %c0_68] : memref<9x4x16xbf16, #tpu.memory_space<vmem>>, vector<1x4x16xbf16>
    %91 = vector.shape_cast %90 : vector<1x4x16xbf16> to vector<4x16xbf16>
    %cst_69 = arith.constant dense<0.000000e+00> : vector<384x16xf32>
    %92 = tpu.matmul %89, %91, %cst_69 {dimension_numbers = #tpu.dot_dimension_numbers<[1], [0], [0], [1], [0, 0, 1, 1], [], []>} : vector<384x4xbf16>, vector<4x16xbf16>, vector<384x16xf32> -> vector<384x16xf32>
    %93 = arith.addf %87, %92 : vector<384x16xf32>
    %94 = vector.extract_strided_slice %86 {offsets = [1, 0], sizes = [384, 4], strides = [1, 1]} : vector<456x4xf32> to vector<384x4xf32>
    %95 = arith.truncf %94 : vector<384x4xf32> to vector<384x4xbf16>
    %c1_70 = arith.constant 1 : index
    %c0_71 = arith.constant 0 : index
    %c0_72 = arith.constant 0 : index
    %96 = vector.load %arg8[%c1_70, %c0_71, %c0_72] : memref<9x4x16xbf16, #tpu.memory_space<vmem>>, vector<1x4x16xbf16>
    %97 = vector.shape_cast %96 : vector<1x4x16xbf16> to vector<4x16xbf16>
    %cst_73 = arith.constant dense<0.000000e+00> : vector<384x16xf32>
    %98 = tpu.matmul %95, %97, %cst_73 {dimension_numbers = #tpu.dot_dimension_numbers<[1], [0], [0], [1], [0, 0, 1, 1], [], []>} : vector<384x4xbf16>, vector<4x16xbf16>, vector<384x16xf32> -> vector<384x16xf32>
    %99 = arith.addf %93, %98 : vector<384x16xf32>
    %100 = vector.extract_strided_slice %86 {offsets = [2, 0], sizes = [384, 4], strides = [1, 1]} : vector<456x4xf32> to vector<384x4xf32>
    %101 = arith.truncf %100 : vector<384x4xf32> to vector<384x4xbf16>
    %c2_74 = arith.constant 2 : index
    %c0_75 = arith.constant 0 : index
    %c0_76 = arith.constant 0 : index
    %102 = vector.load %arg8[%c2_74, %c0_75, %c0_76] : memref<9x4x16xbf16, #tpu.memory_space<vmem>>, vector<1x4x16xbf16>
    %103 = vector.shape_cast %102 : vector<1x4x16xbf16> to vector<4x16xbf16>
    %cst_77 = arith.constant dense<0.000000e+00> : vector<384x16xf32>
    %104 = tpu.matmul %101, %103, %cst_77 {dimension_numbers = #tpu.dot_dimension_numbers<[1], [0], [0], [1], [0, 0, 1, 1], [], []>} : vector<384x4xbf16>, vector<4x16xbf16>, vector<384x16xf32> -> vector<384x16xf32>
    %105 = arith.addf %99, %104 : vector<384x16xf32>
    %106 = vector.extract_strided_slice %86 {offsets = [24, 0], sizes = [384, 4], strides = [1, 1]} : vector<456x4xf32> to vector<384x4xf32>
    %107 = arith.truncf %106 : vector<384x4xf32> to vector<384x4xbf16>
    %c3_78 = arith.constant 3 : index
    %c0_79 = arith.constant 0 : index
    %c0_80 = arith.constant 0 : index
    %108 = vector.load %arg8[%c3_78, %c0_79, %c0_80] : memref<9x4x16xbf16, #tpu.memory_space<vmem>>, vector<1x4x16xbf16>
    %109 = vector.shape_cast %108 : vector<1x4x16xbf16> to vector<4x16xbf16>
    %cst_81 = arith.constant dense<0.000000e+00> : vector<384x16xf32>
    %110 = tpu.matmul %107, %109, %cst_81 {dimension_numbers = #tpu.dot_dimension_numbers<[1], [0], [0], [1], [0, 0, 1, 1], [], []>} : vector<384x4xbf16>, vector<4x16xbf16>, vector<384x16xf32> -> vector<384x16xf32>
    %111 = arith.addf %105, %110 : vector<384x16xf32>
    %112 = vector.extract_strided_slice %86 {offsets = [25, 0], sizes = [384, 4], strides = [1, 1]} : vector<456x4xf32> to vector<384x4xf32>
    %113 = arith.truncf %112 : vector<384x4xf32> to vector<384x4xbf16>
    %c4_82 = arith.constant 4 : index
    %c0_83 = arith.constant 0 : index
    %c0_84 = arith.constant 0 : index
    %114 = vector.load %arg8[%c4_82, %c0_83, %c0_84] : memref<9x4x16xbf16, #tpu.memory_space<vmem>>, vector<1x4x16xbf16>
    %115 = vector.shape_cast %114 : vector<1x4x16xbf16> to vector<4x16xbf16>
    %cst_85 = arith.constant dense<0.000000e+00> : vector<384x16xf32>
    %116 = tpu.matmul %113, %115, %cst_85 {dimension_numbers = #tpu.dot_dimension_numbers<[1], [0], [0], [1], [0, 0, 1, 1], [], []>} : vector<384x4xbf16>, vector<4x16xbf16>, vector<384x16xf32> -> vector<384x16xf32>
    %117 = arith.addf %111, %116 : vector<384x16xf32>
    %118 = vector.extract_strided_slice %86 {offsets = [26, 0], sizes = [384, 4], strides = [1, 1]} : vector<456x4xf32> to vector<384x4xf32>
    %119 = arith.truncf %118 : vector<384x4xf32> to vector<384x4xbf16>
    %c5_86 = arith.constant 5 : index
    %c0_87 = arith.constant 0 : index
    %c0_88 = arith.constant 0 : index
    %120 = vector.load %arg8[%c5_86, %c0_87, %c0_88] : memref<9x4x16xbf16, #tpu.memory_space<vmem>>, vector<1x4x16xbf16>
    %121 = vector.shape_cast %120 : vector<1x4x16xbf16> to vector<4x16xbf16>
    %cst_89 = arith.constant dense<0.000000e+00> : vector<384x16xf32>
    %122 = tpu.matmul %119, %121, %cst_89 {dimension_numbers = #tpu.dot_dimension_numbers<[1], [0], [0], [1], [0, 0, 1, 1], [], []>} : vector<384x4xbf16>, vector<4x16xbf16>, vector<384x16xf32> -> vector<384x16xf32>
    %123 = arith.addf %117, %122 : vector<384x16xf32>
    %124 = vector.extract_strided_slice %86 {offsets = [48, 0], sizes = [384, 4], strides = [1, 1]} : vector<456x4xf32> to vector<384x4xf32>
    %125 = arith.truncf %124 : vector<384x4xf32> to vector<384x4xbf16>
    %c6_90 = arith.constant 6 : index
    %c0_91 = arith.constant 0 : index
    %c0_92 = arith.constant 0 : index
    %126 = vector.load %arg8[%c6_90, %c0_91, %c0_92] : memref<9x4x16xbf16, #tpu.memory_space<vmem>>, vector<1x4x16xbf16>
    %127 = vector.shape_cast %126 : vector<1x4x16xbf16> to vector<4x16xbf16>
    %cst_93 = arith.constant dense<0.000000e+00> : vector<384x16xf32>
    %128 = tpu.matmul %125, %127, %cst_93 {dimension_numbers = #tpu.dot_dimension_numbers<[1], [0], [0], [1], [0, 0, 1, 1], [], []>} : vector<384x4xbf16>, vector<4x16xbf16>, vector<384x16xf32> -> vector<384x16xf32>
    %129 = arith.addf %123, %128 : vector<384x16xf32>
    %130 = vector.extract_strided_slice %86 {offsets = [49, 0], sizes = [384, 4], strides = [1, 1]} : vector<456x4xf32> to vector<384x4xf32>
    %131 = arith.truncf %130 : vector<384x4xf32> to vector<384x4xbf16>
    %c7_94 = arith.constant 7 : index
    %c0_95 = arith.constant 0 : index
    %c0_96 = arith.constant 0 : index
    %132 = vector.load %arg8[%c7_94, %c0_95, %c0_96] : memref<9x4x16xbf16, #tpu.memory_space<vmem>>, vector<1x4x16xbf16>
    %133 = vector.shape_cast %132 : vector<1x4x16xbf16> to vector<4x16xbf16>
    %cst_97 = arith.constant dense<0.000000e+00> : vector<384x16xf32>
    %134 = tpu.matmul %131, %133, %cst_97 {dimension_numbers = #tpu.dot_dimension_numbers<[1], [0], [0], [1], [0, 0, 1, 1], [], []>} : vector<384x4xbf16>, vector<4x16xbf16>, vector<384x16xf32> -> vector<384x16xf32>
    %135 = arith.addf %129, %134 : vector<384x16xf32>
    %136 = vector.extract_strided_slice %86 {offsets = [50, 0], sizes = [384, 4], strides = [1, 1]} : vector<456x4xf32> to vector<384x4xf32>
    %137 = arith.truncf %136 : vector<384x4xf32> to vector<384x4xbf16>
    %c8_98 = arith.constant 8 : index
    %c0_99 = arith.constant 0 : index
    %c0_100 = arith.constant 0 : index
    %138 = vector.load %arg8[%c8_98, %c0_99, %c0_100] : memref<9x4x16xbf16, #tpu.memory_space<vmem>>, vector<1x4x16xbf16>
    %139 = vector.shape_cast %138 : vector<1x4x16xbf16> to vector<4x16xbf16>
    %cst_101 = arith.constant dense<0.000000e+00> : vector<384x16xf32>
    %140 = tpu.matmul %137, %139, %cst_101 {dimension_numbers = #tpu.dot_dimension_numbers<[1], [0], [0], [1], [0, 0, 1, 1], [], []>} : vector<384x4xbf16>, vector<4x16xbf16>, vector<384x16xf32> -> vector<384x16xf32>
    %141 = arith.addf %135, %140 : vector<384x16xf32>
    %c0_102 = arith.constant 0 : index
    %c0_103 = arith.constant 0 : index
    %142 = vector.load %arg9[%c0_102, %c0_103] : memref<1x16xf32, #tpu.memory_space<vmem>>, vector<1x16xf32>
    %143 = vector.broadcast %142 : vector<1x16xf32> to vector<384x16xf32>
    %144 = arith.addf %141, %143 : vector<384x16xf32>
    %145 = vector.shape_cast %144 : vector<384x16xf32> to vector<1x384x16xf32>
    %c0_104 = arith.constant 0 : index
    %c0_105 = arith.constant 0 : index
    %c0_106 = arith.constant 0 : index
    %146 = vector.load %arg10[%c0_104, %c0_105, %c0_106] : memref<1x384x16xf32, #tpu.memory_space<vmem>>, vector<1x384x16xf32>
    tpu.vector_store %arg10[%c0_104, %c0_105, %c0_106], %145 {strides = array<i32>} : memref<1x384x16xf32, #tpu.memory_space<vmem>>, vector<1x384x16xf32>,
    return
  }
  func.func @transform_0(%arg0: i32) -> (i32, i32, i32) {
    %c0_i32 = arith.constant 0 : i32
    %c0_i32_0 = arith.constant 0 : i32
    %c0_i32_1 = arith.constant 0 : i32
    return %arg0, %c0_i32, %c0_i32_0 : i32, i32, i32
  }
  func.func @transform_1(%arg0: i32) -> (i32, i32, i32) {
    %c0_i32 = arith.constant 0 : i32
    %c0_i32_0 = arith.constant 0 : i32
    %c0_i32_1 = arith.constant 0 : i32
    return %arg0, %c0_i32, %c0_i32_0 : i32, i32, i32
  }
  func.func @transform_2(%arg0: i32) -> (i32, i32) {
    %c0_i32 = arith.constant 0 : i32
    %c0_i32_0 = arith.constant 0 : i32
    %c0_i32_1 = arith.constant 0 : i32
    return %c0_i32, %c0_i32_0 : i32, i32
  }
  func.func @transform_3(%arg0: i32) -> (i32, i32) {
    %c0_i32 = arith.constant 0 : i32
    %c0_i32_0 = arith.constant 0 : i32
    %c0_i32_1 = arith.constant 0 : i32
    return %c0_i32, %c0_i32_0 : i32, i32
  }
  func.func @transform_4(%arg0: i32) -> (i32, i32) {
    %c0_i32 = arith.constant 0 : i32
    %c0_i32_0 = arith.constant 0 : i32
    %c0_i32_1 = arith.constant 0 : i32
    return %c0_i32, %c0_i32_0 : i32, i32
  }
  func.func @transform_5(%arg0: i32) -> (i32, i32, i32) {
    %c0_i32 = arith.constant 0 : i32
    %c0_i32_0 = arith.constant 0 : i32
    %c0_i32_1 = arith.constant 0 : i32
    %c0_i32_2 = arith.constant 0 : i32
    return %c0_i32, %c0_i32_0, %c0_i32_1 : i32, i32, i32
  }
  func.func @transform_6(%arg0: i32) -> (i32, i32) {
    %c0_i32 = arith.constant 0 : i32
    %c0_i32_0 = arith.constant 0 : i32
    %c0_i32_1 = arith.constant 0 : i32
    return %c0_i32, %c0_i32_0 : i32, i32
  }
  func.func @transform_7(%arg0: i32) -> (i32, i32, i32) {
    %c0_i32 = arith.constant 0 : i32
    %c0_i32_0 = arith.constant 0 : i32
    %c0_i32_1 = arith.constant 0 : i32
    %c0_i32_2 = arith.constant 0 : i32
    return %c0_i32, %c0_i32_0, %c0_i32_1 : i32, i32, i32
  }
  func.func @transform_8(%arg0: i32) -> (i32, i32) {
    %c0_i32 = arith.constant 0 : i32
    %c0_i32_0 = arith.constant 0 : i32
    %c0_i32_1 = arith.constant 0 : i32
    return %c0_i32, %c0_i32_0 : i32, i32
  }
  func.func @transform_9(%arg0: i32) -> (i32, i32, i32) {
    %c0_i32 = arith.constant 0 : i32
    %c0_i32_0 = arith.constant 0 : i32
    %c0_i32_1 = arith.constant 0 : i32
    return %arg0, %c0_i32, %c0_i32_0 : i32, i32, i32
  }
}

</mosaic_0001>

<llo_original>
// kernel: upsample_forward.1
$region0: #{upsample_forward.1}
  #allocation0 [shape = 'u32[]', space=smem, size = 0x4, offset = 0x4, fixed_abs, tag = 'smem constant byte address 0x4 - core index']
  #allocation1 [shape = 'u32[72,128]{1,0:T(1,128)}', space=vmem, size = 0x9000, scoped, tag = 'internal scratch']
  #allocation2 [shape = 'f32[19,24,4]{2,1,0:T(8,128)}', space=vmem, size = 0x39000, scoped, tag = 'scratch operand']
  #allocation3 [shape = 'f32[19,24,4]{2,1,0:T(8,128)}', space=vmem, size = 0x39000, scoped, tag = 'scratch operand']
  %s0 = inlined_call_operand.vmem [shape: bf16[2,256,2], index: 0, kind: input, shape index: {}]
  %s1 = inlined_call_operand.vmem [shape: bf16[2,256,2], index: 1, kind: input, shape index: {}]
  %s2 = inlined_call_operand.vmem [shape: bf16[2,4], index: 2, kind: input, shape index: {}]
  %s3 = inlined_call_operand.vmem [shape: bf16[2,4], index: 3, kind: input, shape index: {}]
  %s4 = inlined_call_operand.vmem [shape: f32[1,4], index: 4, kind: input, shape index: {}]
  %s5 = inlined_call_operand.vmem [shape: bf16[9,4,4], index: 5, kind: input, shape index: {}]
  %s6 = inlined_call_operand.vmem [shape: f32[1,4], index: 6, kind: input, shape index: {}]
  %s7 = inlined_call_operand.vmem [shape: bf16[9,4,16], index: 7, kind: input, shape index: {}]
  %s8 = inlined_call_operand.vmem [shape: f32[1,16], index: 8, kind: input, shape index: {}]
  %s9 = inlined_call_operand.vmem [shape: f32[2,384,16], index: 9, kind: output, shape index: {}]
  %s10 = sld [smem:[#allocation0]]
  $region69: #{upsample_forward.1} parent=0
    _
  %s12 = ssub.s32 1, %s10
  %s13 = scalar_select 0, %s12, %s10
  loop: start=0, step=1, limit=4
  $region2: #{upsample_forward.1} parent=0 // loop_pre_header
    _
  $region3: #{upsample_forward.1} parent=0 // loop_header
    %s15 = sphi 0, %s19
    %p16 = scmp.ge.s32.totalorder %s15, 4
    %s25 = sphi 0, %s27
    %s28 = sphi 0, %s25
    %s29 = sphi 0, %s28
    %s45 = sphi 0, %s29
    %s51 = sphi 0, %s53
    %s54 = sphi 0, %s51
    %s55 = sphi 0, %s54
    %s71 = sphi 0, %s55
    %s75 = sphi 0, %s75
    %s77 = sphi 0, %s75
    %s78 = sphi 0, %s77
    %s92 = sphi 0, %s78
    %s96 = sphi 0, %s96
    %s98 = sphi 0, %s96
    %s99 = sphi 0, %s98
    %s113 = sphi 0, %s99
    %s117 = sphi 0, %s117
    %s119 = sphi 0, %s117
    %s120 = sphi 0, %s119
    %s134 = sphi 0, %s120
    %s138 = sphi 0, %s138
    %s140 = sphi 0, %s138
    %s141 = sphi 0, %s140
    %s155 = sphi 0, %s141
    %s159 = sphi 0, %s159
    %s161 = sphi 0, %s159
    %s162 = sphi 0, %s161
    %s176 = sphi 0, %s162
    %s180 = sphi 0, %s180
    %s182 = sphi 0, %s180
    %s183 = sphi 0, %s182
    %s197 = sphi 0, %s183
    %s201 = sphi 0, %s201
    %s203 = sphi 0, %s201
    %s204 = sphi 0, %s203
    %s218 = sphi 0, %s204
    %s224 = sphi 0, %s226
    %s227 = sphi 0, %s224
    %s228 = sphi 0, %s227
    %s244 = sphi 0, %s228
  $region4: #{upsample_forward.1} parent=0 // loop_header_branch
    %18 = sbr.rel (%p16) target = $region8
  $region5: #{upsample_forward.1} parent=0 // loop_body
    %s20 = ssub.s32 %s15, 1
    %s21 = ssub.s32 %s15, 2
    %s22 = sadd.s32 %s15, 1
    %s23 = ssub.s32 %s15, %s22
    %p24 = scmp.eq.s32.totalorder %s23, 0
    %s26 = sadd.s32 %s25, 1
    %s27 = scalar_select %p24, %s25, %s26
    %p30 = pneg %p24
    %p31 = scmp.eq.s32.totalorder %s15, 1
    %p32 = por %p30, %p31
    %p33 = scmp.ne.s32.totalorder %s25, %s28
    %p34 = scmp.eq.s32.totalorder %s15, 0
    %p35 = por %p33, %p34
    %p36 = scmp.ne.s32.totalorder %s25, %s28
    %p37 = scmp.eq.s32.totalorder %s20, 1
    %p38 = por %p36, %p37
    %p39 = scmp.ne.s32.totalorder %s28, %s29
    %p40 = scmp.eq.s32.totalorder %s20, 0
    %p41 = por %p39, %p40
    %p42 = scmp.ne.s32.totalorder %s28, %s29
    %p43 = scmp.eq.s32.totalorder %s21, 1
    %p44 = por %p42, %p43
    %p46 = scmp.ne.s32.totalorder %s29, %s45
    %p47 = scmp.eq.s32.totalorder %s21, 0
    %p48 = por %p46, %p47
    %s49 = ssub.s32 %s15, %s22
    %p50 = scmp.eq.s32.totalorder %s49, 0
    %s52 = sadd.s32 %s51, 1
    %s53 = scalar_select %p50, %s51, %s52
    %p56 = pneg %p50
    %p57 = scmp.eq.s32.totalorder %s15, 1
    %p58 = por %p56, %p57
    %p59 = scmp.ne.s32.totalorder %s51, %s54
    %p60 = scmp.eq.s32.totalorder %s15, 0
    %p61 = por %p59, %p60
    %p62 = scmp.ne.s32.totalorder %s51, %s54
    %p63 = scmp.eq.s32.totalorder %s20, 1
    %p64 = por %p62, %p63
    %p65 = scmp.ne.s32.totalorder %s54, %s55
    %p66 = scmp.eq.s32.totalorder %s20, 0
    %p67 = por %p65, %p66
    %p68 = scmp.ne.s32.totalorder %s54, %s55
    %p69 = scmp.eq.s32.totalorder %s21, 1
    %p70 = por %p68, %p69
    %p72 = scmp.ne.s32.totalorder %s55, %s71
    %p73 = scmp.eq.s32.totalorder %s21, 0
    %p74 = por %p72, %p73
    %s76 = sadd.s32 %s75, 1
    %p79 = scmp.eq.s32.totalorder %s15, 1
    %p80 = scmp.ne.s32.totalorder %s75, %s77
    %p81 = scmp.eq.s32.totalorder %s15, 0
    %p82 = por %p80, %p81
    %p83 = scmp.ne.s32.totalorder %s75, %s77
    %p84 = scmp.eq.s32.totalorder %s20, 1
    %p85 = por %p83, %p84
    %p86 = scmp.ne.s32.totalorder %s77, %s78
    %p87 = scmp.eq.s32.totalorder %s20, 0
    %p88 = por %p86, %p87
    %p89 = scmp.ne.s32.totalorder %s77, %s78
    %p90 = scmp.eq.s32.totalorder %s21, 1
    %p91 = por %p89, %p90
    %p93 = scmp.ne.s32.totalorder %s78, %s92
    %p94 = scmp.eq.s32.totalorder %s21, 0
    %p95 = por %p93, %p94
    %s97 = sadd.s32 %s96, 1
    %p100 = scmp.eq.s32.totalorder %s15, 1
    %p101 = scmp.ne.s32.totalorder %s96, %s98
    %p102 = scmp.eq.s32.totalorder %s15, 0
    %p103 = por %p101, %p102
    %p104 = scmp.ne.s32.totalorder %s96, %s98
    %p105 = scmp.eq.s32.totalorder %s20, 1
    %p106 = por %p104, %p105
    %p107 = scmp.ne.s32.totalorder %s98, %s99
    %p108 = scmp.eq.s32.totalorder %s20, 0
    %p109 = por %p107, %p108
    %p110 = scmp.ne.s32.totalorder %s98, %s99
    %p111 = scmp.eq.s32.totalorder %s21, 1
    %p112 = por %p110, %p111
    %p114 = scmp.ne.s32.totalorder %s99, %s113
    %p115 = scmp.eq.s32.totalorder %s21, 0
    %p116 = por %p114, %p115
    %s118 = sadd.s32 %s117, 1
    %p121 = scmp.eq.s32.totalorder %s15, 1
    %p122 = scmp.ne.s32.totalorder %s117, %s119
    %p123 = scmp.eq.s32.totalorder %s15, 0
    %p124 = por %p122, %p123
    %p125 = scmp.ne.s32.totalorder %s117, %s119
    %p126 = scmp.eq.s32.totalorder %s20, 1
    %p127 = por %p125, %p126
    %p128 = scmp.ne.s32.totalorder %s119, %s120
    %p129 = scmp.eq.s32.totalorder %s20, 0
    %p130 = por %p128, %p129
    %p131 = scmp.ne.s32.totalorder %s119, %s120
    %p132 = scmp.eq.s32.totalorder %s21, 1
    %p133 = por %p131, %p132
    %p135 = scmp.ne.s32.totalorder %s120, %s134
    %p136 = scmp.eq.s32.totalorder %s21, 0
    %p137 = por %p135, %p136
    %s139 = sadd.s32 %s138, 1
    %p142 = scmp.eq.s32.totalorder %s15, 1
    %p143 = scmp.ne.s32.totalorder %s138, %s140
    %p144 = scmp.eq.s32.totalorder %s15, 0
    %p145 = por %p143, %p144
    %p146 = scmp.ne.s32.totalorder %s138, %s140
    %p147 = scmp.eq.s32.totalorder %s20, 1
    %p148 = por %p146, %p147
    %p149 = scmp.ne.s32.totalorder %s140, %s141
    %p150 = scmp.eq.s32.totalorder %s20, 0
    %p151 = por %p149, %p150
    %p152 = scmp.ne.s32.totalorder %s140, %s141
    %p153 = scmp.eq.s32.totalorder %s21, 1
    %p154 = por %p152, %p153
    %p156 = scmp.ne.s32.totalorder %s141, %s155
    %p157 = scmp.eq.s32.totalorder %s21, 0
    %p158 = por %p156, %p157
    %s160 = sadd.s32 %s159, 1
    %p163 = scmp.eq.s32.totalorder %s15, 1
    %p164 = scmp.ne.s32.totalorder %s159, %s161
    %p165 = scmp.eq.s32.totalorder %s15, 0
    %p166 = por %p164, %p165
    %p167 = scmp.ne.s32.totalorder %s159, %s161
    %p168 = scmp.eq.s32.totalorder %s20, 1
    %p169 = por %p167, %p168
    %p170 = scmp.ne.s32.totalorder %s161, %s162
    %p171 = scmp.eq.s32.totalorder %s20, 0
    %p172 = por %p170, %p171
    %p173 = scmp.ne.s32.totalorder %s161, %s162
    %p174 = scmp.eq.s32.totalorder %s21, 1
    %p175 = por %p173, %p174
    %p177 = scmp.ne.s32.totalorder %s162, %s176
    %p178 = scmp.eq.s32.totalorder %s21, 0
    %p179 = por %p177, %p178
    %s181 = sadd.s32 %s180, 1
    %p184 = scmp.eq.s32.totalorder %s15, 1
    %p185 = scmp.ne.s32.totalorder %s180, %s182
    %p186 = scmp.eq.s32.totalorder %s15, 0
    %p187 = por %p185, %p186
    %p188 = scmp.ne.s32.totalorder %s180, %s182
    %p189 = scmp.eq.s32.totalorder %s20, 1
    %p190 = por %p188, %p189
    %p191 = scmp.ne.s32.totalorder %s182, %s183
    %p192 = scmp.eq.s32.totalorder %s20, 0
    %p193 = por %p191, %p192
    %p194 = scmp.ne.s32.totalorder %s182, %s183
    %p195 = scmp.eq.s32.totalorder %s21, 1
    %p196 = por %p194, %p195
    %p198 = scmp.ne.s32.totalorder %s183, %s197
    %p199 = scmp.eq.s32.totalorder %s21, 0
    %p200 = por %p198, %p199
    %s202 = sadd.s32 %s201, 1
    %p205 = scmp.eq.s32.totalorder %s15, 1
    %p206 = scmp.ne.s32.totalorder %s201, %s203
    %p207 = scmp.eq.s32.totalorder %s15, 0
    %p208 = por %p206, %p207
    %p209 = scmp.ne.s32.totalorder %s201, %s203
    %p210 = scmp.eq.s32.totalorder %s20, 1
    %p211 = por %p209, %p210
    %p212 = scmp.ne.s32.totalorder %s203, %s204
    %p213 = scmp.eq.s32.totalorder %s20, 0
    %p214 = por %p212, %p213
    %p215 = scmp.ne.s32.totalorder %s203, %s204
    %p216 = scmp.eq.s32.totalorder %s21, 1
    %p217 = por %p215, %p216
    %p219 = scmp.ne.s32.totalorder %s204, %s218
    %p220 = scmp.eq.s32.totalorder %s21, 0
    %p221 = por %p219, %p220
    %s222 = ssub.s32 %s15, %s22
    %p223 = scmp.eq.s32.totalorder %s222, 0
    %s225 = sadd.s32 %s224, 1
    %s226 = scalar_select %p223, %s224, %s225
    %p229 = pneg %p223
    %p230 = scmp.eq.s32.totalorder %s15, 1
    %p231 = por %p229, %p230
    %p232 = scmp.ne.s32.totalorder %s224, %s227
    %p233 = scmp.eq.s32.totalorder %s15, 0
    %p234 = por %p232, %p233
    %p235 = scmp.ne.s32.totalorder %s224, %s227
    %p236 = scmp.eq.s32.totalorder %s20, 1
    %p237 = por %p235, %p236
    %p238 = scmp.ne.s32.totalorder %s227, %s228
    %p239 = scmp.eq.s32.totalorder %s20, 0
    %p240 = por %p238, %p239
    %p241 = scmp.ne.s32.totalorder %s227, %s228
    %p242 = scmp.eq.s32.totalorder %s21, 1
    %p243 = por %p241, %p242
    %p245 = scmp.ne.s32.totalorder %s228, %s244
    %p246 = scmp.eq.s32.totalorder %s21, 0
    %p247 = por %p245, %p246
    %p248 = scmp.le.s32.totalorder 1, %s15
    %p249 = scmp.lt.s32.totalorder %s15, 3
    %p250 = pnand %p248, %p249
    %p251 = pneg %p250
    // Predicated region
    $region9: #{upsample_forward.1} parent=5 // pred_check
      _
    $region10: #{upsample_forward.1} parent=5 // pred_check_branch
      %253 = sbr.rel (%p250) target = $region12
    $region11: #{upsample_forward.1} parent=5 // pred_region
      %s254 = ssub.s32 %s15, 1
      // Predicated region
      $region13: #{upsample_forward.1} parent=11 // pred_check
        %p255 = pneg %p88
      $region14: #{upsample_forward.1} parent=11 // pred_check_branch
        %257 = sbr.rel (%p255) target = $region16
      $region15: #{upsample_forward.1} parent=11 // pred_region
        _
      $region16: #{upsample_forward.1} parent=11 // pred_fallthru
        _
      // Predicated region
      $region17: #{upsample_forward.1} parent=11 // pred_check
        %p258 = pneg %p109
      $region18: #{upsample_forward.1} parent=11 // pred_check_branch
        %260 = sbr.rel (%p258) target = $region20
      $region19: #{upsample_forward.1} parent=11 // pred_region
        _
      $region20: #{upsample_forward.1} parent=11 // pred_fallthru
        _
      // Predicated region
      $region21: #{upsample_forward.1} parent=11 // pred_check
        %p261 = pneg %p130
      $region22: #{upsample_forward.1} parent=11 // pred_check_branch
        %263 = sbr.rel (%p261) target = $region24
      $region23: #{upsample_forward.1} parent=11 // pred_region
        _
      $region24: #{upsample_forward.1} parent=11 // pred_fallthru
        _
      // Predicated region
      $region25: #{upsample_forward.1} parent=11 // pred_check
        %p264 = pneg %p151
      $region26: #{upsample_forward.1} parent=11 // pred_check_branch
        %266 = sbr.rel (%p264) target = $region28
      $region27: #{upsample_forward.1} parent=11 // pred_region
        _
      $region28: #{upsample_forward.1} parent=11 // pred_fallthru
        _
      // Predicated region
      $region29: #{upsample_forward.1} parent=11 // pred_check
        %p267 = pneg %p172
      $region30: #{upsample_forward.1} parent=11 // pred_check_branch
        %269 = sbr.rel (%p267) target = $region32
      $region31: #{upsample_forward.1} parent=11 // pred_region
        _
      $region32: #{upsample_forward.1} parent=11 // pred_fallthru
        _
      // Predicated region
      $region33: #{upsample_forward.1} parent=11 // pred_check
        %p270 = pneg %p193
      $region34: #{upsample_forward.1} parent=11 // pred_check_branch
        %272 = sbr.rel (%p270) target = $region36
      $region35: #{upsample_forward.1} parent=11 // pred_region
        _
      $region36: #{upsample_forward.1} parent=11 // pred_fallthru
        _
      // Predicated region
      $region37: #{upsample_forward.1} parent=11 // pred_check
        %p273 = pneg %p214
      $region38: #{upsample_forward.1} parent=11 // pred_check_branch
        %275 = sbr.rel (%p273) target = $region40
      $region39: #{upsample_forward.1} parent=11 // pred_region
        _
      $region40: #{upsample_forward.1} parent=11 // pred_fallthru
        _
    $region12: #{upsample_forward.1} parent=5 // pred_fallthru
      _
    %p276 = scmp.lt.s32.totalorder %s15, 2
    // Predicated region
    $region41: #{upsample_forward.1} parent=5 // pred_check
      %p277 = pneg %p276
    $region42: #{upsample_forward.1} parent=5 // pred_check_branch
      %279 = sbr.rel (%p277) target = $region44
    $region43: #{upsample_forward.1} parent=5 // pred_region
      // Predicated region
      $region45: #{upsample_forward.1} parent=43 // pred_check
        %p280 = pneg %p35
      $region46: #{upsample_forward.1} parent=43 // pred_check_branch
        %282 = sbr.rel (%p280) target = $region48
      $region47: #{upsample_forward.1} parent=43 // pred_region
        %p283 = scmp.lt.s32.totalorder %s15, 1
        %s284 = scalar_select %p283, %s15, 1
        %s285 = smul.addr %s284, 32
        %s286 = smul.addr %s285, 4
        %s287 = scalar_lea.vmem %s0, %s286
      $region48: #{upsample_forward.1} parent=43 // pred_fallthru
        _
      // Predicated region
      $region49: #{upsample_forward.1} parent=43 // pred_check
        %p288 = pneg %p61
      $region50: #{upsample_forward.1} parent=43 // pred_check_branch
        %290 = sbr.rel (%p288) target = $region52
      $region51: #{upsample_forward.1} parent=43 // pred_region
        %p291 = scmp.lt.s32.totalorder %s15, 1
        %s292 = scalar_select %p291, %s15, 1
        %s293 = smul.addr %s292, 32
        %s294 = smul.addr %s293, 4
        %s295 = scalar_lea.vmem %s1, %s294
      $region52: #{upsample_forward.1} parent=43 // pred_fallthru
        _
    $region44: #{upsample_forward.1} parent=5 // pred_fallthru
      _
    %p296 = scmp.le.s32.totalorder 1, %s15
    %p297 = scmp.lt.s32.totalorder %s15, 3
    %p298 = pnand %p296, %p297
    %p299 = pneg %p298
    // Predicated region
    $region53: #{upsample_forward.1} parent=5 // pred_check
      _
    $region54: #{upsample_forward.1} parent=5 // pred_check_branch
      %301 = sbr.rel (%p298) target = $region56
    $region55: #{upsample_forward.1} parent=5 // pred_region
      %s302 = ssub.s32 %s15, 1
      %p303 = scmp.lt.s32.totalorder %s20, 1
      %s304 = scalar_select %p303, %s20, 1
      %s305 = smul.addr %s304, 32
      %s306 = smul.addr %s305, 4
      %s307 = scalar_lea.vmem %s0, %s306
      %p308 = pneg %p41
      %p309 = pneg %p38
      %p310 = scmp.lt.s32.totalorder %s20, 1
      %s311 = scalar_select %p310, %s20, 1
      %s312 = smul.addr %s311, 32
      %s313 = smul.addr %s312, 4
      %s314 = scalar_lea.vmem %s1, %s313
      %p315 = pneg %p67
      %p316 = pneg %p64
      %p317 = pneg %p88
      %p318 = pneg %p85
      %p319 = pneg %p109
      %p320 = pneg %p106
      %p321 = pneg %p130
      %p322 = pneg %p127
      %p323 = pneg %p151
      %p324 = pneg %p148
      %p325 = pneg %p172
      %p326 = pneg %p169
      %p327 = pneg %p193
      %p328 = pneg %p190
      %p329 = pneg %p214
      %p330 = pneg %p211
      %p331 = pneg %p240
      %p332 = pneg %p237
      %p333 = scmp.lt.s32.totalorder %s20, 1
      %s334 = scalar_select %p333, %s20, 1
      %s335 = smul.addr %s334, 48
      %s336 = smul.addr %s335, 8
      %s337 = scalar_lea.vmem %s9, %s336
      %p338 = scmp.lt.s32.totalorder %s20, 1
      %s339 = scalar_select %p338, %s20, 1
      %s340 = smul.addr %s339, 32
      %s341 = smul.addr %s340, 4
      %s342 = scalar_lea.vmem %s0, %s341
      %p343 = scmp.lt.s32.totalorder %s20, 1
      %s344 = scalar_select %p343, %s20, 1
      %s345 = smul.addr %s344, 32
      %s346 = smul.addr %s345, 4
      %s347 = scalar_lea.vmem %s1, %s346
      %p348 = scmp.lt.s32.totalorder %s20, 1
      %s349 = scalar_select %p348, %s20, 1
      %s350 = smul.addr %s349, 48
      %s351 = smul.addr %s350, 8
      %s352 = scalar_lea.vmem %s9, %s351
      %vm354 = vcmask 31744
      %355 = vst.msk [vmem:[#allocation2] sm:$0xff] %vm354, 0.0
      %356 = vst.msk [vmem:[#allocation2 + $0x8] sm:$0xff] %vm354, 0.0
      %357 = vst.msk [vmem:[#allocation2 + $0x10] sm:$0xff] %vm354, 0.0
      %358 = vst.msk [vmem:[#allocation2 + $0x18] sm:$0xff] %vm354, 0.0
      %359 = vst.msk [vmem:[#allocation2 + $0x20] sm:$0xff] %vm354, 0.0
      %360 = vst.msk [vmem:[#allocation2 + $0x28] sm:$0xff] %vm354, 0.0
      %361 = vst.msk [vmem:[#allocation2 + $0x30] sm:$0xff] %vm354, 0.0
      %362 = vst.msk [vmem:[#allocation2 + $0x38] sm:$0xff] %vm354, 0.0
      %363 = vst.msk [vmem:[#allocation2 + $0x40] sm:$0xff] %vm354, 0.0
      %364 = vst.msk [vmem:[#allocation2 + $0x48] sm:$0xff] %vm354, 0.0
      %365 = vst.msk [vmem:[#allocation2 + $0x50] sm:$0xff] %vm354, 0.0
      %366 = vst.msk [vmem:[#allocation2 + $0x58] sm:$0xff] %vm354, 0.0
      %367 = vst.msk [vmem:[#allocation2 + $0x60] sm:$0xff] %vm354, 0.0
      %368 = vst.msk [vmem:[#allocation2 + $0x68] sm:$0xff] %vm354, 0.0
      %369 = vst.msk [vmem:[#allocation2 + $0x70] sm:$0xff] %vm354, 0.0
      %370 = vst.msk [vmem:[#allocation2 + $0x78] sm:$0xff] %vm354, 0.0
      %371 = vst.msk [vmem:[#allocation2 + $0x80] sm:$0xff] %vm354, 0.0
      %372 = vst.msk [vmem:[#allocation2 + $0x88] sm:$0xff] %vm354, 0.0
      %373 = vst.msk [vmem:[#allocation2 + $0x90] sm:$0xff] %vm354, 0.0
      %374 = vst.msk [vmem:[#allocation2 + $0x98] sm:$0xff] %vm354, 0.0
      %375 = vst.msk [vmem:[#allocation2 + $0xa0] sm:$0xff] %vm354, 0.0
      %376 = vst.msk [vmem:[#allocation2 + $0xa8] sm:$0xff] %vm354, 0.0
      %377 = vst.msk [vmem:[#allocation2 + $0xb0] sm:$0xff] %vm354, 0.0
      %378 = vst.msk [vmem:[#allocation2 + $0xb8] sm:$0xff] %vm354, 0.0
      %379 = vst.msk [vmem:[#allocation2 + $0xc0] sm:$0xff] %vm354, 0.0
      %380 = vst.msk [vmem:[#allocation2 + $0xc8] sm:$0xff] %vm354, 0.0
      %381 = vst.msk [vmem:[#allocation2 + $0xd0] sm:$0xff] %vm354, 0.0
      %382 = vst.msk [vmem:[#allocation2 + $0xd8] sm:$0xff] %vm354, 0.0
      %383 = vst.msk [vmem:[#allocation2 + $0xe0] sm:$0xff] %vm354, 0.0
      %384 = vst.msk [vmem:[#allocation2 + $0xe8] sm:$0xff] %vm354, 0.0
      %385 = vst.msk [vmem:[#allocation2 + $0xf0] sm:$0xff] %vm354, 0.0
      %386 = vst.msk [vmem:[#allocation2 + $0xf8] sm:$0xff] %vm354, 0.0
      %387 = vst.msk [vmem:[#allocation2 + $0x100] sm:$0xff] %vm354, 0.0
      %388 = vst.msk [vmem:[#allocation2 + $0x108] sm:$0xff] %vm354, 0.0
      %389 = vst.msk [vmem:[#allocation2 + $0x110] sm:$0xff] %vm354, 0.0
      %390 = vst.msk [vmem:[#allocation2 + $0x118] sm:$0xff] %vm354, 0.0
      %391 = vst.msk [vmem:[#allocation2 + $0x120] sm:$0xff] %vm354, 0.0
      %392 = vst.msk [vmem:[#allocation2 + $0x128] sm:$0xff] %vm354, 0.0
      %393 = vst.msk [vmem:[#allocation2 + $0x130] sm:$0xff] %vm354, 0.0
      %394 = vst.msk [vmem:[#allocation2 + $0x138] sm:$0xff] %vm354, 0.0
      %395 = vst.msk [vmem:[#allocation2 + $0x140] sm:$0xff] %vm354, 0.0
      %396 = vst.msk [vmem:[#allocation2 + $0x148] sm:$0xff] %vm354, 0.0
      %397 = vst.msk [vmem:[#allocation2 + $0x150] sm:$0xff] %vm354, 0.0
      %398 = vst.msk [vmem:[#allocation2 + $0x158] sm:$0xff] %vm354, 0.0
      %399 = vst.msk [vmem:[#allocation2 + $0x160] sm:$0xff] %vm354, 0.0
      %400 = vst.msk [vmem:[#allocation2 + $0x168] sm:$0xff] %vm354, 0.0
      %401 = vst.msk [vmem:[#allocation2 + $0x170] sm:$0xff] %vm354, 0.0
      %402 = vst.msk [vmem:[#allocation2 + $0x178] sm:$0xff] %vm354, 0.0
      %403 = vst.msk [vmem:[#allocation2 + $0x180] sm:$0xff] %vm354, 0.0
      %404 = vst.msk [vmem:[#allocation2 + $0x188] sm:$0xff] %vm354, 0.0
      %405 = vst.msk [vmem:[#allocation2 + $0x190] sm:$0xff] %vm354, 0.0
      %406 = vst.msk [vmem:[#allocation2 + $0x198] sm:$0xff] %vm354, 0.0
      %407 = vst.msk [vmem:[#allocation2 + $0x1a0] sm:$0xff] %vm354, 0.0
      %408 = vst.msk [vmem:[#allocation2 + $0x1a8] sm:$0xff] %vm354, 0.0
      %409 = vst.msk [vmem:[#allocation2 + $0x1b0] sm:$0xff] %vm354, 0.0
      %410 = vst.msk [vmem:[#allocation2 + $0x1b8] sm:$0xff] %vm354, 0.0
      %411 = vst.msk [vmem:[#allocation2 + $0x1c0] sm:$0xff] %vm354, 0.0
      %412 = vst.msk [vmem:[#allocation3] sm:$0xff] %vm354, 0.0
      %413 = vst.msk [vmem:[#allocation3 + $0x8] sm:$0xff] %vm354, 0.0
      %414 = vst.msk [vmem:[#allocation3 + $0x10] sm:$0xff] %vm354, 0.0
      %415 = vst.msk [vmem:[#allocation3 + $0x18] sm:$0xff] %vm354, 0.0
      %416 = vst.msk [vmem:[#allocation3 + $0x20] sm:$0xff] %vm354, 0.0
      %417 = vst.msk [vmem:[#allocation3 + $0x28] sm:$0xff] %vm354, 0.0
      %418 = vst.msk [vmem:[#allocation3 + $0x30] sm:$0xff] %vm354, 0.0
      %419 = vst.msk [vmem:[#allocation3 + $0x38] sm:$0xff] %vm354, 0.0
      %420 = vst.msk [vmem:[#allocation3 + $0x40] sm:$0xff] %vm354, 0.0
      %421 = vst.msk [vmem:[#allocation3 + $0x48] sm:$0xff] %vm354, 0.0
      %422 = vst.msk [vmem:[#allocation3 + $0x50] sm:$0xff] %vm354, 0.0
      %423 = vst.msk [vmem:[#allocation3 + $0x58] sm:$0xff] %vm354, 0.0
      %424 = vst.msk [vmem:[#allocation3 + $0x60] sm:$0xff] %vm354, 0.0
      %425 = vst.msk [vmem:[#allocation3 + $0x68] sm:$0xff] %vm354, 0.0
      %426 = vst.msk [vmem:[#allocation3 + $0x70] sm:$0xff] %vm354, 0.0
      %427 = vst.msk [vmem:[#allocation3 + $0x78] sm:$0xff] %vm354, 0.0
      %428 = vst.msk [vmem:[#allocation3 + $0x80] sm:$0xff] %vm354, 0.0
      %429 = vst.msk [vmem:[#allocation3 + $0x88] sm:$0xff] %vm354, 0.0
      %430 = vst.msk [vmem:[#allocation3 + $0x90] sm:$0xff] %vm354, 0.0
      %431 = vst.msk [vmem:[#allocation3 + $0x98] sm:$0xff] %vm354, 0.0
      %432 = vst.msk [vmem:[#allocation3 + $0xa0] sm:$0xff] %vm354, 0.0
      %433 = vst.msk [vmem:[#allocation3 + $0xa8] sm:$0xff] %vm354, 0.0
      %434 = vst.msk [vmem:[#allocation3 + $0xb0] sm:$0xff] %vm354, 0.0
      %435 = vst.msk [vmem:[#allocation3 + $0xb8] sm:$0xff] %vm354, 0.0
      %436 = vst.msk [vmem:[#allocation3 + $0xc0] sm:$0xff] %vm354, 0.0
      %437 = vst.msk [vmem:[#allocation3 + $0xc8] sm:$0xff] %vm354, 0.0
      %438 = vst.msk [vmem:[#allocation3 + $0xd0] sm:$0xff] %vm354, 0.0
      %439 = vst.msk [vmem:[#allocation3 + $0xd8] sm:$0xff] %vm354, 0.0
      %440 = vst.msk [vmem:[#allocation3 + $0xe0] sm:$0xff] %vm354, 0.0
      %441 = vst.msk [vmem:[#allocation3 + $0xe8] sm:$0xff] %vm354, 0.0
      %442 = vst.msk [vmem:[#allocation3 + $0xf0] sm:$0xff] %vm354, 0.0
      %443 = vst.msk [vmem:[#allocation3 + $0xf8] sm:$0xff] %vm354, 0.0
      %444 = vst.msk [vmem:[#allocation3 + $0x100] sm:$0xff] %vm354, 0.0
      %445 = vst.msk [vmem:[#allocation3 + $0x108] sm:$0xff] %vm354, 0.0
      %446 = vst.msk [vmem:[#allocation3 + $0x110] sm:$0xff] %vm354, 0.0
      %447 = vst.msk [vmem:[#allocation3 + $0x118] sm:$0xff] %vm354, 0.0
      %448 = vst.msk [vmem:[#allocation3 + $0x120] sm:$0xff] %vm354, 0.0
      %449 = vst.msk [vmem:[#allocation3 + $0x128] sm:$0xff] %vm354, 0.0
      %450 = vst.msk [vmem:[#allocation3 + $0x130] sm:$0xff] %vm354, 0.0
      %451 = vst.msk [vmem:[#allocation3 + $0x138] sm:$0xff] %vm354, 0.0
      %452 = vst.msk [vmem:[#allocation3 + $0x140] sm:$0xff] %vm354, 0.0
      %453 = vst.msk [vmem:[#allocation3 + $0x148] sm:$0xff] %vm354, 0.0
      %454 = vst.msk [vmem:[#allocation3 + $0x150] sm:$0xff] %vm354, 0.0
      %455 = vst.msk [vmem:[#allocation3 + $0x158] sm:$0xff] %vm354, 0.0
      %456 = vst.msk [vmem:[#allocation3 + $0x160] sm:$0xff] %vm354, 0.0
      %457 = vst.msk [vmem:[#allocation3 + $0x168] sm:$0xff] %vm354, 0.0
      %458 = vst.msk [vmem:[#allocation3 + $0x170] sm:$0xff] %vm354, 0.0
      %459 = vst.msk [vmem:[#allocation3 + $0x178] sm:$0xff] %vm354, 0.0
      %460 = vst.msk [vmem:[#allocation3 + $0x180] sm:$0xff] %vm354, 0.0
      %461 = vst.msk [vmem:[#allocation3 + $0x188] sm:$0xff] %vm354, 0.0
      %462 = vst.msk [vmem:[#allocation3 + $0x190] sm:$0xff] %vm354, 0.0
      %463 = vst.msk [vmem:[#allocation3 + $0x198] sm:$0xff] %vm354, 0.0
      %464 = vst.msk [vmem:[#allocation3 + $0x1a0] sm:$0xff] %vm354, 0.0
      %465 = vst.msk [vmem:[#allocation3 + $0x1a8] sm:$0xff] %vm354, 0.0
      %466 = vst.msk [vmem:[#allocation3 + $0x1b0] sm:$0xff] %vm354, 0.0
      %467 = vst.msk [vmem:[#allocation3 + $0x1b8] sm:$0xff] %vm354, 0.0
      %468 = vst.msk [vmem:[#allocation3 + $0x1c0] sm:$0xff] %vm354, 0.0
      %v469 = vld [vmem:[%s342] sm:$0xf]
      %v470 = vld [vmem:[%s342 + $0x4] sm:$0xf]
      %v471 = vld [vmem:[%s342 + $0x8] sm:$0xf]
      %v472 = vld [vmem:[%s342 + $0xc] sm:$0xf]
      %v473 = vld [vmem:[%s342 + $0x10] sm:$0xf]
      %v474 = vld [vmem:[%s342 + $0x14] sm:$0xf]
      %v475 = vld [vmem:[%s342 + $0x18] sm:$0xf]
      %v476 = vld [vmem:[%s342 + $0x1c] sm:$0xf]
      %v477 = vld [vmem:[%s342 + $0x20] sm:$0xf]
      %v478 = vld [vmem:[%s342 + $0x24] sm:$0xf]
      %v479 = vld [vmem:[%s342 + $0x28] sm:$0xf]
      %v480 = vld [vmem:[%s342 + $0x2c] sm:$0xf]
      %v481 = vld [vmem:[%s342 + $0x30] sm:$0xf]
      %v482 = vld [vmem:[%s342 + $0x34] sm:$0xf]
      %v483 = vld [vmem:[%s342 + $0x38] sm:$0xf]
      %v484 = vld [vmem:[%s342 + $0x3c] sm:$0xf]
      %v485 = vld [vmem:[%s342 + $0x40] sm:$0xf]
      %v486 = vld [vmem:[%s342 + $0x44] sm:$0xf]
      %v487 = vld [vmem:[%s342 + $0x48] sm:$0xf]
      %v488 = vld [vmem:[%s342 + $0x4c] sm:$0xf]
      %v489 = vld [vmem:[%s342 + $0x50] sm:$0xf]
      %v490 = vld [vmem:[%s342 + $0x54] sm:$0xf]
      %v491 = vld [vmem:[%s342 + $0x58] sm:$0xf]
      %v492 = vld [vmem:[%s342 + $0x5c] sm:$0xf]
      %v493 = vld [vmem:[%s342 + $0x60] sm:$0xf]
      %v494 = vld [vmem:[%s342 + $0x64] sm:$0xf]
      %v495 = vld [vmem:[%s342 + $0x68] sm:$0xf]
      %v496 = vld [vmem:[%s342 + $0x6c] sm:$0xf]
      %v497 = vld [vmem:[%s342 + $0x70] sm:$0xf]
      %v498 = vld [vmem:[%s342 + $0x74] sm:$0xf]
      %v499 = vld [vmem:[%s342 + $0x78] sm:$0xf]
      %v500 = vld [vmem:[%s342 + $0x7c] sm:$0xf]
      %v501 = vld [vmem:[%s2] sm:$0x1]
      %v502 = vld [vmem:[%s347] sm:$0xf]
      %v503 = vld [vmem:[%s347 + $0x4] sm:$0xf]
      %v504 = vld [vmem:[%s347 + $0x8] sm:$0xf]
      %v505 = vld [vmem:[%s347 + $0xc] sm:$0xf]
      %v506 = vld [vmem:[%s347 + $0x10] sm:$0xf]
      %v507 = vld [vmem:[%s347 + $0x14] sm:$0xf]
      %v508 = vld [vmem:[%s347 + $0x18] sm:$0xf]
      %v509 = vld [vmem:[%s347 + $0x1c] sm:$0xf]
      %v510 = vld [vmem:[%s347 + $0x20] sm:$0xf]
      %v511 = vld [vmem:[%s347 + $0x24] sm:$0xf]
      %v512 = vld [vmem:[%s347 + $0x28] sm:$0xf]
      %v513 = vld [vmem:[%s347 + $0x2c] sm:$0xf]
      %v514 = vld [vmem:[%s347 + $0x30] sm:$0xf]
      %v515 = vld [vmem:[%s347 + $0x34] sm:$0xf]
      %v516 = vld [vmem:[%s347 + $0x38] sm:$0xf]
      %v517 = vld [vmem:[%s347 + $0x3c] sm:$0xf]
      %v518 = vld [vmem:[%s347 + $0x40] sm:$0xf]
      %v519 = vld [vmem:[%s347 + $0x44] sm:$0xf]
      %v520 = vld [vmem:[%s347 + $0x48] sm:$0xf]
      %v521 = vld [vmem:[%s347 + $0x4c] sm:$0xf]
      %v522 = vld [vmem:[%s347 + $0x50] sm:$0xf]
      %v523 = vld [vmem:[%s347 + $0x54] sm:$0xf]
      %v524 = vld [vmem:[%s347 + $0x58] sm:$0xf]
      %v525 = vld [vmem:[%s347 + $0x5c] sm:$0xf]
      %v526 = vld [vmem:[%s347 + $0x60] sm:$0xf]
      %v527 = vld [vmem:[%s347 + $0x64] sm:$0xf]
      %v528 = vld [vmem:[%s347 + $0x68] sm:$0xf]
      %v529 = vld [vmem:[%s347 + $0x6c] sm:$0xf]
      %v530 = vld [vmem:[%s347 + $0x70] sm:$0xf]
      %v531 = vld [vmem:[%s347 + $0x74] sm:$0xf]
      %v532 = vld [vmem:[%s347 + $0x78] sm:$0xf]
      %v533 = vld [vmem:[%s347 + $0x7c] sm:$0xf]
      %v534 = vld [vmem:[%s3] sm:$0x1]
      %v567 = vunpack.c.l.b16 %v502
      %v568 = vunpack.c.l.b16 %v503
      %v569 = vunpack.c.l.b16 %v504
      %v570 = vunpack.c.l.b16 %v505
      %v571 = vunpack.c.l.b16 %v506
      %v572 = vunpack.c.l.b16 %v507
      %v573 = vunpack.c.l.b16 %v508
      %v574 = vunpack.c.l.b16 %v509
      %v575 = vunpack.c.l.b16 %v510
      %v576 = vunpack.c.l.b16 %v511
      %v577 = vunpack.c.l.b16 %v512
      %v578 = vunpack.c.l.b16 %v513
      %v579 = vunpack.c.l.b16 %v514
      %v580 = vunpack.c.l.b16 %v515
      %v581 = vunpack.c.l.b16 %v516
      %v582 = vunpack.c.l.b16 %v517
      %v583 = vunpack.c.l.b16 %v518
      %v584 = vunpack.c.l.b16 %v519
      %v585 = vunpack.c.l.b16 %v520
      %v586 = vunpack.c.l.b16 %v521
      %v587 = vunpack.c.l.b16 %v522
      %v588 = vunpack.c.l.b16 %v523
      %v589 = vunpack.c.l.b16 %v524
      %v590 = vunpack.c.l.b16 %v525
      %v591 = vunpack.c.l.b16 %v526
      %v592 = vunpack.c.l.b16 %v527
      %v593 = vunpack.c.l.b16 %v528
      %v594 = vunpack.c.l.b16 %v529
      %v595 = vunpack.c.l.b16 %v530
      %v596 = vunpack.c.l.b16 %v531
      %v597 = vunpack.c.l.b16 %v532
      %v598 = vunpack.c.l.b16 %v533
      %v599 = vpack.c.b16 %v568, %v567
      %v600 = vpack.c.b16 %v570, %v569
      %v601 = vpack.c.b16 %v572, %v571
      %v602 = vpack.c.b16 %v574, %v573
      %v603 = vpack.c.b16 %v576, %v575
      %v604 = vpack.c.b16 %v578, %v577
      %v605 = vpack.c.b16 %v580, %v579
      %v606 = vpack.c.b16 %v582, %v581
      %v607 = vpack.c.b16 %v584, %v583
      %v608 = vpack.c.b16 %v586, %v585
      %v609 = vpack.c.b16 %v588, %v587
      %v610 = vpack.c.b16 %v590, %v589
      %v611 = vpack.c.b16 %v592, %v591
      %v612 = vpack.c.b16 %v594, %v593
      %v613 = vpack.c.b16 %v596, %v595
      %v614 = vpack.c.b16 %v598, %v597
      %vm615 = vcmask 15360
      %v617 = vsel %vm615, %v599, 0
      %v620 = vsel %vm615, %v600, 0
      %v623 = vsel %vm615, %v601, 0
      %v626 = vsel %vm615, %v602, 0
      %v629 = vsel %vm615, %v603, 0
      %v632 = vsel %vm615, %v604, 0
      %v635 = vsel %vm615, %v605, 0
      %v638 = vsel %vm615, %v606, 0
      %v641 = vsel %vm615, %v607, 0
      %v644 = vsel %vm615, %v608, 0
      %v647 = vsel %vm615, %v609, 0
      %v650 = vsel %vm615, %v610, 0
      %v653 = vsel %vm615, %v611, 0
      %v656 = vsel %vm615, %v612, 0
      %v659 = vsel %vm615, %v613, 0
      %v662 = vsel %vm615, %v614, 0
      %vm664 = vcmask 1040384
      %v666 = vsel %vm664, %v534, 0
      %668 = vmatpush.bf16.msra.mxu0 0
      %669 = vmatpush.bf16.msra.mxu0 0
      %670 = vmatpush.bf16.msra.mxu0 0
      %671 = vmatpush.bf16.msra.mxu0 0
      %672 = vmatpush.bf16.msra.mxu0 0
      %673 = vmatpush.bf16.msra.mxu0 0
      %674 = vmatpush.bf16.msra.mxu0 0
      %675 = vmatpush.bf16.msra.mxu0 %v666
      %676 = vmatmul.bf16.gmra.mxu0 %v617
      %v677 = vpop.f32.mrf.mxu0
      %v678 = vadd.f32 0.0, %v677
      %v679 = vpop.f32.mrf.mxu0
      %v680 = vadd.f32 0.0, %v679
      %681 = vmatmul.bf16.gmra.mxu0 %v620
      %v682 = vpop.f32.mrf.mxu0
      %v683 = vadd.f32 0.0, %v682
      %v684 = vpop.f32.mrf.mxu0
      %v685 = vadd.f32 0.0, %v684
      %686 = vmatmul.bf16.gmra.mxu0 %v623
      %v687 = vpop.f32.mrf.mxu0
      %v688 = vadd.f32 0.0, %v687
      %v689 = vpop.f32.mrf.mxu0
      %v690 = vadd.f32 0.0, %v689
      %691 = vmatmul.bf16.gmra.mxu0 %v626
      %v692 = vpop.f32.mrf.mxu0
      %v693 = vadd.f32 0.0, %v692
      %v694 = vpop.f32.mrf.mxu0
      %v695 = vadd.f32 0.0, %v694
      %696 = vmatmul.bf16.gmra.mxu0 %v629
      %v697 = vpop.f32.mrf.mxu0
      %v698 = vadd.f32 0.0, %v697
      %v699 = vpop.f32.mrf.mxu0
      %v700 = vadd.f32 0.0, %v699
      %701 = vmatmul.bf16.gmra.mxu0 %v632
      %v702 = vpop.f32.mrf.mxu0
      %v703 = vadd.f32 0.0, %v702
      %v704 = vpop.f32.mrf.mxu0
      %v705 = vadd.f32 0.0, %v704
      %706 = vmatmul.bf16.gmra.mxu0 %v635
      %v707 = vpop.f32.mrf.mxu0
      %v708 = vadd.f32 0.0, %v707
      %v709 = vpop.f32.mrf.mxu0
      %v710 = vadd.f32 0.0, %v709
      %711 = vmatmul.bf16.gmra.mxu0 %v638
      %v712 = vpop.f32.mrf.mxu0
      %v713 = vadd.f32 0.0, %v712
      %v714 = vpop.f32.mrf.mxu0
      %v715 = vadd.f32 0.0, %v714
      %716 = vmatmul.bf16.gmra.mxu0 %v641
      %v717 = vpop.f32.mrf.mxu0
      %v718 = vadd.f32 0.0, %v717
      %v719 = vpop.f32.mrf.mxu0
      %v720 = vadd.f32 0.0, %v719
      %721 = vmatmul.bf16.gmra.mxu0 %v644
      %v722 = vpop.f32.mrf.mxu0
      %v723 = vadd.f32 0.0, %v722
      %v724 = vpop.f32.mrf.mxu0
      %v725 = vadd.f32 0.0, %v724
      %726 = vmatmul.bf16.gmra.mxu0 %v647
      %v727 = vpop.f32.mrf.mxu0
      %v728 = vadd.f32 0.0, %v727
      %v729 = vpop.f32.mrf.mxu0
      %v730 = vadd.f32 0.0, %v729
      %731 = vmatmul.bf16.gmra.mxu0 %v650
      %v732 = vpop.f32.mrf.mxu0
      %v733 = vadd.f32 0.0, %v732
      %v734 = vpop.f32.mrf.mxu0
      %v735 = vadd.f32 0.0, %v734
      %736 = vmatmul.bf16.gmra.mxu0 %v653
      %v737 = vpop.f32.mrf.mxu0
      %v738 = vadd.f32 0.0, %v737
      %v739 = vpop.f32.mrf.mxu0
      %v740 = vadd.f32 0.0, %v739
      %741 = vmatmul.bf16.gmra.mxu0 %v656
      %v742 = vpop.f32.mrf.mxu0
      %v743 = vadd.f32 0.0, %v742
      %v744 = vpop.f32.mrf.mxu0
      %v745 = vadd.f32 0.0, %v744
      %746 = vmatmul.bf16.gmra.mxu0 %v659
      %v747 = vpop.f32.mrf.mxu0
      %v748 = vadd.f32 0.0, %v747
      %v749 = vpop.f32.mrf.mxu0
      %v750 = vadd.f32 0.0, %v749
      %751 = vmatmul.bf16.gmra.mxu0 %v662
      %v752 = vpop.f32.mrf.mxu0
      %v753 = vadd.f32 0.0, %v752
      %v754 = vpop.f32.mrf.mxu0
      %v755 = vadd.f32 0.0, %v754
      %756 = vdwg.mxu0
      %v789 = vunpack.c.l.b16 %v469
      %v790 = vunpack.c.l.b16 %v470
      %v791 = vunpack.c.l.b16 %v471
      %v792 = vunpack.c.l.b16 %v472
      %v793 = vunpack.c.l.b16 %v473
      %v794 = vunpack.c.l.b16 %v474
      %v795 = vunpack.c.l.b16 %v475
      %v796 = vunpack.c.l.b16 %v476
      %v797 = vunpack.c.l.b16 %v477
      %v798 = vunpack.c.l.b16 %v478
      %v799 = vunpack.c.l.b16 %v479
      %v800 = vunpack.c.l.b16 %v480
      %v801 = vunpack.c.l.b16 %v481
      %v802 = vunpack.c.l.b16 %v482
      %v803 = vunpack.c.l.b16 %v483
      %v804 = vunpack.c.l.b16 %v484
      %v805 = vunpack.c.l.b16 %v485
      %v806 = vunpack.c.l.b16 %v486
      %v807 = vunpack.c.l.b16 %v487
      %v808 = vunpack.c.l.b16 %v488
      %v809 = vunpack.c.l.b16 %v489
      %v810 = vunpack.c.l.b16 %v490
      %v811 = vunpack.c.l.b16 %v491
      %v812 = vunpack.c.l.b16 %v492
      %v813 = vunpack.c.l.b16 %v493
      %v814 = vunpack.c.l.b16 %v494
      %v815 = vunpack.c.l.b16 %v495
      %v816 = vunpack.c.l.b16 %v496
      %v817 = vunpack.c.l.b16 %v497
      %v818 = vunpack.c.l.b16 %v498
      %v819 = vunpack.c.l.b16 %v499
      %v820 = vunpack.c.l.b16 %v500
      %v821 = vpack.c.b16 %v790, %v789
      %v822 = vpack.c.b16 %v792, %v791
      %v823 = vpack.c.b16 %v794, %v793
      %v824 = vpack.c.b16 %v796, %v795
      %v825 = vpack.c.b16 %v798, %v797
      %v826 = vpack.c.b16 %v800, %v799
      %v827 = vpack.c.b16 %v802, %v801
      %v828 = vpack.c.b16 %v804, %v803
      %v829 = vpack.c.b16 %v806, %v805
      %v830 = vpack.c.b16 %v808, %v807
      %v831 = vpack.c.b16 %v810, %v809
      %v832 = vpack.c.b16 %v812, %v811
      %v833 = vpack.c.b16 %v814, %v813
      %v834 = vpack.c.b16 %v816, %v815
      %v835 = vpack.c.b16 %v818, %v817
      %v836 = vpack.c.b16 %v820, %v819
      %v838 = vsel %vm615, %v821, 0
      %v841 = vsel %vm615, %v822, 0
      %v844 = vsel %vm615, %v823, 0
      %v847 = vsel %vm615, %v824, 0
      %v850 = vsel %vm615, %v825, 0
      %v853 = vsel %vm615, %v826, 0
      %v856 = vsel %vm615, %v827, 0
      %v859 = vsel %vm615, %v828, 0
      %v862 = vsel %vm615, %v829, 0
      %v865 = vsel %vm615, %v830, 0
      %v868 = vsel %vm615, %v831, 0
      %v871 = vsel %vm615, %v832, 0
      %v874 = vsel %vm615, %v833, 0
      %v877 = vsel %vm615, %v834, 0
      %v880 = vsel %vm615, %v835, 0
      %v883 = vsel %vm615, %v836, 0
      %v886 = vsel %vm664, %v501, 0
      %888 = vmatpush.bf16.msra.mxu0 0
      %889 = vmatpush.bf16.msra.mxu0 0
      %890 = vmatpush.bf16.msra.mxu0 0
      %891 = vmatpush.bf16.msra.mxu0 0
      %892 = vmatpush.bf16.msra.mxu0 0
      %893 = vmatpush.bf16.msra.mxu0 0
      %894 = vmatpush.bf16.msra.mxu0 0
      %895 = vmatpush.bf16.msra.mxu0 %v886
      %896 = vmatmul.bf16.gmra.mxu0 %v838
      %v897 = vpop.f32.mrf.mxu0
      %v898 = vadd.f32 %v678, %v897
      %v899 = vpop.f32.mrf.mxu0
      %v900 = vadd.f32 %v680, %v899
      %901 = vmatmul.bf16.gmra.mxu0 %v841
      %v902 = vpop.f32.mrf.mxu0
      %v903 = vadd.f32 %v683, %v902
      %v904 = vpop.f32.mrf.mxu0
      %v905 = vadd.f32 %v685, %v904
      %906 = vmatmul.bf16.gmra.mxu0 %v844
      %v907 = vpop.f32.mrf.mxu0
      %v908 = vadd.f32 %v688, %v907
      %v909 = vpop.f32.mrf.mxu0
      %v910 = vadd.f32 %v690, %v909
      %911 = vmatmul.bf16.gmra.mxu0 %v847
      %v912 = vpop.f32.mrf.mxu0
      %v913 = vadd.f32 %v693, %v912
      %v914 = vpop.f32.mrf.mxu0
      %v915 = vadd.f32 %v695, %v914
      %916 = vmatmul.bf16.gmra.mxu0 %v850
      %v917 = vpop.f32.mrf.mxu0
      %v918 = vadd.f32 %v698, %v917
      %v919 = vpop.f32.mrf.mxu0
      %v920 = vadd.f32 %v700, %v919
      %921 = vmatmul.bf16.gmra.mxu0 %v853
      %v922 = vpop.f32.mrf.mxu0
      %v923 = vadd.f32 %v703, %v922
      %v924 = vpop.f32.mrf.mxu0
      %v925 = vadd.f32 %v705, %v924
      %926 = vmatmul.bf16.gmra.mxu0 %v856
      %v927 = vpop.f32.mrf.mxu0
      %v928 = vadd.f32 %v708, %v927
      %v929 = vpop.f32.mrf.mxu0
      %v930 = vadd.f32 %v710, %v929
      %931 = vmatmul.bf16.gmra.mxu0 %v859
      %v932 = vpop.f32.mrf.mxu0
      %v933 = vadd.f32 %v713, %v932
      %v934 = vpop.f32.mrf.mxu0
      %v935 = vadd.f32 %v715, %v934
      %936 = vmatmul.bf16.gmra.mxu0 %v862
      %v937 = vpop.f32.mrf.mxu0
      %v938 = vadd.f32 %v718, %v937
      %v939 = vpop.f32.mrf.mxu0
      %v940 = vadd.f32 %v720, %v939
      %941 = vmatmul.bf16.gmra.mxu0 %v865
      %v942 = vpop.f32.mrf.mxu0
      %v943 = vadd.f32 %v723, %v942
      %v944 = vpop.f32.mrf.mxu0
      %v945 = vadd.f32 %v725, %v944
      %946 = vmatmul.bf16.gmra.mxu0 %v868
      %v947 = vpop.f32.mrf.mxu0
      %v948 = vadd.f32 %v728, %v947
      %v949 = vpop.f32.mrf.mxu0
      %v950 = vadd.f32 %v730, %v949
      %951 = vmatmul.bf16.gmra.mxu0 %v871
      %v952 = vpop.f32.mrf.mxu0
      %v953 = vadd.f32 %v733, %v952
      %v954 = vpop.f32.mrf.mxu0
      %v955 = vadd.f32 %v735, %v954
      %956 = vmatmul.bf16.gmra.mxu0 %v874
      %v957 = vpop.f32.mrf.mxu0
      %v958 = vadd.f32 %v738, %v957
      %v959 = vpop.f32.mrf.mxu0
      %v960 = vadd.f32 %v740, %v959
      %961 = vmatmul.bf16.gmra.mxu0 %v877
      %v962 = vpop.f32.mrf.mxu0
      %v963 = vadd.f32 %v743, %v962
      %v964 = vpop.f32.mrf.mxu0
      %v965 = vadd.f32 %v745, %v964
      %966 = vmatmul.bf16.gmra.mxu0 %v880
      %v967 = vpop.f32.mrf.mxu0
      %v968 = vadd.f32 %v748, %v967
      %v969 = vpop.f32.mrf.mxu0
      %v970 = vadd.f32 %v750, %v969
      %971 = vmatmul.bf16.gmra.mxu0 %v883
      %v972 = vpop.f32.mrf.mxu0
      %v973 = vadd.f32 %v753, %v972
      %v974 = vpop.f32.mrf.mxu0
      %v975 = vadd.f32 %v755, %v974
      %976 = vdwg.mxu0
      %v977 = vld [vmem:[%s4] sm:$0x1]
      %v979 = vperm.slane %v977, 0
      %v981 = vadd.f32 %v898, %v979
      %v982 = vadd.f32 %v900, %v979
      %v983 = vadd.f32 %v903, %v979
      %v984 = vadd.f32 %v905, %v979
      %v985 = vadd.f32 %v908, %v979
      %v986 = vadd.f32 %v910, %v979
      %v987 = vadd.f32 %v913, %v979
      %v988 = vadd.f32 %v915, %v979
      %v989 = vadd.f32 %v918, %v979
      %v990 = vadd.f32 %v920, %v979
      %v991 = vadd.f32 %v923, %v979
      %v992 = vadd.f32 %v925, %v979
      %v993 = vadd.f32 %v928, %v979
      %v994 = vadd.f32 %v930, %v979
      %v995 = vadd.f32 %v933, %v979
      %v996 = vadd.f32 %v935, %v979
      %v997 = vadd.f32 %v938, %v979
      %v998 = vadd.f32 %v940, %v979
      %v999 = vadd.f32 %v943, %v979
      %v1000 = vadd.f32 %v945, %v979
      %v1001 = vadd.f32 %v948, %v979
      %v1002 = vadd.f32 %v950, %v979
      %v1003 = vadd.f32 %v953, %v979
      %v1004 = vadd.f32 %v955, %v979
      %v1005 = vadd.f32 %v958, %v979
      %v1006 = vadd.f32 %v960, %v979
      %v1007 = vadd.f32 %v963, %v979
      %v1008 = vadd.f32 %v965, %v979
      %v1009 = vadd.f32 %v968, %v979
      %v1010 = vadd.f32 %v970, %v979
      %v1011 = vadd.f32 %v973, %v979
      %v1012 = vadd.f32 %v975, %v979
      %v1013 = vmax.f32 %v981, 0.0
      %v1014 = vmax.f32 %v982, 0.0
      %v1015 = vmax.f32 %v983, 0.0
      %v1016 = vmax.f32 %v984, 0.0
      %v1017 = vmax.f32 %v985, 0.0
      %v1018 = vmax.f32 %v986, 0.0
      %v1019 = vmax.f32 %v987, 0.0
      %v1020 = vmax.f32 %v988, 0.0
      %v1021 = vmax.f32 %v989, 0.0
      %v1022 = vmax.f32 %v990, 0.0
      %v1023 = vmax.f32 %v991, 0.0
      %v1024 = vmax.f32 %v992, 0.0
      %v1025 = vmax.f32 %v993, 0.0
      %v1026 = vmax.f32 %v994, 0.0
      %v1027 = vmax.f32 %v995, 0.0
      %v1028 = vmax.f32 %v996, 0.0
      %v1029 = vmax.f32 %v997, 0.0
      %v1030 = vmax.f32 %v998, 0.0
      %v1031 = vmax.f32 %v999, 0.0
      %v1032 = vmax.f32 %v1000, 0.0
      %v1033 = vmax.f32 %v1001, 0.0
      %v1034 = vmax.f32 %v1002, 0.0
      %v1035 = vmax.f32 %v1003, 0.0
      %v1036 = vmax.f32 %v1004, 0.0
      %v1037 = vmax.f32 %v1005, 0.0
      %v1038 = vmax.f32 %v1006, 0.0
      %v1039 = vmax.f32 %v1007, 0.0
      %v1040 = vmax.f32 %v1008, 0.0
      %v1041 = vmax.f32 %v1009, 0.0
      %v1042 = vmax.f32 %v1010, 0.0
      %v1043 = vmax.f32 %v1011, 0.0
      %v1044 = vmax.f32 %v1012, 0.0
      %s1045 = scalar_lea.vmem [#allocation2], 24
      %1046 = vst.msk [vmem:[%s1045 + $0x1] sm:$0xff] %vm354, %v1013
      %1047 = vst.msk [vmem:[%s1045 + $0x9] sm:$0xff] %vm354, %v1014
      %1048 = vst.msk [vmem:[%s1045 + $0x19] sm:$0xff] %vm354, %v1015
      %1049 = vst.msk [vmem:[%s1045 + $0x21] sm:$0xff] %vm354, %v1016
      %1050 = vst.msk [vmem:[%s1045 + $0x31] sm:$0xff] %vm354, %v1017
      %1051 = vst.msk [vmem:[%s1045 + $0x39] sm:$0xff] %vm354, %v1018
      %1052 = vst.msk [vmem:[%s1045 + $0x49] sm:$0xff] %vm354, %v1019
      %1053 = vst.msk [vmem:[%s1045 + $0x51] sm:$0xff] %vm354, %v1020
      %1054 = vst.msk [vmem:[%s1045 + $0x61] sm:$0xff] %vm354, %v1021
      %1055 = vst.msk [vmem:[%s1045 + $0x69] sm:$0xff] %vm354, %v1022
      %1056 = vst.msk [vmem:[%s1045 + $0x79] sm:$0xff] %vm354, %v1023
      %1057 = vst.msk [vmem:[%s1045 + $0x81] sm:$0xff] %vm354, %v1024
      %1058 = vst.msk [vmem:[%s1045 + $0x91] sm:$0xff] %vm354, %v1025
      %1059 = vst.msk [vmem:[%s1045 + $0x99] sm:$0xff] %vm354, %v1026
      %1060 = vst.msk [vmem:[%s1045 + $0xa9] sm:$0xff] %vm354, %v1027
      %1061 = vst.msk [vmem:[%s1045 + $0xb1] sm:$0xff] %vm354, %v1028
      %1062 = vst.msk [vmem:[%s1045 + $0xc1] sm:$0xff] %vm354, %v1029
      %1063 = vst.msk [vmem:[%s1045 + $0xc9] sm:$0xff] %vm354, %v1030
      %1064 = vst.msk [vmem:[%s1045 + $0xd9] sm:$0xff] %vm354, %v1031
      %1065 = vst.msk [vmem:[%s1045 + $0xe1] sm:$0xff] %vm354, %v1032
      %1066 = vst.msk [vmem:[%s1045 + $0xf1] sm:$0xff] %vm354, %v1033
      %1067 = vst.msk [vmem:[%s1045 + $0xf9] sm:$0xff] %vm354, %v1034
      %1068 = vst.msk [vmem:[%s1045 + $0x109] sm:$0xff] %vm354, %v1035
      %1069 = vst.msk [vmem:[%s1045 + $0x111] sm:$0xff] %vm354, %v1036
      %1070 = vst.msk [vmem:[%s1045 + $0x121] sm:$0xff] %vm354, %v1037
      %1071 = vst.msk [vmem:[%s1045 + $0x129] sm:$0xff] %vm354, %v1038
      %1072 = vst.msk [vmem:[%s1045 + $0x139] sm:$0xff] %vm354, %v1039
      %1073 = vst.msk [vmem:[%s1045 + $0x141] sm:$0xff] %vm354, %v1040
      %1074 = vst.msk [vmem:[%s1045 + $0x151] sm:$0xff] %vm354, %v1041
      %1075 = vst.msk [vmem:[%s1045 + $0x159] sm:$0xff] %vm354, %v1042
      %1076 = vst.msk [vmem:[%s1045 + $0x169] sm:$0xff] %vm354, %v1043
      %1077 = vst.msk [vmem:[%s1045 + $0x171] sm:$0xff] %vm354, %v1044
      %v1078 = vld [vmem:[#allocation2] sm:$0xff]
      %v1079 = vld [vmem:[#allocation2 + $0x8] sm:$0xff]
      %v1080 = vld [vmem:[#allocation2 + $0x10] sm:$0xff]
      %v1081 = vld [vmem:[#allocation2 + $0x18] sm:$0xff]
      %v1082 = vld [vmem:[#allocation2 + $0x20] sm:$0xff]
      %v1083 = vld [vmem:[#allocation2 + $0x28] sm:$0xff]
      %v1084 = vld [vmem:[#allocation2 + $0x30] sm:$0xff]
      %v1085 = vld [vmem:[#allocation2 + $0x38] sm:$0xff]
      %v1086 = vld [vmem:[#allocation2 + $0x40] sm:$0xff]
      %v1087 = vld [vmem:[#allocation2 + $0x48] sm:$0xff]
      %v1088 = vld [vmem:[#allocation2 + $0x50] sm:$0xff]
      %v1089 = vld [vmem:[#allocation2 + $0x58] sm:$0xff]
      %v1090 = vld [vmem:[#allocation2 + $0x60] sm:$0xff]
      %v1091 = vld [vmem:[#allocation2 + $0x68] sm:$0xff]
      %v1092 = vld [vmem:[#allocation2 + $0x70] sm:$0xff]
      %v1093 = vld [vmem:[#allocation2 + $0x78] sm:$0xff]
      %v1094 = vld [vmem:[#allocation2 + $0x80] sm:$0xff]
      %v1095 = vld [vmem:[#allocation2 + $0x88] sm:$0xff]
      %v1096 = vld [vmem:[#allocation2 + $0x90] sm:$0xff]
      %v1097 = vld [vmem:[#allocation2 + $0x98] sm:$0xff]
      %v1098 = vld [vmem:[#allocation2 + $0xa0] sm:$0xff]
      %v1099 = vld [vmem:[#allocation2 + $0xa8] sm:$0xff]
      %v1100 = vld [vmem:[#allocation2 + $0xb0] sm:$0xff]
      %v1101 = vld [vmem:[#allocation2 + $0xb8] sm:$0xff]
      %v1102 = vld [vmem:[#allocation2 + $0xc0] sm:$0xff]
      %v1103 = vld [vmem:[#allocation2 + $0xc8] sm:$0xff]
      %v1104 = vld [vmem:[#allocation2 + $0xd0] sm:$0xff]
      %v1105 = vld [vmem:[#allocation2 + $0xd8] sm:$0xff]
      %v1106 = vld [vmem:[#allocation2 + $0xe0] sm:$0xff]
      %v1107 = vld [vmem:[#allocation2 + $0xe8] sm:$0xff]
      %v1108 = vld [vmem:[#allocation2 + $0xf0] sm:$0xff]
      %v1109 = vld [vmem:[#allocation2 + $0xf8] sm:$0xff]
      %v1110 = vld [vmem:[#allocation2 + $0x100] sm:$0xff]
      %v1111 = vld [vmem:[#allocation2 + $0x108] sm:$0xff]
      %v1112 = vld [vmem:[#allocation2 + $0x110] sm:$0xff]
      %v1113 = vld [vmem:[#allocation2 + $0x118] sm:$0xff]
      %v1114 = vld [vmem:[#allocation2 + $0x120] sm:$0xff]
      %v1115 = vld [vmem:[#allocation2 + $0x128] sm:$0xff]
      %v1116 = vld [vmem:[#allocation2 + $0x130] sm:$0xff]
      %v1117 = vld [vmem:[#allocation2 + $0x138] sm:$0xff]
      %v1118 = vld [vmem:[#allocation2 + $0x140] sm:$0xff]
      %v1119 = vld [vmem:[#allocation2 + $0x148] sm:$0xff]
      %v1120 = vld [vmem:[#allocation2 + $0x150] sm:$0xff]
      %v1121 = vld [vmem:[#allocation2 + $0x158] sm:$0xff]
      %v1122 = vld [vmem:[#allocation2 + $0x160] sm:$0xff]
      %v1123 = vld [vmem:[#allocation2 + $0x168] sm:$0xff]
      %v1124 = vld [vmem:[#allocation2 + $0x170] sm:$0xff]
      %v1125 = vld [vmem:[#allocation2 + $0x178] sm:$0xff]
      %v1126 = vld [vmem:[#allocation2 + $0x180] sm:$0xff]
      %v1127 = vld [vmem:[#allocation2 + $0x188] sm:$0xff]
      %v1128 = vld [vmem:[#allocation2 + $0x190] sm:$0xff]
      %v1129 = vld [vmem:[#allocation2 + $0x198] sm:$0xff]
      %v1130 = vld [vmem:[#allocation2 + $0x1a0] sm:$0xff]
      %v1131 = vld [vmem:[#allocation2 + $0x1a8] sm:$0xff]
      %v1132 = vld [vmem:[#allocation2 + $0x1b0] sm:$0xff]
      %v1133 = vpack.c.bf16 %v1079, %v1078
      %v1134 = vpack.c.bf16 %v1081, %v1080
      %v1135 = vpack.c.bf16 %v1083, %v1082
      %v1136 = vpack.c.bf16 %v1085, %v1084
      %v1137 = vpack.c.bf16 %v1087, %v1086
      %v1138 = vpack.c.bf16 %v1089, %v1088
      %v1139 = vpack.c.bf16 %v1091, %v1090
      %v1140 = vpack.c.bf16 %v1093, %v1092
      %v1141 = vpack.c.bf16 %v1095, %v1094
      %v1142 = vpack.c.bf16 %v1097, %v1096
      %v1143 = vpack.c.bf16 %v1099, %v1098
      %v1144 = vpack.c.bf16 %v1101, %v1100
      %v1145 = vpack.c.bf16 %v1103, %v1102
      %v1146 = vpack.c.bf16 %v1105, %v1104
      %v1147 = vpack.c.bf16 %v1107, %v1106
      %v1148 = vpack.c.bf16 %v1109, %v1108
      %v1149 = vpack.c.bf16 %v1111, %v1110
      %v1150 = vpack.c.bf16 %v1113, %v1112
      %v1151 = vpack.c.bf16 %v1115, %v1114
      %v1152 = vpack.c.bf16 %v1117, %v1116
      %v1153 = vpack.c.bf16 %v1119, %v1118
      %v1154 = vpack.c.bf16 %v1121, %v1120
      %v1155 = vpack.c.bf16 %v1123, %v1122
      %v1156 = vpack.c.bf16 %v1125, %v1124
      %v1157 = vld [vmem:[%s5] sm:$0x3]
      %v1158 = vpack.c.bf16 %v1126, %v1126
      %s1159 = scalar_lea.vmem %s5, 2
      %v1160 = vld [vmem:[%s1159] sm:$0x3]
      %vm1161 = vsmask.f32 7424
      %v1163 = vshrl.u32 %v1133, 16
      %v1165 = vshll.u32 %v1133, 16
      %v1167 = vrot.slane %v1165, 1
      %v1168 = vor.u32 %v1163, %v1167
      %v1170 = vshll.u32 %v1134, 16
      %v1172 = vrot.slane %v1170, 1
      %v1173 = vsel %vm1161, %v1168, %v1172
      %v1174 = vshrl.u32 %v1134, 16
      %v1176 = vor.u32 %v1174, %v1172
      %v1178 = vshll.u32 %v1135, 16
      %v1180 = vrot.slane %v1178, 1
      %v1181 = vsel %vm1161, %v1176, %v1180
      %v1182 = vshrl.u32 %v1135, 16
      %v1184 = vor.u32 %v1182, %v1180
      %v1186 = vshll.u32 %v1136, 16
      %v1188 = vrot.slane %v1186, 1
      %v1189 = vsel %vm1161, %v1184, %v1188
      %v1190 = vshrl.u32 %v1136, 16
      %v1192 = vor.u32 %v1190, %v1188
      %v1194 = vshll.u32 %v1137, 16
      %v1196 = vrot.slane %v1194, 1
      %v1197 = vsel %vm1161, %v1192, %v1196
      %v1198 = vshrl.u32 %v1137, 16
      %v1200 = vor.u32 %v1198, %v1196
      %v1202 = vshll.u32 %v1138, 16
      %v1204 = vrot.slane %v1202, 1
      %v1205 = vsel %vm1161, %v1200, %v1204
      %v1206 = vshrl.u32 %v1138, 16
      %v1208 = vor.u32 %v1206, %v1204
      %v1210 = vshll.u32 %v1139, 16
      %v1212 = vrot.slane %v1210, 1
      %v1213 = vsel %vm1161, %v1208, %v1212
      %v1214 = vshrl.u32 %v1139, 16
      %v1216 = vor.u32 %v1214, %v1212
      %v1218 = vshll.u32 %v1140, 16
      %v1220 = vrot.slane %v1218, 1
      %v1221 = vsel %vm1161, %v1216, %v1220
      %v1222 = vshrl.u32 %v1140, 16
      %v1224 = vor.u32 %v1222, %v1220
      %v1226 = vshll.u32 %v1141, 16
      %v1228 = vrot.slane %v1226, 1
      %v1229 = vsel %vm1161, %v1224, %v1228
      %v1230 = vshrl.u32 %v1141, 16
      %v1232 = vor.u32 %v1230, %v1228
      %v1234 = vshll.u32 %v1142, 16
      %v1236 = vrot.slane %v1234, 1
      %v1237 = vsel %vm1161, %v1232, %v1236
      %v1238 = vshrl.u32 %v1142, 16
      %v1240 = vor.u32 %v1238, %v1236
      %v1242 = vshll.u32 %v1143, 16
      %v1244 = vrot.slane %v1242, 1
      %v1245 = vsel %vm1161, %v1240, %v1244
      %v1246 = vshrl.u32 %v1143, 16
      %v1248 = vor.u32 %v1246, %v1244
      %v1250 = vshll.u32 %v1144, 16
      %v1252 = vrot.slane %v1250, 1
      %v1253 = vsel %vm1161, %v1248, %v1252
      %v1254 = vshrl.u32 %v1144, 16
      %v1256 = vor.u32 %v1254, %v1252
      %v1258 = vshll.u32 %v1145, 16
      %v1260 = vrot.slane %v1258, 1
      %v1261 = vsel %vm1161, %v1256, %v1260
      %v1262 = vshrl.u32 %v1145, 16
      %v1264 = vor.u32 %v1262, %v1260
      %v1266 = vshll.u32 %v1146, 16
      %v1268 = vrot.slane %v1266, 1
      %v1269 = vsel %vm1161, %v1264, %v1268
      %v1270 = vshrl.u32 %v1146, 16
      %v1272 = vor.u32 %v1270, %v1268
      %v1274 = vshll.u32 %v1147, 16
      %v1276 = vrot.slane %v1274, 1
      %v1277 = vsel %vm1161, %v1272, %v1276
      %v1278 = vshrl.u32 %v1147, 16
      %v1280 = vor.u32 %v1278, %v1276
      %v1282 = vshll.u32 %v1148, 16
      %v1284 = vrot.slane %v1282, 1
      %v1285 = vsel %vm1161, %v1280, %v1284
      %v1286 = vshrl.u32 %v1148, 16
      %v1288 = vor.u32 %v1286, %v1284
      %v1290 = vshll.u32 %v1149, 16
      %v1292 = vrot.slane %v1290, 1
      %v1293 = vsel %vm1161, %v1288, %v1292
      %v1294 = vshrl.u32 %v1149, 16
      %v1296 = vor.u32 %v1294, %v1292
      %v1298 = vshll.u32 %v1150, 16
      %v1300 = vrot.slane %v1298, 1
      %v1301 = vsel %vm1161, %v1296, %v1300
      %v1302 = vshrl.u32 %v1150, 16
      %v1304 = vor.u32 %v1302, %v1300
      %v1306 = vshll.u32 %v1151, 16
      %v1308 = vrot.slane %v1306, 1
      %v1309 = vsel %vm1161, %v1304, %v1308
      %v1310 = vshrl.u32 %v1151, 16
      %v1312 = vor.u32 %v1310, %v1308
      %v1314 = vshll.u32 %v1152, 16
      %v1316 = vrot.slane %v1314, 1
      %v1317 = vsel %vm1161, %v1312, %v1316
      %v1318 = vshrl.u32 %v1152, 16
      %v1320 = vor.u32 %v1318, %v1316
      %v1322 = vshll.u32 %v1153, 16
      %v1324 = vrot.slane %v1322, 1
      %v1325 = vsel %vm1161, %v1320, %v1324
      %v1326 = vshrl.u32 %v1153, 16
      %v1328 = vor.u32 %v1326, %v1324
      %v1330 = vshll.u32 %v1154, 16
      %v1332 = vrot.slane %v1330, 1
      %v1333 = vsel %vm1161, %v1328, %v1332
      %v1334 = vshrl.u32 %v1154, 16
      %v1336 = vor.u32 %v1334, %v1332
      %v1338 = vshll.u32 %v1155, 16
      %v1340 = vrot.slane %v1338, 1
      %v1341 = vsel %vm1161, %v1336, %v1340
      %v1342 = vshrl.u32 %v1155, 16
      %v1344 = vor.u32 %v1342, %v1340
      %v1346 = vshll.u32 %v1156, 16
      %v1348 = vrot.slane %v1346, 1
      %v1349 = vsel %vm1161, %v1344, %v1348
      %v1350 = vshrl.u32 %v1156, 16
      %v1352 = vor.u32 %v1350, %v1348
      %v1354 = vshll.u32 %v1158, 16
      %v1356 = vrot.slane %v1354, 1
      %v1357 = vsel %vm1161, %v1352, %v1356
      %v1359 = vsel %vm354, %v1173, 0
      %v1362 = vsel %vm354, %v1181, 0
      %v1365 = vsel %vm354, %v1189, 0
      %v1368 = vsel %vm354, %v1197, 0
      %v1371 = vsel %vm354, %v1205, 0
      %v1374 = vsel %vm354, %v1213, 0
      %v1377 = vsel %vm354, %v1221, 0
      %v1380 = vsel %vm354, %v1229, 0
      %v1383 = vsel %vm354, %v1237, 0
      %v1386 = vsel %vm354, %v1245, 0
      %v1389 = vsel %vm354, %v1253, 0
      %v1392 = vsel %vm354, %v1261, 0
      %v1395 = vsel %vm354, %v1269, 0
      %v1398 = vsel %vm354, %v1277, 0
      %v1401 = vsel %vm354, %v1285, 0
      %v1404 = vsel %vm354, %v1293, 0
      %v1407 = vsel %vm354, %v1301, 0
      %v1410 = vsel %vm354, %v1309, 0
      %v1413 = vsel %vm354, %v1317, 0
      %v1416 = vsel %vm354, %v1325, 0
      %v1419 = vsel %vm354, %v1333, 0
      %v1422 = vsel %vm354, %v1341, 0
      %v1425 = vsel %vm354, %v1349, 0
      %v1428 = vsel %vm354, %v1357, 0
      %vm1430 = vcmask 1041408
      %v1432 = vsel %vm1430, %v1160, 0
      %1434 = vmatpush.bf16.msra.mxu0 0
      %1435 = vmatpush.bf16.msra.mxu0 0
      %1436 = vmatpush.bf16.msra.mxu0 0
      %1437 = vmatpush.bf16.msra.mxu0 0
      %1438 = vmatpush.bf16.msra.mxu0 0
      %1439 = vmatpush.bf16.msra.mxu0 0
      %1440 = vmatpush.bf16.msra.mxu0 0
      %1441 = vmatpush.bf16.msra.mxu0 %v1432
      %1442 = vmatmul.bf16.gmra.mxu0 %v1359
      %v1443 = vpop.f32.mrf.mxu0
      %v1444 = vadd.f32 0.0, %v1443
      %v1445 = vpop.f32.mrf.mxu0
      %v1446 = vadd.f32 0.0, %v1445
      %1447 = vmatmul.bf16.gmra.mxu0 %v1362
      %v1448 = vpop.f32.mrf.mxu0
      %v1449 = vpop.f32.mrf.mxu0
      %v1450 = vadd.f32 0.0, %v1449
      %1451 = vmatmul.bf16.gmra.mxu0 %v1365
      %v1452 = vpop.f32.mrf.mxu0
      %v1453 = vadd.f32 0.0, %v1452
      %v1454 = vpop.f32.mrf.mxu0
      %1455 = vmatmul.bf16.gmra.mxu0 %v1368
      %v1456 = vpop.f32.mrf.mxu0
      %v1457 = vadd.f32 0.0, %v1456
      %v1458 = vpop.f32.mrf.mxu0
      %v1459 = vadd.f32 0.0, %v1458
      %1460 = vmatmul.bf16.gmra.mxu0 %v1371
      %v1461 = vpop.f32.mrf.mxu0
      %v1462 = vpop.f32.mrf.mxu0
      %v1463 = vadd.f32 0.0, %v1462
      %1464 = vmatmul.bf16.gmra.mxu0 %v1374
      %v1465 = vpop.f32.mrf.mxu0
      %v1466 = vadd.f32 0.0, %v1465
      %v1467 = vpop.f32.mrf.mxu0
      %1468 = vmatmul.bf16.gmra.mxu0 %v1377
      %v1469 = vpop.f32.mrf.mxu0
      %v1470 = vadd.f32 0.0, %v1469
      %v1471 = vpop.f32.mrf.mxu0
      %v1472 = vadd.f32 0.0, %v1471
      %1473 = vmatmul.bf16.gmra.mxu0 %v1380
      %v1474 = vpop.f32.mrf.mxu0
      %v1475 = vpop.f32.mrf.mxu0
      %v1476 = vadd.f32 0.0, %v1475
      %1477 = vmatmul.bf16.gmra.mxu0 %v1383
      %v1478 = vpop.f32.mrf.mxu0
      %v1479 = vadd.f32 0.0, %v1478
      %v1480 = vpop.f32.mrf.mxu0
      %1481 = vmatmul.bf16.gmra.mxu0 %v1386
      %v1482 = vpop.f32.mrf.mxu0
      %v1483 = vadd.f32 0.0, %v1482
      %v1484 = vpop.f32.mrf.mxu0
      %v1485 = vadd.f32 0.0, %v1484
      %1486 = vmatmul.bf16.gmra.mxu0 %v1389
      %v1487 = vpop.f32.mrf.mxu0
      %v1488 = vpop.f32.mrf.mxu0
      %v1489 = vadd.f32 0.0, %v1488
      %1490 = vmatmul.bf16.gmra.mxu0 %v1392
      %v1491 = vpop.f32.mrf.mxu0
      %v1492 = vadd.f32 0.0, %v1491
      %v1493 = vpop.f32.mrf.mxu0
      %1494 = vmatmul.bf16.gmra.mxu0 %v1395
      %v1495 = vpop.f32.mrf.mxu0
      %v1496 = vadd.f32 0.0, %v1495
      %v1497 = vpop.f32.mrf.mxu0
      %v1498 = vadd.f32 0.0, %v1497
      %1499 = vmatmul.bf16.gmra.mxu0 %v1398
      %v1500 = vpop.f32.mrf.mxu0
      %v1501 = vpop.f32.mrf.mxu0
      %v1502 = vadd.f32 0.0, %v1501
      %1503 = vmatmul.bf16.gmra.mxu0 %v1401
      %v1504 = vpop.f32.mrf.mxu0
      %v1505 = vadd.f32 0.0, %v1504
      %v1506 = vpop.f32.mrf.mxu0
      %1507 = vmatmul.bf16.gmra.mxu0 %v1404
      %v1508 = vpop.f32.mrf.mxu0
      %v1509 = vadd.f32 0.0, %v1508
      %v1510 = vpop.f32.mrf.mxu0
      %v1511 = vadd.f32 0.0, %v1510
      %1512 = vmatmul.bf16.gmra.mxu0 %v1407
      %v1513 = vpop.f32.mrf.mxu0
      %v1514 = vpop.f32.mrf.mxu0
      %v1515 = vadd.f32 0.0, %v1514
      %1516 = vmatmul.bf16.gmra.mxu0 %v1410
      %v1517 = vpop.f32.mrf.mxu0
      %v1518 = vadd.f32 0.0, %v1517
      %v1519 = vpop.f32.mrf.mxu0
      %1520 = vmatmul.bf16.gmra.mxu0 %v1413
      %v1521 = vpop.f32.mrf.mxu0
      %v1522 = vadd.f32 0.0, %v1521
      %v1523 = vpop.f32.mrf.mxu0
      %v1524 = vadd.f32 0.0, %v1523
      %1525 = vmatmul.bf16.gmra.mxu0 %v1416
      %v1526 = vpop.f32.mrf.mxu0
      %v1527 = vpop.f32.mrf.mxu0
      %v1528 = vadd.f32 0.0, %v1527
      %1529 = vmatmul.bf16.gmra.mxu0 %v1419
      %v1530 = vpop.f32.mrf.mxu0
      %v1531 = vadd.f32 0.0, %v1530
      %v1532 = vpop.f32.mrf.mxu0
      %1533 = vmatmul.bf16.gmra.mxu0 %v1422
      %v1534 = vpop.f32.mrf.mxu0
      %v1535 = vadd.f32 0.0, %v1534
      %v1536 = vpop.f32.mrf.mxu0
      %v1537 = vadd.f32 0.0, %v1536
      %1538 = vmatmul.bf16.gmra.mxu0 %v1425
      %v1539 = vpop.f32.mrf.mxu0
      %v1540 = vpop.f32.mrf.mxu0
      %v1541 = vadd.f32 0.0, %v1540
      %1542 = vmatmul.bf16.gmra.mxu0 %v1428
      %v1543 = vpop.f32.mrf.mxu0
      %v1544 = vadd.f32 0.0, %v1543
      %v1545 = vpop.f32.mrf.mxu0
      %1546 = vdwg.mxu0
      %v1547 = vsel %vm354, %v1133, 0
      %v1549 = vsel %vm354, %v1134, 0
      %v1551 = vsel %vm354, %v1135, 0
      %v1553 = vsel %vm354, %v1136, 0
      %v1555 = vsel %vm354, %v1137, 0
      %v1557 = vsel %vm354, %v1138, 0
      %v1559 = vsel %vm354, %v1139, 0
      %v1561 = vsel %vm354, %v1140, 0
      %v1563 = vsel %vm354, %v1141, 0
      %v1565 = vsel %vm354, %v1142, 0
      %v1567 = vsel %vm354, %v1143, 0
      %v1569 = vsel %vm354, %v1144, 0
      %v1571 = vsel %vm354, %v1145, 0
      %v1573 = vsel %vm354, %v1146, 0
      %v1575 = vsel %vm354, %v1147, 0
      %v1577 = vsel %vm354, %v1148, 0
      %v1579 = vsel %vm354, %v1149, 0
      %v1581 = vsel %vm354, %v1150, 0
      %v1583 = vsel %vm354, %v1151, 0
      %v1585 = vsel %vm354, %v1152, 0
      %v1587 = vsel %vm354, %v1153, 0
      %v1589 = vsel %vm354, %v1154, 0
      %v1591 = vsel %vm354, %v1155, 0
      %v1593 = vsel %vm354, %v1156, 0
      %v1596 = vsel %vm1430, %v1157, 0
      %1598 = vmatpush.bf16.msra.mxu0 0
      %1599 = vmatpush.bf16.msra.mxu0 0
      %1600 = vmatpush.bf16.msra.mxu0 0
      %1601 = vmatpush.bf16.msra.mxu0 0
      %1602 = vmatpush.bf16.msra.mxu0 0
      %1603 = vmatpush.bf16.msra.mxu0 0
      %1604 = vmatpush.bf16.msra.mxu0 0
      %1605 = vmatpush.bf16.msra.mxu0 %v1596
      %1606 = vmatmul.bf16.gmra.mxu0 %v1547
      %v1607 = vpop.f32.mrf.mxu0
      %v1608 = vadd.f32 %v1444, %v1607
      %v1609 = vpop.f32.mrf.mxu0
      %v1610 = vadd.f32 %v1446, %v1609
      %1611 = vmatmul.bf16.gmra.mxu0 %v1549
      %v1612 = vpop.f32.mrf.mxu0
      %v1613 = vpop.f32.mrf.mxu0
      %v1614 = vadd.f32 %v1450, %v1613
      %1615 = vmatmul.bf16.gmra.mxu0 %v1551
      %v1616 = vpop.f32.mrf.mxu0
      %v1617 = vadd.f32 %v1453, %v1616
      %v1618 = vpop.f32.mrf.mxu0
      %1619 = vmatmul.bf16.gmra.mxu0 %v1553
      %v1620 = vpop.f32.mrf.mxu0
      %v1621 = vadd.f32 %v1457, %v1620
      %v1622 = vpop.f32.mrf.mxu0
      %v1623 = vadd.f32 %v1459, %v1622
      %1624 = vmatmul.bf16.gmra.mxu0 %v1555
      %v1625 = vpop.f32.mrf.mxu0
      %v1626 = vpop.f32.mrf.mxu0
      %v1627 = vadd.f32 %v1463, %v1626
      %1628 = vmatmul.bf16.gmra.mxu0 %v1557
      %v1629 = vpop.f32.mrf.mxu0
      %v1630 = vadd.f32 %v1466, %v1629
      %v1631 = vpop.f32.mrf.mxu0
      %1632 = vmatmul.bf16.gmra.mxu0 %v1559
      %v1633 = vpop.f32.mrf.mxu0
      %v1634 = vadd.f32 %v1470, %v1633
      %v1635 = vpop.f32.mrf.mxu0
      %v1636 = vadd.f32 %v1472, %v1635
      %1637 = vmatmul.bf16.gmra.mxu0 %v1561
      %v1638 = vpop.f32.mrf.mxu0
      %v1639 = vpop.f32.mrf.mxu0
      %v1640 = vadd.f32 %v1476, %v1639
      %1641 = vmatmul.bf16.gmra.mxu0 %v1563
      %v1642 = vpop.f32.mrf.mxu0
      %v1643 = vadd.f32 %v1479, %v1642
      %v1644 = vpop.f32.mrf.mxu0
      %1645 = vmatmul.bf16.gmra.mxu0 %v1565
      %v1646 = vpop.f32.mrf.mxu0
      %v1647 = vadd.f32 %v1483, %v1646
      %v1648 = vpop.f32.mrf.mxu0
      %v1649 = vadd.f32 %v1485, %v1648
      %1650 = vmatmul.bf16.gmra.mxu0 %v1567
      %v1651 = vpop.f32.mrf.mxu0
      %v1652 = vpop.f32.mrf.mxu0
      %v1653 = vadd.f32 %v1489, %v1652
      %1654 = vmatmul.bf16.gmra.mxu0 %v1569
      %v1655 = vpop.f32.mrf.mxu0
      %v1656 = vadd.f32 %v1492, %v1655
      %v1657 = vpop.f32.mrf.mxu0
      %1658 = vmatmul.bf16.gmra.mxu0 %v1571
      %v1659 = vpop.f32.mrf.mxu0
      %v1660 = vadd.f32 %v1496, %v1659
      %v1661 = vpop.f32.mrf.mxu0
      %v1662 = vadd.f32 %v1498, %v1661
      %1663 = vmatmul.bf16.gmra.mxu0 %v1573
      %v1664 = vpop.f32.mrf.mxu0
      %v1665 = vpop.f32.mrf.mxu0
      %v1666 = vadd.f32 %v1502, %v1665
      %1667 = vmatmul.bf16.gmra.mxu0 %v1575
      %v1668 = vpop.f32.mrf.mxu0
      %v1669 = vadd.f32 %v1505, %v1668
      %v1670 = vpop.f32.mrf.mxu0
      %1671 = vmatmul.bf16.gmra.mxu0 %v1577
      %v1672 = vpop.f32.mrf.mxu0
      %v1673 = vadd.f32 %v1509, %v1672
      %v1674 = vpop.f32.mrf.mxu0
      %v1675 = vadd.f32 %v1511, %v1674
      %1676 = vmatmul.bf16.gmra.mxu0 %v1579
      %v1677 = vpop.f32.mrf.mxu0
      %v1678 = vpop.f32.mrf.mxu0
      %v1679 = vadd.f32 %v1515, %v1678
      %1680 = vmatmul.bf16.gmra.mxu0 %v1581
      %v1681 = vpop.f32.mrf.mxu0
      %v1682 = vadd.f32 %v1518, %v1681
      %v1683 = vpop.f32.mrf.mxu0
      %1684 = vmatmul.bf16.gmra.mxu0 %v1583
      %v1685 = vpop.f32.mrf.mxu0
      %v1686 = vadd.f32 %v1522, %v1685
      %v1687 = vpop.f32.mrf.mxu0
      %v1688 = vadd.f32 %v1524, %v1687
      %1689 = vmatmul.bf16.gmra.mxu0 %v1585
      %v1690 = vpop.f32.mrf.mxu0
      %v1691 = vpop.f32.mrf.mxu0
      %v1692 = vadd.f32 %v1528, %v1691
      %1693 = vmatmul.bf16.gmra.mxu0 %v1587
      %v1694 = vpop.f32.mrf.mxu0
      %v1695 = vadd.f32 %v1531, %v1694
      %v1696 = vpop.f32.mrf.mxu0
      %1697 = vmatmul.bf16.gmra.mxu0 %v1589
      %v1698 = vpop.f32.mrf.mxu0
      %v1699 = vadd.f32 %v1535, %v1698
      %v1700 = vpop.f32.mrf.mxu0
      %v1701 = vadd.f32 %v1537, %v1700
      %1702 = vmatmul.bf16.gmra.mxu0 %v1591
      %v1703 = vpop.f32.mrf.mxu0
      %v1704 = vpop.f32.mrf.mxu0
      %v1705 = vadd.f32 %v1541, %v1704
      %1706 = vmatmul.bf16.gmra.mxu0 %v1593
      %v1707 = vpop.f32.mrf.mxu0
      %v1708 = vadd.f32 %v1544, %v1707
      %v1709 = vpop.f32.mrf.mxu0
      %1710 = vdwg.mxu0
      %s1711 = scalar_lea.vmem %s5, 4
      %v1712 = vld [vmem:[%s1711] sm:$0x3]
      %vm1738 = vcmask 1046528
      %v1739 = vrot.slane %v1133, 1
      %v1740 = vrot.slane %v1134, 1
      %v1741 = vsel %vm1738, %v1739, %v1740
      %v1742 = vrot.slane %v1135, 1
      %v1743 = vsel %vm1738, %v1740, %v1742
      %v1744 = vrot.slane %v1136, 1
      %v1745 = vsel %vm1738, %v1742, %v1744
      %v1746 = vrot.slane %v1137, 1
      %v1747 = vsel %vm1738, %v1744, %v1746
      %v1748 = vrot.slane %v1138, 1
      %v1749 = vsel %vm1738, %v1746, %v1748
      %v1750 = vrot.slane %v1139, 1
      %v1751 = vsel %vm1738, %v1748, %v1750
      %v1752 = vrot.slane %v1140, 1
      %v1753 = vsel %vm1738, %v1750, %v1752
      %v1754 = vrot.slane %v1141, 1
      %v1755 = vsel %vm1738, %v1752, %v1754
      %v1756 = vrot.slane %v1142, 1
      %v1757 = vsel %vm1738, %v1754, %v1756
      %v1758 = vrot.slane %v1143, 1
      %v1759 = vsel %vm1738, %v1756, %v1758
      %v1760 = vrot.slane %v1144, 1
      %v1761 = vsel %vm1738, %v1758, %v1760
      %v1762 = vrot.slane %v1145, 1
      %v1763 = vsel %vm1738, %v1760, %v1762
      %v1764 = vrot.slane %v1146, 1
      %v1765 = vsel %vm1738, %v1762, %v1764
      %v1766 = vrot.slane %v1147, 1
      %v1767 = vsel %vm1738, %v1764, %v1766
      %v1768 = vrot.slane %v1148, 1
      %v1769 = vsel %vm1738, %v1766, %v1768
      %v1770 = vrot.slane %v1149, 1
      %v1771 = vsel %vm1738, %v1768, %v1770
      %v1772 = vrot.slane %v1150, 1
      %v1773 = vsel %vm1738, %v1770, %v1772
      %v1774 = vrot.slane %v1151, 1
      %v1775 = vsel %vm1738, %v1772, %v1774
      %v1776 = vrot.slane %v1152, 1
      %v1777 = vsel %vm1738, %v1774, %v1776
      %v1778 = vrot.slane %v1153, 1
      %v1779 = vsel %vm1738, %v1776, %v1778
      %v1780 = vrot.slane %v1154, 1
      %v1781 = vsel %vm1738, %v1778, %v1780
      %v1782 = vrot.slane %v1155, 1
      %v1783 = vsel %vm1738, %v1780, %v1782
      %v1784 = vrot.slane %v1156, 1
      %v1785 = vsel %vm1738, %v1782, %v1784
      %v1786 = vrot.slane %v1158, 1
      %v1787 = vsel %vm1738, %v1784, %v1786
      %v1789 = vsel %vm354, %v1741, 0
      %v1792 = vsel %vm354, %v1743, 0
      %v1795 = vsel %vm354, %v1745, 0
      %v1798 = vsel %vm354, %v1747, 0
      %v1801 = vsel %vm354, %v1749, 0
      %v1804 = vsel %vm354, %v1751, 0
      %v1807 = vsel %vm354, %v1753, 0
      %v1810 = vsel %vm354, %v1755, 0
      %v1813 = vsel %vm354, %v1757, 0
      %v1816 = vsel %vm354, %v1759, 0
      %v1819 = vsel %vm354, %v1761, 0
      %v1822 = vsel %vm354, %v1763, 0
      %v1825 = vsel %vm354, %v1765, 0
      %v1828 = vsel %vm354, %v1767, 0
      %v1831 = vsel %vm354, %v1769, 0
      %v1834 = vsel %vm354, %v1771, 0
      %v1837 = vsel %vm354, %v1773, 0
      %v1840 = vsel %vm354, %v1775, 0
      %v1843 = vsel %vm354, %v1777, 0
      %v1846 = vsel %vm354, %v1779, 0
      %v1849 = vsel %vm354, %v1781, 0
      %v1852 = vsel %vm354, %v1783, 0
      %v1855 = vsel %vm354, %v1785, 0
      %v1858 = vsel %vm354, %v1787, 0
      %v1861 = vsel %vm1430, %v1712, 0
      %1863 = vmatpush.bf16.msra.mxu0 0
      %1864 = vmatpush.bf16.msra.mxu0 0
      %1865 = vmatpush.bf16.msra.mxu0 0
      %1866 = vmatpush.bf16.msra.mxu0 0
      %1867 = vmatpush.bf16.msra.mxu0 0
      %1868 = vmatpush.bf16.msra.mxu0 0
      %1869 = vmatpush.bf16.msra.mxu0 0
      %1870 = vmatpush.bf16.msra.mxu0 %v1861
      %1871 = vmatmul.bf16.gmra.mxu0 %v1789
      %v1872 = vpop.f32.mrf.mxu0
      %v1873 = vadd.f32 0.0, %v1872
      %v1874 = vpop.f32.mrf.mxu0
      %v1875 = vadd.f32 0.0, %v1874
      %1876 = vmatmul.bf16.gmra.mxu0 %v1792
      %v1877 = vpop.f32.mrf.mxu0
      %v1878 = vpop.f32.mrf.mxu0
      %v1879 = vadd.f32 0.0, %v1878
      %1880 = vmatmul.bf16.gmra.mxu0 %v1795
      %v1881 = vpop.f32.mrf.mxu0
      %v1882 = vadd.f32 0.0, %v1881
      %v1883 = vpop.f32.mrf.mxu0
      %1884 = vmatmul.bf16.gmra.mxu0 %v1798
      %v1885 = vpop.f32.mrf.mxu0
      %v1886 = vadd.f32 0.0, %v1885
      %v1887 = vpop.f32.mrf.mxu0
      %v1888 = vadd.f32 0.0, %v1887
      %1889 = vmatmul.bf16.gmra.mxu0 %v1801
      %v1890 = vpop.f32.mrf.mxu0
      %v1891 = vpop.f32.mrf.mxu0
      %v1892 = vadd.f32 0.0, %v1891
      %1893 = vmatmul.bf16.gmra.mxu0 %v1804
      %v1894 = vpop.f32.mrf.mxu0
      %v1895 = vadd.f32 0.0, %v1894
      %v1896 = vpop.f32.mrf.mxu0
      %1897 = vmatmul.bf16.gmra.mxu0 %v1807
      %v1898 = vpop.f32.mrf.mxu0
      %v1899 = vadd.f32 0.0, %v1898
      %v1900 = vpop.f32.mrf.mxu0
      %v1901 = vadd.f32 0.0, %v1900
      %1902 = vmatmul.bf16.gmra.mxu0 %v1810
      %v1903 = vpop.f32.mrf.mxu0
      %v1904 = vpop.f32.mrf.mxu0
      %v1905 = vadd.f32 0.0, %v1904
      %1906 = vmatmul.bf16.gmra.mxu0 %v1813
      %v1907 = vpop.f32.mrf.mxu0
      %v1908 = vadd.f32 0.0, %v1907
      %v1909 = vpop.f32.mrf.mxu0
      %1910 = vmatmul.bf16.gmra.mxu0 %v1816
      %v1911 = vpop.f32.mrf.mxu0
      %v1912 = vadd.f32 0.0, %v1911
      %v1913 = vpop.f32.mrf.mxu0
      %v1914 = vadd.f32 0.0, %v1913
      %1915 = vmatmul.bf16.gmra.mxu0 %v1819
      %v1916 = vpop.f32.mrf.mxu0
      %v1917 = vpop.f32.mrf.mxu0
      %v1918 = vadd.f32 0.0, %v1917
      %1919 = vmatmul.bf16.gmra.mxu0 %v1822
      %v1920 = vpop.f32.mrf.mxu0
      %v1921 = vadd.f32 0.0, %v1920
      %v1922 = vpop.f32.mrf.mxu0
      %1923 = vmatmul.bf16.gmra.mxu0 %v1825
      %v1924 = vpop.f32.mrf.mxu0
      %v1925 = vadd.f32 0.0, %v1924
      %v1926 = vpop.f32.mrf.mxu0
      %v1927 = vadd.f32 0.0, %v1926
      %1928 = vmatmul.bf16.gmra.mxu0 %v1828
      %v1929 = vpop.f32.mrf.mxu0
      %v1930 = vpop.f32.mrf.mxu0
      %v1931 = vadd.f32 0.0, %v1930
      %1932 = vmatmul.bf16.gmra.mxu0 %v1831
      %v1933 = vpop.f32.mrf.mxu0
      %v1934 = vadd.f32 0.0, %v1933
      %v1935 = vpop.f32.mrf.mxu0
      %1936 = vmatmul.bf16.gmra.mxu0 %v1834
      %v1937 = vpop.f32.mrf.mxu0
      %v1938 = vadd.f32 0.0, %v1937
      %v1939 = vpop.f32.mrf.mxu0
      %v1940 = vadd.f32 0.0, %v1939
      %1941 = vmatmul.bf16.gmra.mxu0 %v1837
      %v1942 = vpop.f32.mrf.mxu0
      %v1943 = vpop.f32.mrf.mxu0
      %v1944 = vadd.f32 0.0, %v1943
      %1945 = vmatmul.bf16.gmra.mxu0 %v1840
      %v1946 = vpop.f32.mrf.mxu0
      %v1947 = vadd.f32 0.0, %v1946
      %v1948 = vpop.f32.mrf.mxu0
      %1949 = vmatmul.bf16.gmra.mxu0 %v1843
      %v1950 = vpop.f32.mrf.mxu0
      %v1951 = vadd.f32 0.0, %v1950
      %v1952 = vpop.f32.mrf.mxu0
      %v1953 = vadd.f32 0.0, %v1952
      %1954 = vmatmul.bf16.gmra.mxu0 %v1846
      %v1955 = vpop.f32.mrf.mxu0
      %v1956 = vpop.f32.mrf.mxu0
      %v1957 = vadd.f32 0.0, %v1956
      %1958 = vmatmul.bf16.gmra.mxu0 %v1849
      %v1959 = vpop.f32.mrf.mxu0
      %v1960 = vadd.f32 0.0, %v1959
      %v1961 = vpop.f32.mrf.mxu0
      %1962 = vmatmul.bf16.gmra.mxu0 %v1852
      %v1963 = vpop.f32.mrf.mxu0
      %v1964 = vadd.f32 0.0, %v1963
      %v1965 = vpop.f32.mrf.mxu0
      %v1966 = vadd.f32 0.0, %v1965
      %1967 = vmatmul.bf16.gmra.mxu0 %v1855
      %v1968 = vpop.f32.mrf.mxu0
      %v1969 = vpop.f32.mrf.mxu0
      %v1970 = vadd.f32 0.0, %v1969
      %1971 = vmatmul.bf16.gmra.mxu0 %v1858
      %v1972 = vpop.f32.mrf.mxu0
      %v1973 = vadd.f32 0.0, %v1972
      %v1974 = vpop.f32.mrf.mxu0
      %1975 = vdwg.mxu0
      %v1976 = vadd.f32 %v1608, %v1873
      %v1977 = vadd.f32 %v1610, %v1875
      %v1978 = vadd.f32 %v1614, %v1879
      %v1979 = vadd.f32 %v1617, %v1882
      %v1980 = vadd.f32 %v1621, %v1886
      %v1981 = vadd.f32 %v1623, %v1888
      %v1982 = vadd.f32 %v1627, %v1892
      %v1983 = vadd.f32 %v1630, %v1895
      %v1984 = vadd.f32 %v1634, %v1899
      %v1985 = vadd.f32 %v1636, %v1901
      %v1986 = vadd.f32 %v1640, %v1905
      %v1987 = vadd.f32 %v1643, %v1908
      %v1988 = vadd.f32 %v1647, %v1912
      %v1989 = vadd.f32 %v1649, %v1914
      %v1990 = vadd.f32 %v1653, %v1918
      %v1991 = vadd.f32 %v1656, %v1921
      %v1992 = vadd.f32 %v1660, %v1925
      %v1993 = vadd.f32 %v1662, %v1927
      %v1994 = vadd.f32 %v1666, %v1931
      %v1995 = vadd.f32 %v1669, %v1934
      %v1996 = vadd.f32 %v1673, %v1938
      %v1997 = vadd.f32 %v1675, %v1940
      %v1998 = vadd.f32 %v1679, %v1944
      %v1999 = vadd.f32 %v1682, %v1947
      %v2000 = vadd.f32 %v1686, %v1951
      %v2001 = vadd.f32 %v1688, %v1953
      %v2002 = vadd.f32 %v1692, %v1957
      %v2003 = vadd.f32 %v1695, %v1960
      %v2004 = vadd.f32 %v1699, %v1964
      %v2005 = vadd.f32 %v1701, %v1966
      %v2006 = vadd.f32 %v1705, %v1970
      %v2007 = vadd.f32 %v1708, %v1973
      %v2008 = vpack.c.bf16 %v1082, %v1081
      %v2009 = vpack.c.bf16 %v1084, %v1083
      %v2010 = vpack.c.bf16 %v1086, %v1085
      %v2011 = vpack.c.bf16 %v1088, %v1087
      %v2012 = vpack.c.bf16 %v1090, %v1089
      %v2013 = vpack.c.bf16 %v1092, %v1091
      %v2014 = vpack.c.bf16 %v1094, %v1093
      %v2015 = vpack.c.bf16 %v1096, %v1095
      %v2016 = vpack.c.bf16 %v1098, %v1097
      %v2017 = vpack.c.bf16 %v1100, %v1099
      %v2018 = vpack.c.bf16 %v1102, %v1101
      %v2019 = vpack.c.bf16 %v1104, %v1103
      %v2020 = vpack.c.bf16 %v1106, %v1105
      %v2021 = vpack.c.bf16 %v1108, %v1107
      %v2022 = vpack.c.bf16 %v1110, %v1109
      %v2023 = vpack.c.bf16 %v1112, %v1111
      %v2024 = vpack.c.bf16 %v1114, %v1113
      %v2025 = vpack.c.bf16 %v1116, %v1115
      %v2026 = vpack.c.bf16 %v1118, %v1117
      %v2027 = vpack.c.bf16 %v1120, %v1119
      %v2028 = vpack.c.bf16 %v1122, %v1121
      %v2029 = vpack.c.bf16 %v1124, %v1123
      %v2030 = vpack.c.bf16 %v1126, %v1125
      %v2031 = vpack.c.bf16 %v1128, %v1127
      %s2032 = scalar_lea.vmem %s5, 6
      %v2033 = vld [vmem:[%s2032] sm:$0x3]
      %v2035 = vsel %vm354, %v2008, 0
      %v2038 = vsel %vm354, %v2009, 0
      %v2041 = vsel %vm354, %v2010, 0
      %v2044 = vsel %vm354, %v2011, 0
      %v2047 = vsel %vm354, %v2012, 0
      %v2050 = vsel %vm354, %v2013, 0
      %v2053 = vsel %vm354, %v2014, 0
      %v2056 = vsel %vm354, %v2015, 0
      %v2059 = vsel %vm354, %v2016, 0
      %v2062 = vsel %vm354, %v2017, 0
      %v2065 = vsel %vm354, %v2018, 0
      %v2068 = vsel %vm354, %v2019, 0
      %v2071 = vsel %vm354, %v2020, 0
      %v2074 = vsel %vm354, %v2021, 0
      %v2077 = vsel %vm354, %v2022, 0
      %v2080 = vsel %vm354, %v2023, 0
      %v2083 = vsel %vm354, %v2024, 0
      %v2086 = vsel %vm354, %v2025, 0
      %v2089 = vsel %vm354, %v2026, 0
      %v2092 = vsel %vm354, %v2027, 0
      %v2095 = vsel %vm354, %v2028, 0
      %v2098 = vsel %vm354, %v2029, 0
      %v2101 = vsel %vm354, %v2030, 0
      %v2104 = vsel %vm354, %v2031, 0
      %v2107 = vsel %vm1430, %v2033, 0
      %2109 = vmatpush.bf16.msra.mxu0 0
      %2110 = vmatpush.bf16.msra.mxu0 0
      %2111 = vmatpush.bf16.msra.mxu0 0
      %2112 = vmatpush.bf16.msra.mxu0 0
      %2113 = vmatpush.bf16.msra.mxu0 0
      %2114 = vmatpush.bf16.msra.mxu0 0
      %2115 = vmatpush.bf16.msra.mxu0 0
      %2116 = vmatpush.bf16.msra.mxu0 %v2107
      %2117 = vmatmul.bf16.gmra.mxu0 %v2035
      %v2118 = vpop.f32.mrf.mxu0
      %v2119 = vadd.f32 0.0, %v2118
      %v2120 = vpop.f32.mrf.mxu0
      %v2121 = vadd.f32 0.0, %v2120
      %2122 = vmatmul.bf16.gmra.mxu0 %v2038
      %v2123 = vpop.f32.mrf.mxu0
      %v2124 = vpop.f32.mrf.mxu0
      %v2125 = vadd.f32 0.0, %v2124
      %2126 = vmatmul.bf16.gmra.mxu0 %v2041
      %v2127 = vpop.f32.mrf.mxu0
      %v2128 = vadd.f32 0.0, %v2127
      %v2129 = vpop.f32.mrf.mxu0
      %2130 = vmatmul.bf16.gmra.mxu0 %v2044
      %v2131 = vpop.f32.mrf.mxu0
      %v2132 = vadd.f32 0.0, %v2131
      %v2133 = vpop.f32.mrf.mxu0
      %v2134 = vadd.f32 0.0, %v2133
      %2135 = vmatmul.bf16.gmra.mxu0 %v2047
      %v2136 = vpop.f32.mrf.mxu0
      %v2137 = vpop.f32.mrf.mxu0
      %v2138 = vadd.f32 0.0, %v2137
      %2139 = vmatmul.bf16.gmra.mxu0 %v2050
      %v2140 = vpop.f32.mrf.mxu0
      %v2141 = vadd.f32 0.0, %v2140
      %v2142 = vpop.f32.mrf.mxu0
      %2143 = vmatmul.bf16.gmra.mxu0 %v2053
      %v2144 = vpop.f32.mrf.mxu0
      %v2145 = vadd.f32 0.0, %v2144
      %v2146 = vpop.f32.mrf.mxu0
      %v2147 = vadd.f32 0.0, %v2146
      %2148 = vmatmul.bf16.gmra.mxu0 %v2056
      %v2149 = vpop.f32.mrf.mxu0
      %v2150 = vpop.f32.mrf.mxu0
      %v2151 = vadd.f32 0.0, %v2150
      %2152 = vmatmul.bf16.gmra.mxu0 %v2059
      %v2153 = vpop.f32.mrf.mxu0
      %v2154 = vadd.f32 0.0, %v2153
      %v2155 = vpop.f32.mrf.mxu0
      %2156 = vmatmul.bf16.gmra.mxu0 %v2062
      %v2157 = vpop.f32.mrf.mxu0
      %v2158 = vadd.f32 0.0, %v2157
      %v2159 = vpop.f32.mrf.mxu0
      %v2160 = vadd.f32 0.0, %v2159
      %2161 = vmatmul.bf16.gmra.mxu0 %v2065
      %v2162 = vpop.f32.mrf.mxu0
      %v2163 = vpop.f32.mrf.mxu0
      %v2164 = vadd.f32 0.0, %v2163
      %2165 = vmatmul.bf16.gmra.mxu0 %v2068
      %v2166 = vpop.f32.mrf.mxu0
      %v2167 = vadd.f32 0.0, %v2166
      %v2168 = vpop.f32.mrf.mxu0
      %2169 = vmatmul.bf16.gmra.mxu0 %v2071
      %v2170 = vpop.f32.mrf.mxu0
      %v2171 = vadd.f32 0.0, %v2170
      %v2172 = vpop.f32.mrf.mxu0
      %v2173 = vadd.f32 0.0, %v2172
      %2174 = vmatmul.bf16.gmra.mxu0 %v2074
      %v2175 = vpop.f32.mrf.mxu0
      %v2176 = vpop.f32.mrf.mxu0
      %v2177 = vadd.f32 0.0, %v2176
      %2178 = vmatmul.bf16.gmra.mxu0 %v2077
      %v2179 = vpop.f32.mrf.mxu0
      %v2180 = vadd.f32 0.0, %v2179
      %v2181 = vpop.f32.mrf.mxu0
      %2182 = vmatmul.bf16.gmra.mxu0 %v2080
      %v2183 = vpop.f32.mrf.mxu0
      %v2184 = vadd.f32 0.0, %v2183
      %v2185 = vpop.f32.mrf.mxu0
      %v2186 = vadd.f32 0.0, %v2185
      %2187 = vmatmul.bf16.gmra.mxu0 %v2083
      %v2188 = vpop.f32.mrf.mxu0
      %v2189 = vpop.f32.mrf.mxu0
      %v2190 = vadd.f32 0.0, %v2189
      %2191 = vmatmul.bf16.gmra.mxu0 %v2086
      %v2192 = vpop.f32.mrf.mxu0
      %v2193 = vadd.f32 0.0, %v2192
      %v2194 = vpop.f32.mrf.mxu0
      %2195 = vmatmul.bf16.gmra.mxu0 %v2089
      %v2196 = vpop.f32.mrf.mxu0
      %v2197 = vadd.f32 0.0, %v2196
      %v2198 = vpop.f32.mrf.mxu0
      %v2199 = vadd.f32 0.0, %v2198
      %2200 = vmatmul.bf16.gmra.mxu0 %v2092
      %v2201 = vpop.f32.mrf.mxu0
      %v2202 = vpop.f32.mrf.mxu0
      %v2203 = vadd.f32 0.0, %v2202
      %2204 = vmatmul.bf16.gmra.mxu0 %v2095
      %v2205 = vpop.f32.mrf.mxu0
      %v2206 = vadd.f32 0.0, %v2205
      %v2207 = vpop.f32.mrf.mxu0
      %2208 = vmatmul.bf16.gmra.mxu0 %v2098
      %v2209 = vpop.f32.mrf.mxu0
      %v2210 = vadd.f32 0.0, %v2209
      %v2211 = vpop.f32.mrf.mxu0
      %v2212 = vadd.f32 0.0, %v2211
      %2213 = vmatmul.bf16.gmra.mxu0 %v2101
      %v2214 = vpop.f32.mrf.mxu0
      %v2215 = vpop.f32.mrf.mxu0
      %v2216 = vadd.f32 0.0, %v2215
      %2217 = vmatmul.bf16.gmra.mxu0 %v2104
      %v2218 = vpop.f32.mrf.mxu0
      %v2219 = vadd.f32 0.0, %v2218
      %v2220 = vpop.f32.mrf.mxu0
      %2221 = vdwg.mxu0
      %v2222 = vadd.f32 %v1976, %v2119
      %v2223 = vadd.f32 %v1977, %v2121
      %v2224 = vadd.f32 %v1978, %v2125
      %v2225 = vadd.f32 %v1979, %v2128
      %v2226 = vadd.f32 %v1980, %v2132
      %v2227 = vadd.f32 %v1981, %v2134
      %v2228 = vadd.f32 %v1982, %v2138
      %v2229 = vadd.f32 %v1983, %v2141
      %v2230 = vadd.f32 %v1984, %v2145
      %v2231 = vadd.f32 %v1985, %v2147
      %v2232 = vadd.f32 %v1986, %v2151
      %v2233 = vadd.f32 %v1987, %v2154
      %v2234 = vadd.f32 %v1988, %v2158
      %v2235 = vadd.f32 %v1989, %v2160
      %v2236 = vadd.f32 %v1990, %v2164
      %v2237 = vadd.f32 %v1991, %v2167
      %v2238 = vadd.f32 %v1992, %v2171
      %v2239 = vadd.f32 %v1993, %v2173
      %v2240 = vadd.f32 %v1994, %v2177
      %v2241 = vadd.f32 %v1995, %v2180
      %v2242 = vadd.f32 %v1996, %v2184
      %v2243 = vadd.f32 %v1997, %v2186
      %v2244 = vadd.f32 %v1998, %v2190
      %v2245 = vadd.f32 %v1999, %v2193
      %v2246 = vadd.f32 %v2000, %v2197
      %v2247 = vadd.f32 %v2001, %v2199
      %v2248 = vadd.f32 %v2002, %v2203
      %v2249 = vadd.f32 %v2003, %v2206
      %v2250 = vadd.f32 %v2004, %v2210
      %v2251 = vadd.f32 %v2005, %v2212
      %v2252 = vadd.f32 %v2006, %v2216
      %v2253 = vadd.f32 %v2007, %v2219
      %v2254 = vpack.c.bf16 %v1129, %v1129
      %s2255 = scalar_lea.vmem %s5, 8
      %v2256 = vld [vmem:[%s2255] sm:$0x3]
      %v2257 = vshrl.u32 %v2008, 16
      %v2259 = vshll.u32 %v2008, 16
      %v2261 = vrot.slane %v2259, 1
      %v2262 = vor.u32 %v2257, %v2261
      %v2263 = vshll.u32 %v2009, 16
      %v2265 = vrot.slane %v2263, 1
      %v2266 = vsel %vm1161, %v2262, %v2265
      %v2267 = vshrl.u32 %v2009, 16
      %v2269 = vor.u32 %v2267, %v2265
      %v2270 = vshll.u32 %v2010, 16
      %v2272 = vrot.slane %v2270, 1
      %v2273 = vsel %vm1161, %v2269, %v2272
      %v2274 = vshrl.u32 %v2010, 16
      %v2276 = vor.u32 %v2274, %v2272
      %v2277 = vshll.u32 %v2011, 16
      %v2279 = vrot.slane %v2277, 1
      %v2280 = vsel %vm1161, %v2276, %v2279
      %v2281 = vshrl.u32 %v2011, 16
      %v2283 = vor.u32 %v2281, %v2279
      %v2284 = vshll.u32 %v2012, 16
      %v2286 = vrot.slane %v2284, 1
      %v2287 = vsel %vm1161, %v2283, %v2286
      %v2288 = vshrl.u32 %v2012, 16
      %v2290 = vor.u32 %v2288, %v2286
      %v2291 = vshll.u32 %v2013, 16
      %v2293 = vrot.slane %v2291, 1
      %v2294 = vsel %vm1161, %v2290, %v2293
      %v2295 = vshrl.u32 %v2013, 16
      %v2297 = vor.u32 %v2295, %v2293
      %v2298 = vshll.u32 %v2014, 16
      %v2300 = vrot.slane %v2298, 1
      %v2301 = vsel %vm1161, %v2297, %v2300
      %v2302 = vshrl.u32 %v2014, 16
      %v2304 = vor.u32 %v2302, %v2300
      %v2305 = vshll.u32 %v2015, 16
      %v2307 = vrot.slane %v2305, 1
      %v2308 = vsel %vm1161, %v2304, %v2307
      %v2309 = vshrl.u32 %v2015, 16
      %v2311 = vor.u32 %v2309, %v2307
      %v2312 = vshll.u32 %v2016, 16
      %v2314 = vrot.slane %v2312, 1
      %v2315 = vsel %vm1161, %v2311, %v2314
      %v2316 = vshrl.u32 %v2016, 16
      %v2318 = vor.u32 %v2316, %v2314
      %v2319 = vshll.u32 %v2017, 16
      %v2321 = vrot.slane %v2319, 1
      %v2322 = vsel %vm1161, %v2318, %v2321
      %v2323 = vshrl.u32 %v2017, 16
      %v2325 = vor.u32 %v2323, %v2321
      %v2326 = vshll.u32 %v2018, 16
      %v2328 = vrot.slane %v2326, 1
      %v2329 = vsel %vm1161, %v2325, %v2328
      %v2330 = vshrl.u32 %v2018, 16
      %v2332 = vor.u32 %v2330, %v2328
      %v2333 = vshll.u32 %v2019, 16
      %v2335 = vrot.slane %v2333, 1
      %v2336 = vsel %vm1161, %v2332, %v2335
      %v2337 = vshrl.u32 %v2019, 16
      %v2339 = vor.u32 %v2337, %v2335
      %v2340 = vshll.u32 %v2020, 16
      %v2342 = vrot.slane %v2340, 1
      %v2343 = vsel %vm1161, %v2339, %v2342
      %v2344 = vshrl.u32 %v2020, 16
      %v2346 = vor.u32 %v2344, %v2342
      %v2347 = vshll.u32 %v2021, 16
      %v2349 = vrot.slane %v2347, 1
      %v2350 = vsel %vm1161, %v2346, %v2349
      %v2351 = vshrl.u32 %v2021, 16
      %v2353 = vor.u32 %v2351, %v2349
      %v2354 = vshll.u32 %v2022, 16
      %v2356 = vrot.slane %v2354, 1
      %v2357 = vsel %vm1161, %v2353, %v2356
      %v2358 = vshrl.u32 %v2022, 16
      %v2360 = vor.u32 %v2358, %v2356
      %v2361 = vshll.u32 %v2023, 16
      %v2363 = vrot.slane %v2361, 1
      %v2364 = vsel %vm1161, %v2360, %v2363
      %v2365 = vshrl.u32 %v2023, 16
      %v2367 = vor.u32 %v2365, %v2363
      %v2368 = vshll.u32 %v2024, 16
      %v2370 = vrot.slane %v2368, 1
      %v2371 = vsel %vm1161, %v2367, %v2370
      %v2372 = vshrl.u32 %v2024, 16
      %v2374 = vor.u32 %v2372, %v2370
      %v2375 = vshll.u32 %v2025, 16
      %v2377 = vrot.slane %v2375, 1
      %v2378 = vsel %vm1161, %v2374, %v2377
      %v2379 = vshrl.u32 %v2025, 16
      %v2381 = vor.u32 %v2379, %v2377
      %v2382 = vshll.u32 %v2026, 16
      %v2384 = vrot.slane %v2382, 1
      %v2385 = vsel %vm1161, %v2381, %v2384
      %v2386 = vshrl.u32 %v2026, 16
      %v2388 = vor.u32 %v2386, %v2384
      %v2389 = vshll.u32 %v2027, 16
      %v2391 = vrot.slane %v2389, 1
      %v2392 = vsel %vm1161, %v2388, %v2391
      %v2393 = vshrl.u32 %v2027, 16
      %v2395 = vor.u32 %v2393, %v2391
      %v2396 = vshll.u32 %v2028, 16
      %v2398 = vrot.slane %v2396, 1
      %v2399 = vsel %vm1161, %v2395, %v2398
      %v2400 = vshrl.u32 %v2028, 16
      %v2402 = vor.u32 %v2400, %v2398
      %v2403 = vshll.u32 %v2029, 16
      %v2405 = vrot.slane %v2403, 1
      %v2406 = vsel %vm1161, %v2402, %v2405
      %v2407 = vshrl.u32 %v2029, 16
      %v2409 = vor.u32 %v2407, %v2405
      %v2410 = vshll.u32 %v2030, 16
      %v2412 = vrot.slane %v2410, 1
      %v2413 = vsel %vm1161, %v2409, %v2412
      %v2414 = vshrl.u32 %v2030, 16
      %v2416 = vor.u32 %v2414, %v2412
      %v2417 = vshll.u32 %v2031, 16
      %v2419 = vrot.slane %v2417, 1
      %v2420 = vsel %vm1161, %v2416, %v2419
      %v2421 = vshrl.u32 %v2031, 16
      %v2423 = vor.u32 %v2421, %v2419
      %v2425 = vshll.u32 %v2254, 16
      %v2427 = vrot.slane %v2425, 1
      %v2428 = vsel %vm1161, %v2423, %v2427
      %v2430 = vsel %vm354, %v2266, 0
      %v2433 = vsel %vm354, %v2273, 0
      %v2436 = vsel %vm354, %v2280, 0
      %v2439 = vsel %vm354, %v2287, 0
      %v2442 = vsel %vm354, %v2294, 0
      %v2445 = vsel %vm354, %v2301, 0
      %v2448 = vsel %vm354, %v2308, 0
      %v2451 = vsel %vm354, %v2315, 0
      %v2454 = vsel %vm354, %v2322, 0
      %v2457 = vsel %vm354, %v2329, 0
      %v2460 = vsel %vm354, %v2336, 0
      %v2463 = vsel %vm354, %v2343, 0
      %v2466 = vsel %vm354, %v2350, 0
      %v2469 = vsel %vm354, %v2357, 0
      %v2472 = vsel %vm354, %v2364, 0
      %v2475 = vsel %vm354, %v2371, 0
      %v2478 = vsel %vm354, %v2378, 0
      %v2481 = vsel %vm354, %v2385, 0
      %v2484 = vsel %vm354, %v2392, 0
      %v2487 = vsel %vm354, %v2399, 0
      %v2490 = vsel %vm354, %v2406, 0
      %v2493 = vsel %vm354, %v2413, 0
      %v2496 = vsel %vm354, %v2420, 0
      %v2499 = vsel %vm354, %v2428, 0
      %v2502 = vsel %vm1430, %v2256, 0
      %2504 = vmatpush.bf16.msra.mxu0 0
      %2505 = vmatpush.bf16.msra.mxu0 0
      %2506 = vmatpush.bf16.msra.mxu0 0
      %2507 = vmatpush.bf16.msra.mxu0 0
      %2508 = vmatpush.bf16.msra.mxu0 0
      %2509 = vmatpush.bf16.msra.mxu0 0
      %2510 = vmatpush.bf16.msra.mxu0 0
      %2511 = vmatpush.bf16.msra.mxu0 %v2502
      %2512 = vmatmul.bf16.gmra.mxu0 %v2430
      %v2513 = vpop.f32.mrf.mxu0
      %v2514 = vadd.f32 0.0, %v2513
      %v2515 = vpop.f32.mrf.mxu0
      %v2516 = vadd.f32 0.0, %v2515
      %2517 = vmatmul.bf16.gmra.mxu0 %v2433
      %v2518 = vpop.f32.mrf.mxu0
      %v2519 = vpop.f32.mrf.mxu0
      %v2520 = vadd.f32 0.0, %v2519
      %2521 = vmatmul.bf16.gmra.mxu0 %v2436
      %v2522 = vpop.f32.mrf.mxu0
      %v2523 = vadd.f32 0.0, %v2522
      %v2524 = vpop.f32.mrf.mxu0
      %2525 = vmatmul.bf16.gmra.mxu0 %v2439
      %v2526 = vpop.f32.mrf.mxu0
      %v2527 = vadd.f32 0.0, %v2526
      %v2528 = vpop.f32.mrf.mxu0
      %v2529 = vadd.f32 0.0, %v2528
      %2530 = vmatmul.bf16.gmra.mxu0 %v2442
      %v2531 = vpop.f32.mrf.mxu0
      %v2532 = vpop.f32.mrf.mxu0
      %v2533 = vadd.f32 0.0, %v2532
      %2534 = vmatmul.bf16.gmra.mxu0 %v2445
      %v2535 = vpop.f32.mrf.mxu0
      %v2536 = vadd.f32 0.0, %v2535
      %v2537 = vpop.f32.mrf.mxu0
      %2538 = vmatmul.bf16.gmra.mxu0 %v2448
      %v2539 = vpop.f32.mrf.mxu0
      %v2540 = vadd.f32 0.0, %v2539
      %v2541 = vpop.f32.mrf.mxu0
      %v2542 = vadd.f32 0.0, %v2541
      %2543 = vmatmul.bf16.gmra.mxu0 %v2451
      %v2544 = vpop.f32.mrf.mxu0
      %v2545 = vpop.f32.mrf.mxu0
      %v2546 = vadd.f32 0.0, %v2545
      %2547 = vmatmul.bf16.gmra.mxu0 %v2454
      %v2548 = vpop.f32.mrf.mxu0
      %v2549 = vadd.f32 0.0, %v2548
      %v2550 = vpop.f32.mrf.mxu0
      %2551 = vmatmul.bf16.gmra.mxu0 %v2457
      %v2552 = vpop.f32.mrf.mxu0
      %v2553 = vadd.f32 0.0, %v2552
      %v2554 = vpop.f32.mrf.mxu0
      %v2555 = vadd.f32 0.0, %v2554
      %2556 = vmatmul.bf16.gmra.mxu0 %v2460
      %v2557 = vpop.f32.mrf.mxu0
      %v2558 = vpop.f32.mrf.mxu0
      %v2559 = vadd.f32 0.0, %v2558
      %2560 = vmatmul.bf16.gmra.mxu0 %v2463
      %v2561 = vpop.f32.mrf.mxu0
      %v2562 = vadd.f32 0.0, %v2561
      %v2563 = vpop.f32.mrf.mxu0
      %2564 = vmatmul.bf16.gmra.mxu0 %v2466
      %v2565 = vpop.f32.mrf.mxu0
      %v2566 = vadd.f32 0.0, %v2565
      %v2567 = vpop.f32.mrf.mxu0
      %v2568 = vadd.f32 0.0, %v2567
      %2569 = vmatmul.bf16.gmra.mxu0 %v2469
      %v2570 = vpop.f32.mrf.mxu0
      %v2571 = vpop.f32.mrf.mxu0
      %v2572 = vadd.f32 0.0, %v2571
      %2573 = vmatmul.bf16.gmra.mxu0 %v2472
      %v2574 = vpop.f32.mrf.mxu0
      %v2575 = vadd.f32 0.0, %v2574
      %v2576 = vpop.f32.mrf.mxu0
      %2577 = vmatmul.bf16.gmra.mxu0 %v2475
      %v2578 = vpop.f32.mrf.mxu0
      %v2579 = vadd.f32 0.0, %v2578
      %v2580 = vpop.f32.mrf.mxu0
      %v2581 = vadd.f32 0.0, %v2580
      %2582 = vmatmul.bf16.gmra.mxu0 %v2478
      %v2583 = vpop.f32.mrf.mxu0
      %v2584 = vpop.f32.mrf.mxu0
      %v2585 = vadd.f32 0.0, %v2584
      %2586 = vmatmul.bf16.gmra.mxu0 %v2481
      %v2587 = vpop.f32.mrf.mxu0
      %v2588 = vadd.f32 0.0, %v2587
      %v2589 = vpop.f32.mrf.mxu0
      %2590 = vmatmul.bf16.gmra.mxu0 %v2484
      %v2591 = vpop.f32.mrf.mxu0
      %v2592 = vadd.f32 0.0, %v2591
      %v2593 = vpop.f32.mrf.mxu0
      %v2594 = vadd.f32 0.0, %v2593
      %2595 = vmatmul.bf16.gmra.mxu0 %v2487
      %v2596 = vpop.f32.mrf.mxu0
      %v2597 = vpop.f32.mrf.mxu0
      %v2598 = vadd.f32 0.0, %v2597
      %2599 = vmatmul.bf16.gmra.mxu0 %v2490
      %v2600 = vpop.f32.mrf.mxu0
      %v2601 = vadd.f32 0.0, %v2600
      %v2602 = vpop.f32.mrf.mxu0
      %2603 = vmatmul.bf16.gmra.mxu0 %v2493
      %v2604 = vpop.f32.mrf.mxu0
      %v2605 = vadd.f32 0.0, %v2604
      %v2606 = vpop.f32.mrf.mxu0
      %v2607 = vadd.f32 0.0, %v2606
      %2608 = vmatmul.bf16.gmra.mxu0 %v2496
      %v2609 = vpop.f32.mrf.mxu0
      %v2610 = vpop.f32.mrf.mxu0
      %v2611 = vadd.f32 0.0, %v2610
      %2612 = vmatmul.bf16.gmra.mxu0 %v2499
      %v2613 = vpop.f32.mrf.mxu0
      %v2614 = vadd.f32 0.0, %v2613
      %v2615 = vpop.f32.mrf.mxu0
      %2616 = vdwg.mxu0
      %v2617 = vadd.f32 %v2222, %v2514
      %v2618 = vadd.f32 %v2223, %v2516
      %v2619 = vadd.f32 %v2224, %v2520
      %v2620 = vadd.f32 %v2225, %v2523
      %v2621 = vadd.f32 %v2226, %v2527
      %v2622 = vadd.f32 %v2227, %v2529
      %v2623 = vadd.f32 %v2228, %v2533
      %v2624 = vadd.f32 %v2229, %v2536
      %v2625 = vadd.f32 %v2230, %v2540
      %v2626 = vadd.f32 %v2231, %v2542
      %v2627 = vadd.f32 %v2232, %v2546
      %v2628 = vadd.f32 %v2233, %v2549
      %v2629 = vadd.f32 %v2234, %v2553
      %v2630 = vadd.f32 %v2235, %v2555
      %v2631 = vadd.f32 %v2236, %v2559
      %v2632 = vadd.f32 %v2237, %v2562
      %v2633 = vadd.f32 %v2238, %v2566
      %v2634 = vadd.f32 %v2239, %v2568
      %v2635 = vadd.f32 %v2240, %v2572
      %v2636 = vadd.f32 %v2241, %v2575
      %v2637 = vadd.f32 %v2242, %v2579
      %v2638 = vadd.f32 %v2243, %v2581
      %v2639 = vadd.f32 %v2244, %v2585
      %v2640 = vadd.f32 %v2245, %v2588
      %v2641 = vadd.f32 %v2246, %v2592
      %v2642 = vadd.f32 %v2247, %v2594
      %v2643 = vadd.f32 %v2248, %v2598
      %v2644 = vadd.f32 %v2249, %v2601
      %v2645 = vadd.f32 %v2250, %v2605
      %v2646 = vadd.f32 %v2251, %v2607
      %v2647 = vadd.f32 %v2252, %v2611
      %v2648 = vadd.f32 %v2253, %v2614
      %s2649 = scalar_lea.vmem %s5, 10
      %v2650 = vld [vmem:[%s2649] sm:$0x3]
      %v2676 = vrot.slane %v2008, 1
      %v2677 = vrot.slane %v2009, 1
      %v2678 = vsel %vm1738, %v2676, %v2677
      %v2679 = vrot.slane %v2010, 1
      %v2680 = vsel %vm1738, %v2677, %v2679
      %v2681 = vrot.slane %v2011, 1
      %v2682 = vsel %vm1738, %v2679, %v2681
      %v2683 = vrot.slane %v2012, 1
      %v2684 = vsel %vm1738, %v2681, %v2683
      %v2685 = vrot.slane %v2013, 1
      %v2686 = vsel %vm1738, %v2683, %v2685
      %v2687 = vrot.slane %v2014, 1
      %v2688 = vsel %vm1738, %v2685, %v2687
      %v2689 = vrot.slane %v2015, 1
      %v2690 = vsel %vm1738, %v2687, %v2689
      %v2691 = vrot.slane %v2016, 1
      %v2692 = vsel %vm1738, %v2689, %v2691
      %v2693 = vrot.slane %v2017, 1
      %v2694 = vsel %vm1738, %v2691, %v2693
      %v2695 = vrot.slane %v2018, 1
      %v2696 = vsel %vm1738, %v2693, %v2695
      %v2697 = vrot.slane %v2019, 1
      %v2698 = vsel %vm1738, %v2695, %v2697
      %v2699 = vrot.slane %v2020, 1
      %v2700 = vsel %vm1738, %v2697, %v2699
      %v2701 = vrot.slane %v2021, 1
      %v2702 = vsel %vm1738, %v2699, %v2701
      %v2703 = vrot.slane %v2022, 1
      %v2704 = vsel %vm1738, %v2701, %v2703
      %v2705 = vrot.slane %v2023, 1
      %v2706 = vsel %vm1738, %v2703, %v2705
      %v2707 = vrot.slane %v2024, 1
      %v2708 = vsel %vm1738, %v2705, %v2707
      %v2709 = vrot.slane %v2025, 1
      %v2710 = vsel %vm1738, %v2707, %v2709
      %v2711 = vrot.slane %v2026, 1
      %v2712 = vsel %vm1738, %v2709, %v2711
      %v2713 = vrot.slane %v2027, 1
      %v2714 = vsel %vm1738, %v2711, %v2713
      %v2715 = vrot.slane %v2028, 1
      %v2716 = vsel %vm1738, %v2713, %v2715
      %v2717 = vrot.slane %v2029, 1
      %v2718 = vsel %vm1738, %v2715, %v2717
      %v2719 = vrot.slane %v2030, 1
      %v2720 = vsel %vm1738, %v2717, %v2719
      %v2721 = vrot.slane %v2031, 1
      %v2722 = vsel %vm1738, %v2719, %v2721
      %v2723 = vrot.slane %v2254, 1
      %v2724 = vsel %vm1738, %v2721, %v2723
      %v2726 = vsel %vm354, %v2678, 0
      %v2729 = vsel %vm354, %v2680, 0
      %v2732 = vsel %vm354, %v2682, 0
      %v2735 = vsel %vm354, %v2684, 0
      %v2738 = vsel %vm354, %v2686, 0
      %v2741 = vsel %vm354, %v2688, 0
      %v2744 = vsel %vm354, %v2690, 0
      %v2747 = vsel %vm354, %v2692, 0
      %v2750 = vsel %vm354, %v2694, 0
      %v2753 = vsel %vm354, %v2696, 0
      %v2756 = vsel %vm354, %v2698, 0
      %v2759 = vsel %vm354, %v2700, 0
      %v2762 = vsel %vm354, %v2702, 0
      %v2765 = vsel %vm354, %v2704, 0
      %v2768 = vsel %vm354, %v2706, 0
      %v2771 = vsel %vm354, %v2708, 0
      %v2774 = vsel %vm354, %v2710, 0
      %v2777 = vsel %vm354, %v2712, 0
      %v2780 = vsel %vm354, %v2714, 0
      %v2783 = vsel %vm354, %v2716, 0
      %v2786 = vsel %vm354, %v2718, 0
      %v2789 = vsel %vm354, %v2720, 0
      %v2792 = vsel %vm354, %v2722, 0
      %v2795 = vsel %vm354, %v2724, 0
      %v2798 = vsel %vm1430, %v2650, 0
      %2800 = vmatpush.bf16.msra.mxu0 0
      %2801 = vmatpush.bf16.msra.mxu0 0
      %2802 = vmatpush.bf16.msra.mxu0 0
      %2803 = vmatpush.bf16.msra.mxu0 0
      %2804 = vmatpush.bf16.msra.mxu0 0
      %2805 = vmatpush.bf16.msra.mxu0 0
      %2806 = vmatpush.bf16.msra.mxu0 0
      %2807 = vmatpush.bf16.msra.mxu0 %v2798
      %2808 = vmatmul.bf16.gmra.mxu0 %v2726
      %v2809 = vpop.f32.mrf.mxu0
      %v2810 = vadd.f32 0.0, %v2809
      %v2811 = vpop.f32.mrf.mxu0
      %v2812 = vadd.f32 0.0, %v2811
      %2813 = vmatmul.bf16.gmra.mxu0 %v2729
      %v2814 = vpop.f32.mrf.mxu0
      %v2815 = vpop.f32.mrf.mxu0
      %v2816 = vadd.f32 0.0, %v2815
      %2817 = vmatmul.bf16.gmra.mxu0 %v2732
      %v2818 = vpop.f32.mrf.mxu0
      %v2819 = vadd.f32 0.0, %v2818
      %v2820 = vpop.f32.mrf.mxu0
      %2821 = vmatmul.bf16.gmra.mxu0 %v2735
      %v2822 = vpop.f32.mrf.mxu0
      %v2823 = vadd.f32 0.0, %v2822
      %v2824 = vpop.f32.mrf.mxu0
      %v2825 = vadd.f32 0.0, %v2824
      %2826 = vmatmul.bf16.gmra.mxu0 %v2738
      %v2827 = vpop.f32.mrf.mxu0
      %v2828 = vpop.f32.mrf.mxu0
      %v2829 = vadd.f32 0.0, %v2828
      %2830 = vmatmul.bf16.gmra.mxu0 %v2741
      %v2831 = vpop.f32.mrf.mxu0
      %v2832 = vadd.f32 0.0, %v2831
      %v2833 = vpop.f32.mrf.mxu0
      %2834 = vmatmul.bf16.gmra.mxu0 %v2744
      %v2835 = vpop.f32.mrf.mxu0
      %v2836 = vadd.f32 0.0, %v2835
      %v2837 = vpop.f32.mrf.mxu0
      %v2838 = vadd.f32 0.0, %v2837
      %2839 = vmatmul.bf16.gmra.mxu0 %v2747
      %v2840 = vpop.f32.mrf.mxu0
      %v2841 = vpop.f32.mrf.mxu0
      %v2842 = vadd.f32 0.0, %v2841
      %2843 = vmatmul.bf16.gmra.mxu0 %v2750
      %v2844 = vpop.f32.mrf.mxu0
      %v2845 = vadd.f32 0.0, %v2844
      %v2846 = vpop.f32.mrf.mxu0
      %2847 = vmatmul.bf16.gmra.mxu0 %v2753
      %v2848 = vpop.f32.mrf.mxu0
      %v2849 = vadd.f32 0.0, %v2848
      %v2850 = vpop.f32.mrf.mxu0
      %v2851 = vadd.f32 0.0, %v2850
      %2852 = vmatmul.bf16.gmra.mxu0 %v2756
      %v2853 = vpop.f32.mrf.mxu0
      %v2854 = vpop.f32.mrf.mxu0
      %v2855 = vadd.f32 0.0, %v2854
      %2856 = vmatmul.bf16.gmra.mxu0 %v2759
      %v2857 = vpop.f32.mrf.mxu0
      %v2858 = vadd.f32 0.0, %v2857
      %v2859 = vpop.f32.mrf.mxu0
      %2860 = vmatmul.bf16.gmra.mxu0 %v2762
      %v2861 = vpop.f32.mrf.mxu0
      %v2862 = vadd.f32 0.0, %v2861
      %v2863 = vpop.f32.mrf.mxu0
      %v2864 = vadd.f32 0.0, %v2863
      %2865 = vmatmul.bf16.gmra.mxu0 %v2765
      %v2866 = vpop.f32.mrf.mxu0
      %v2867 = vpop.f32.mrf.mxu0
      %v2868 = vadd.f32 0.0, %v2867
      %2869 = vmatmul.bf16.gmra.mxu0 %v2768
      %v2870 = vpop.f32.mrf.mxu0
      %v2871 = vadd.f32 0.0, %v2870
      %v2872 = vpop.f32.mrf.mxu0
      %2873 = vmatmul.bf16.gmra.mxu0 %v2771
      %v2874 = vpop.f32.mrf.mxu0
      %v2875 = vadd.f32 0.0, %v2874
      %v2876 = vpop.f32.mrf.mxu0
      %v2877 = vadd.f32 0.0, %v2876
      %2878 = vmatmul.bf16.gmra.mxu0 %v2774
      %v2879 = vpop.f32.mrf.mxu0
      %v2880 = vpop.f32.mrf.mxu0
      %v2881 = vadd.f32 0.0, %v2880
      %2882 = vmatmul.bf16.gmra.mxu0 %v2777
      %v2883 = vpop.f32.mrf.mxu0
      %v2884 = vadd.f32 0.0, %v2883
      %v2885 = vpop.f32.mrf.mxu0
      %2886 = vmatmul.bf16.gmra.mxu0 %v2780
      %v2887 = vpop.f32.mrf.mxu0
      %v2888 = vadd.f32 0.0, %v2887
      %v2889 = vpop.f32.mrf.mxu0
      %v2890 = vadd.f32 0.0, %v2889
      %2891 = vmatmul.bf16.gmra.mxu0 %v2783
      %v2892 = vpop.f32.mrf.mxu0
      %v2893 = vpop.f32.mrf.mxu0
      %v2894 = vadd.f32 0.0, %v2893
      %2895 = vmatmul.bf16.gmra.mxu0 %v2786
      %v2896 = vpop.f32.mrf.mxu0
      %v2897 = vadd.f32 0.0, %v2896
      %v2898 = vpop.f32.mrf.mxu0
      %2899 = vmatmul.bf16.gmra.mxu0 %v2789
      %v2900 = vpop.f32.mrf.mxu0
      %v2901 = vadd.f32 0.0, %v2900
      %v2902 = vpop.f32.mrf.mxu0
      %v2903 = vadd.f32 0.0, %v2902
      %2904 = vmatmul.bf16.gmra.mxu0 %v2792
      %v2905 = vpop.f32.mrf.mxu0
      %v2906 = vpop.f32.mrf.mxu0
      %v2907 = vadd.f32 0.0, %v2906
      %2908 = vmatmul.bf16.gmra.mxu0 %v2795
      %v2909 = vpop.f32.mrf.mxu0
      %v2910 = vadd.f32 0.0, %v2909
      %v2911 = vpop.f32.mrf.mxu0
      %2912 = vdwg.mxu0
      %v2913 = vadd.f32 %v2617, %v2810
      %v2914 = vadd.f32 %v2618, %v2812
      %v2915 = vadd.f32 %v2619, %v2816
      %v2916 = vadd.f32 %v2620, %v2819
      %v2917 = vadd.f32 %v2621, %v2823
      %v2918 = vadd.f32 %v2622, %v2825
      %v2919 = vadd.f32 %v2623, %v2829
      %v2920 = vadd.f32 %v2624, %v2832
      %v2921 = vadd.f32 %v2625, %v2836
      %v2922 = vadd.f32 %v2626, %v2838
      %v2923 = vadd.f32 %v2627, %v2842
      %v2924 = vadd.f32 %v2628, %v2845
      %v2925 = vadd.f32 %v2629, %v2849
      %v2926 = vadd.f32 %v2630, %v2851
      %v2927 = vadd.f32 %v2631, %v2855
      %v2928 = vadd.f32 %v2632, %v2858
      %v2929 = vadd.f32 %v2633, %v2862
      %v2930 = vadd.f32 %v2634, %v2864
      %v2931 = vadd.f32 %v2635, %v2868
      %v2932 = vadd.f32 %v2636, %v2871
      %v2933 = vadd.f32 %v2637, %v2875
      %v2934 = vadd.f32 %v2638, %v2877
      %v2935 = vadd.f32 %v2639, %v2881
      %v2936 = vadd.f32 %v2640, %v2884
      %v2937 = vadd.f32 %v2641, %v2888
      %v2938 = vadd.f32 %v2642, %v2890
      %v2939 = vadd.f32 %v2643, %v2894
      %v2940 = vadd.f32 %v2644, %v2897
      %v2941 = vadd.f32 %v2645, %v2901
      %v2942 = vadd.f32 %v2646, %v2903
      %v2943 = vadd.f32 %v2647, %v2907
      %v2944 = vadd.f32 %v2648, %v2910
      %v2945 = vpack.c.bf16 %v1127, %v1126
      %v2946 = vpack.c.bf16 %v1129, %v1128
      %v2947 = vpack.c.bf16 %v1131, %v1130
      %s2948 = scalar_lea.vmem %s5, 12
      %v2949 = vld [vmem:[%s2948] sm:$0x3]
      %v2951 = vsel %vm354, %v2945, 0
      %v2954 = vsel %vm354, %v2946, 0
      %v2957 = vsel %vm354, %v2947, 0
      %v2960 = vsel %vm1430, %v2949, 0
      %2962 = vmatpush.bf16.msra.mxu0 0
      %2963 = vmatpush.bf16.msra.mxu0 0
      %2964 = vmatpush.bf16.msra.mxu0 0
      %2965 = vmatpush.bf16.msra.mxu0 0
      %2966 = vmatpush.bf16.msra.mxu0 0
      %2967 = vmatpush.bf16.msra.mxu0 0
      %2968 = vmatpush.bf16.msra.mxu0 0
      %2969 = vmatpush.bf16.msra.mxu0 %v2960
      %2970 = vmatmul.bf16.gmra.mxu0 %v1553
      %v2971 = vpop.f32.mrf.mxu0
      %v2972 = vadd.f32 0.0, %v2971
      %v2973 = vpop.f32.mrf.mxu0
      %v2974 = vadd.f32 0.0, %v2973
      %2975 = vmatmul.bf16.gmra.mxu0 %v1555
      %v2976 = vpop.f32.mrf.mxu0
      %v2977 = vpop.f32.mrf.mxu0
      %v2978 = vadd.f32 0.0, %v2977
      %2979 = vmatmul.bf16.gmra.mxu0 %v1557
      %v2980 = vpop.f32.mrf.mxu0
      %v2981 = vadd.f32 0.0, %v2980
      %v2982 = vpop.f32.mrf.mxu0
      %2983 = vmatmul.bf16.gmra.mxu0 %v1559
      %v2984 = vpop.f32.mrf.mxu0
      %v2985 = vadd.f32 0.0, %v2984
      %v2986 = vpop.f32.mrf.mxu0
      %v2987 = vadd.f32 0.0, %v2986
      %2988 = vmatmul.bf16.gmra.mxu0 %v1561
      %v2989 = vpop.f32.mrf.mxu0
      %v2990 = vpop.f32.mrf.mxu0
      %v2991 = vadd.f32 0.0, %v2990
      %2992 = vmatmul.bf16.gmra.mxu0 %v1563
      %v2993 = vpop.f32.mrf.mxu0
      %v2994 = vadd.f32 0.0, %v2993
      %v2995 = vpop.f32.mrf.mxu0
      %2996 = vmatmul.bf16.gmra.mxu0 %v1565
      %v2997 = vpop.f32.mrf.mxu0
      %v2998 = vadd.f32 0.0, %v2997
      %v2999 = vpop.f32.mrf.mxu0
      %v3000 = vadd.f32 0.0, %v2999
      %3001 = vmatmul.bf16.gmra.mxu0 %v1567
      %v3002 = vpop.f32.mrf.mxu0
      %v3003 = vpop.f32.mrf.mxu0
      %v3004 = vadd.f32 0.0, %v3003
      %3005 = vmatmul.bf16.gmra.mxu0 %v1569
      %v3006 = vpop.f32.mrf.mxu0
      %v3007 = vadd.f32 0.0, %v3006
      %v3008 = vpop.f32.mrf.mxu0
      %3009 = vmatmul.bf16.gmra.mxu0 %v1571
      %v3010 = vpop.f32.mrf.mxu0
      %v3011 = vadd.f32 0.0, %v3010
      %v3012 = vpop.f32.mrf.mxu0
      %v3013 = vadd.f32 0.0, %v3012
      %3014 = vmatmul.bf16.gmra.mxu0 %v1573
      %v3015 = vpop.f32.mrf.mxu0
      %v3016 = vpop.f32.mrf.mxu0
      %v3017 = vadd.f32 0.0, %v3016
      %3018 = vmatmul.bf16.gmra.mxu0 %v1575
      %v3019 = vpop.f32.mrf.mxu0
      %v3020 = vadd.f32 0.0, %v3019
      %v3021 = vpop.f32.mrf.mxu0
      %3022 = vmatmul.bf16.gmra.mxu0 %v1577
      %v3023 = vpop.f32.mrf.mxu0
      %v3024 = vadd.f32 0.0, %v3023
      %v3025 = vpop.f32.mrf.mxu0
      %v3026 = vadd.f32 0.0, %v3025
      %3027 = vmatmul.bf16.gmra.mxu0 %v1579
      %v3028 = vpop.f32.mrf.mxu0
      %v3029 = vpop.f32.mrf.mxu0
      %v3030 = vadd.f32 0.0, %v3029
      %3031 = vmatmul.bf16.gmra.mxu0 %v1581
      %v3032 = vpop.f32.mrf.mxu0
      %v3033 = vadd.f32 0.0, %v3032
      %v3034 = vpop.f32.mrf.mxu0
      %3035 = vmatmul.bf16.gmra.mxu0 %v1583
      %v3036 = vpop.f32.mrf.mxu0
      %v3037 = vadd.f32 0.0, %v3036
      %v3038 = vpop.f32.mrf.mxu0
      %v3039 = vadd.f32 0.0, %v3038
      %3040 = vmatmul.bf16.gmra.mxu0 %v1585
      %v3041 = vpop.f32.mrf.mxu0
      %v3042 = vpop.f32.mrf.mxu0
      %v3043 = vadd.f32 0.0, %v3042
      %3044 = vmatmul.bf16.gmra.mxu0 %v1587
      %v3045 = vpop.f32.mrf.mxu0
      %v3046 = vadd.f32 0.0, %v3045
      %v3047 = vpop.f32.mrf.mxu0
      %3048 = vmatmul.bf16.gmra.mxu0 %v1589
      %v3049 = vpop.f32.mrf.mxu0
      %v3050 = vadd.f32 0.0, %v3049
      %v3051 = vpop.f32.mrf.mxu0
      %v3052 = vadd.f32 0.0, %v3051
      %3053 = vmatmul.bf16.gmra.mxu0 %v1591
      %v3054 = vpop.f32.mrf.mxu0
      %v3055 = vpop.f32.mrf.mxu0
      %v3056 = vadd.f32 0.0, %v3055
      %3057 = vmatmul.bf16.gmra.mxu0 %v1593
      %v3058 = vpop.f32.mrf.mxu0
      %v3059 = vadd.f32 0.0, %v3058
      %v3060 = vpop.f32.mrf.mxu0
      %3061 = vmatmul.bf16.gmra.mxu0 %v2951
      %v3062 = vpop.f32.mrf.mxu0
      %v3063 = vadd.f32 0.0, %v3062
      %v3064 = vpop.f32.mrf.mxu0
      %v3065 = vadd.f32 0.0, %v3064
      %3066 = vmatmul.bf16.gmra.mxu0 %v2954
      %v3067 = vpop.f32.mrf.mxu0
      %v3068 = vpop.f32.mrf.mxu0
      %v3069 = vadd.f32 0.0, %v3068
      %3070 = vmatmul.bf16.gmra.mxu0 %v2957
      %v3071 = vpop.f32.mrf.mxu0
      %v3072 = vadd.f32 0.0, %v3071
      %v3073 = vpop.f32.mrf.mxu0
      %3074 = vdwg.mxu0
      %v3075 = vadd.f32 %v2913, %v2972
      %v3076 = vadd.f32 %v2914, %v2974
      %v3077 = vadd.f32 %v2915, %v2978
      %v3078 = vadd.f32 %v2916, %v2981
      %v3079 = vadd.f32 %v2917, %v2985
      %v3080 = vadd.f32 %v2918, %v2987
      %v3081 = vadd.f32 %v2919, %v2991
      %v3082 = vadd.f32 %v2920, %v2994
      %v3083 = vadd.f32 %v2921, %v2998
      %v3084 = vadd.f32 %v2922, %v3000
      %v3085 = vadd.f32 %v2923, %v3004
      %v3086 = vadd.f32 %v2924, %v3007
      %v3087 = vadd.f32 %v2925, %v3011
      %v3088 = vadd.f32 %v2926, %v3013
      %v3089 = vadd.f32 %v2927, %v3017
      %v3090 = vadd.f32 %v2928, %v3020
      %v3091 = vadd.f32 %v2929, %v3024
      %v3092 = vadd.f32 %v2930, %v3026
      %v3093 = vadd.f32 %v2931, %v3030
      %v3094 = vadd.f32 %v2932, %v3033
      %v3095 = vadd.f32 %v2933, %v3037
      %v3096 = vadd.f32 %v2934, %v3039
      %v3097 = vadd.f32 %v2935, %v3043
      %v3098 = vadd.f32 %v2936, %v3046
      %v3099 = vadd.f32 %v2937, %v3050
      %v3100 = vadd.f32 %v2938, %v3052
      %v3101 = vadd.f32 %v2939, %v3056
      %v3102 = vadd.f32 %v2940, %v3059
      %v3103 = vadd.f32 %v2941, %v3063
      %v3104 = vadd.f32 %v2942, %v3065
      %v3105 = vadd.f32 %v2943, %v3069
      %v3106 = vadd.f32 %v2944, %v3072
      %v3107 = vpack.c.bf16 %v1132, %v1132
      %s3108 = scalar_lea.vmem %s5, 14
      %v3109 = vld [vmem:[%s3108] sm:$0x3]
      %v3110 = vshll.u32 %v2945, 16
      %v3112 = vrot.slane %v3110, 1
      %v3113 = vsel %vm1161, %v1352, %v3112
      %v3114 = vshrl.u32 %v2945, 16
      %v3116 = vor.u32 %v3114, %v3112
      %v3117 = vshll.u32 %v2946, 16
      %v3119 = vrot.slane %v3117, 1
      %v3120 = vsel %vm1161, %v3116, %v3119
      %v3121 = vshrl.u32 %v2946, 16
      %v3123 = vor.u32 %v3121, %v3119
      %v3124 = vshll.u32 %v2947, 16
      %v3126 = vrot.slane %v3124, 1
      %v3127 = vsel %vm1161, %v3123, %v3126
      %v3128 = vshrl.u32 %v2947, 16
      %v3130 = vor.u32 %v3128, %v3126
      %v3132 = vshll.u32 %v3107, 16
      %v3134 = vrot.slane %v3132, 1
      %v3135 = vsel %vm1161, %v3130, %v3134
      %v3137 = vsel %vm354, %v3113, 0
      %v3140 = vsel %vm354, %v3120, 0
      %v3143 = vsel %vm354, %v3127, 0
      %v3146 = vsel %vm354, %v3135, 0
      %v3149 = vsel %vm1430, %v3109, 0
      %3151 = vmatpush.bf16.msra.mxu0 0
      %3152 = vmatpush.bf16.msra.mxu0 0
      %3153 = vmatpush.bf16.msra.mxu0 0
      %3154 = vmatpush.bf16.msra.mxu0 0
      %3155 = vmatpush.bf16.msra.mxu0 0
      %3156 = vmatpush.bf16.msra.mxu0 0
      %3157 = vmatpush.bf16.msra.mxu0 0
      %3158 = vmatpush.bf16.msra.mxu0 %v3149
      %3159 = vmatmul.bf16.gmra.mxu0 %v1368
      %v3160 = vpop.f32.mrf.mxu0
      %v3161 = vadd.f32 0.0, %v3160
      %v3162 = vpop.f32.mrf.mxu0
      %v3163 = vadd.f32 0.0, %v3162
      %3164 = vmatmul.bf16.gmra.mxu0 %v1371
      %v3165 = vpop.f32.mrf.mxu0
      %v3166 = vpop.f32.mrf.mxu0
      %v3167 = vadd.f32 0.0, %v3166
      %3168 = vmatmul.bf16.gmra.mxu0 %v1374
      %v3169 = vpop.f32.mrf.mxu0
      %v3170 = vadd.f32 0.0, %v3169
      %v3171 = vpop.f32.mrf.mxu0
      %3172 = vmatmul.bf16.gmra.mxu0 %v1377
      %v3173 = vpop.f32.mrf.mxu0
      %v3174 = vadd.f32 0.0, %v3173
      %v3175 = vpop.f32.mrf.mxu0
      %v3176 = vadd.f32 0.0, %v3175
      %3177 = vmatmul.bf16.gmra.mxu0 %v1380
      %v3178 = vpop.f32.mrf.mxu0
      %v3179 = vpop.f32.mrf.mxu0
      %v3180 = vadd.f32 0.0, %v3179
      %3181 = vmatmul.bf16.gmra.mxu0 %v1383
      %v3182 = vpop.f32.mrf.mxu0
      %v3183 = vadd.f32 0.0, %v3182
      %v3184 = vpop.f32.mrf.mxu0
      %3185 = vmatmul.bf16.gmra.mxu0 %v1386
      %v3186 = vpop.f32.mrf.mxu0
      %v3187 = vadd.f32 0.0, %v3186
      %v3188 = vpop.f32.mrf.mxu0
      %v3189 = vadd.f32 0.0, %v3188
      %3190 = vmatmul.bf16.gmra.mxu0 %v1389
      %v3191 = vpop.f32.mrf.mxu0
      %v3192 = vpop.f32.mrf.mxu0
      %v3193 = vadd.f32 0.0, %v3192
      %3194 = vmatmul.bf16.gmra.mxu0 %v1392
      %v3195 = vpop.f32.mrf.mxu0
      %v3196 = vadd.f32 0.0, %v3195
      %v3197 = vpop.f32.mrf.mxu0
      %3198 = vmatmul.bf16.gmra.mxu0 %v1395
      %v3199 = vpop.f32.mrf.mxu0
      %v3200 = vadd.f32 0.0, %v3199
      %v3201 = vpop.f32.mrf.mxu0
      %v3202 = vadd.f32 0.0, %v3201
      %3203 = vmatmul.bf16.gmra.mxu0 %v1398
      %v3204 = vpop.f32.mrf.mxu0
      %v3205 = vpop.f32.mrf.mxu0
      %v3206 = vadd.f32 0.0, %v3205
      %3207 = vmatmul.bf16.gmra.mxu0 %v1401
      %v3208 = vpop.f32.mrf.mxu0
      %v3209 = vadd.f32 0.0, %v3208
      %v3210 = vpop.f32.mrf.mxu0
      %3211 = vmatmul.bf16.gmra.mxu0 %v1404
      %v3212 = vpop.f32.mrf.mxu0
      %v3213 = vadd.f32 0.0, %v3212
      %v3214 = vpop.f32.mrf.mxu0
      %v3215 = vadd.f32 0.0, %v3214
      %3216 = vmatmul.bf16.gmra.mxu0 %v1407
      %v3217 = vpop.f32.mrf.mxu0
      %v3218 = vpop.f32.mrf.mxu0
      %v3219 = vadd.f32 0.0, %v3218
      %3220 = vmatmul.bf16.gmra.mxu0 %v1410
      %v3221 = vpop.f32.mrf.mxu0
      %v3222 = vadd.f32 0.0, %v3221
      %v3223 = vpop.f32.mrf.mxu0
      %3224 = vmatmul.bf16.gmra.mxu0 %v1413
      %v3225 = vpop.f32.mrf.mxu0
      %v3226 = vadd.f32 0.0, %v3225
      %v3227 = vpop.f32.mrf.mxu0
      %v3228 = vadd.f32 0.0, %v3227
      %3229 = vmatmul.bf16.gmra.mxu0 %v1416
      %v3230 = vpop.f32.mrf.mxu0
      %v3231 = vpop.f32.mrf.mxu0
      %v3232 = vadd.f32 0.0, %v3231
      %3233 = vmatmul.bf16.gmra.mxu0 %v1419
      %v3234 = vpop.f32.mrf.mxu0
      %v3235 = vadd.f32 0.0, %v3234
      %v3236 = vpop.f32.mrf.mxu0
      %3237 = vmatmul.bf16.gmra.mxu0 %v1422
      %v3238 = vpop.f32.mrf.mxu0
      %v3239 = vadd.f32 0.0, %v3238
      %v3240 = vpop.f32.mrf.mxu0
      %v3241 = vadd.f32 0.0, %v3240
      %3242 = vmatmul.bf16.gmra.mxu0 %v1425
      %v3243 = vpop.f32.mrf.mxu0
      %v3244 = vpop.f32.mrf.mxu0
      %v3245 = vadd.f32 0.0, %v3244
      %3246 = vmatmul.bf16.gmra.mxu0 %v3137
      %v3247 = vpop.f32.mrf.mxu0
      %v3248 = vadd.f32 0.0, %v3247
      %v3249 = vpop.f32.mrf.mxu0
      %3250 = vmatmul.bf16.gmra.mxu0 %v3140
      %v3251 = vpop.f32.mrf.mxu0
      %v3252 = vadd.f32 0.0, %v3251
      %v3253 = vpop.f32.mrf.mxu0
      %v3254 = vadd.f32 0.0, %v3253
      %3255 = vmatmul.bf16.gmra.mxu0 %v3143
      %v3256 = vpop.f32.mrf.mxu0
      %v3257 = vpop.f32.mrf.mxu0
      %v3258 = vadd.f32 0.0, %v3257
      %3259 = vmatmul.bf16.gmra.mxu0 %v3146
      %v3260 = vpop.f32.mrf.mxu0
      %v3261 = vadd.f32 0.0, %v3260
      %v3262 = vpop.f32.mrf.mxu0
      %3263 = vdwg.mxu0
      %v3264 = vadd.f32 %v3075, %v3161
      %v3265 = vadd.f32 %v3076, %v3163
      %v3266 = vadd.f32 %v3077, %v3167
      %v3267 = vadd.f32 %v3078, %v3170
      %v3268 = vadd.f32 %v3079, %v3174
      %v3269 = vadd.f32 %v3080, %v3176
      %v3270 = vadd.f32 %v3081, %v3180
      %v3271 = vadd.f32 %v3082, %v3183
      %v3272 = vadd.f32 %v3083, %v3187
      %v3273 = vadd.f32 %v3084, %v3189
      %v3274 = vadd.f32 %v3085, %v3193
      %v3275 = vadd.f32 %v3086, %v3196
      %v3276 = vadd.f32 %v3087, %v3200
      %v3277 = vadd.f32 %v3088, %v3202
      %v3278 = vadd.f32 %v3089, %v3206
      %v3279 = vadd.f32 %v3090, %v3209
      %v3280 = vadd.f32 %v3091, %v3213
      %v3281 = vadd.f32 %v3092, %v3215
      %v3282 = vadd.f32 %v3093, %v3219
      %v3283 = vadd.f32 %v3094, %v3222
      %v3284 = vadd.f32 %v3095, %v3226
      %v3285 = vadd.f32 %v3096, %v3228
      %v3286 = vadd.f32 %v3097, %v3232
      %v3287 = vadd.f32 %v3098, %v3235
      %v3288 = vadd.f32 %v3099, %v3239
      %v3289 = vadd.f32 %v3100, %v3241
      %v3290 = vadd.f32 %v3101, %v3245
      %v3291 = vadd.f32 %v3102, %v3248
      %v3292 = vadd.f32 %v3103, %v3252
      %v3293 = vadd.f32 %v3104, %v3254
      %v3294 = vadd.f32 %v3105, %v3258
      %v3295 = vadd.f32 %v3106, %v3261
      %s3296 = scalar_lea.vmem %s5, 16
      %v3297 = vld [vmem:[%s3296] sm:$0x3]
      %v3302 = vrot.slane %v2945, 1
      %v3303 = vsel %vm1738, %v1784, %v3302
      %v3304 = vrot.slane %v2946, 1
      %v3305 = vsel %vm1738, %v3302, %v3304
      %v3306 = vrot.slane %v2947, 1
      %v3307 = vsel %vm1738, %v3304, %v3306
      %v3308 = vrot.slane %v3107, 1
      %v3309 = vsel %vm1738, %v3306, %v3308
      %v3311 = vsel %vm354, %v3303, 0
      %v3314 = vsel %vm354, %v3305, 0
      %v3317 = vsel %vm354, %v3307, 0
      %v3320 = vsel %vm354, %v3309, 0
      %v3323 = vsel %vm1430, %v3297, 0
      %3325 = vmatpush.bf16.msra.mxu0 0
      %3326 = vmatpush.bf16.msra.mxu0 0
      %3327 = vmatpush.bf16.msra.mxu0 0
      %3328 = vmatpush.bf16.msra.mxu0 0
      %3329 = vmatpush.bf16.msra.mxu0 0
      %3330 = vmatpush.bf16.msra.mxu0 0
      %3331 = vmatpush.bf16.msra.mxu0 0
      %3332 = vmatpush.bf16.msra.mxu0 %v3323
      %3333 = vmatmul.bf16.gmra.mxu0 %v1798
      %v3334 = vpop.f32.mrf.mxu0
      %v3335 = vadd.f32 0.0, %v3334
      %v3336 = vpop.f32.mrf.mxu0
      %v3337 = vadd.f32 0.0, %v3336
      %3338 = vmatmul.bf16.gmra.mxu0 %v1801
      %v3339 = vpop.f32.mrf.mxu0
      %v3340 = vpop.f32.mrf.mxu0
      %v3341 = vadd.f32 0.0, %v3340
      %3342 = vmatmul.bf16.gmra.mxu0 %v1804
      %v3343 = vpop.f32.mrf.mxu0
      %v3344 = vadd.f32 0.0, %v3343
      %v3345 = vpop.f32.mrf.mxu0
      %3346 = vmatmul.bf16.gmra.mxu0 %v1807
      %v3347 = vpop.f32.mrf.mxu0
      %v3348 = vadd.f32 0.0, %v3347
      %v3349 = vpop.f32.mrf.mxu0
      %v3350 = vadd.f32 0.0, %v3349
      %3351 = vmatmul.bf16.gmra.mxu0 %v1810
      %v3352 = vpop.f32.mrf.mxu0
      %v3353 = vpop.f32.mrf.mxu0
      %v3354 = vadd.f32 0.0, %v3353
      %3355 = vmatmul.bf16.gmra.mxu0 %v1813
      %v3356 = vpop.f32.mrf.mxu0
      %v3357 = vadd.f32 0.0, %v3356
      %v3358 = vpop.f32.mrf.mxu0
      %3359 = vmatmul.bf16.gmra.mxu0 %v1816
      %v3360 = vpop.f32.mrf.mxu0
      %v3361 = vadd.f32 0.0, %v3360
      %v3362 = vpop.f32.mrf.mxu0
      %v3363 = vadd.f32 0.0, %v3362
      %3364 = vmatmul.bf16.gmra.mxu0 %v1819
      %v3365 = vpop.f32.mrf.mxu0
      %v3366 = vpop.f32.mrf.mxu0
      %v3367 = vadd.f32 0.0, %v3366
      %3368 = vmatmul.bf16.gmra.mxu0 %v1822
      %v3369 = vpop.f32.mrf.mxu0
      %v3370 = vadd.f32 0.0, %v3369
      %v3371 = vpop.f32.mrf.mxu0
      %3372 = vmatmul.bf16.gmra.mxu0 %v1825
      %v3373 = vpop.f32.mrf.mxu0
      %v3374 = vadd.f32 0.0, %v3373
      %v3375 = vpop.f32.mrf.mxu0
      %v3376 = vadd.f32 0.0, %v3375
      %3377 = vmatmul.bf16.gmra.mxu0 %v1828
      %v3378 = vpop.f32.mrf.mxu0
      %v3379 = vpop.f32.mrf.mxu0
      %v3380 = vadd.f32 0.0, %v3379
      %3381 = vmatmul.bf16.gmra.mxu0 %v1831
      %v3382 = vpop.f32.mrf.mxu0
      %v3383 = vadd.f32 0.0, %v3382
      %v3384 = vpop.f32.mrf.mxu0
      %3385 = vmatmul.bf16.gmra.mxu0 %v1834
      %v3386 = vpop.f32.mrf.mxu0
      %v3387 = vadd.f32 0.0, %v3386
      %v3388 = vpop.f32.mrf.mxu0
      %v3389 = vadd.f32 0.0, %v3388
      %3390 = vmatmul.bf16.gmra.mxu0 %v1837
      %v3391 = vpop.f32.mrf.mxu0
      %v3392 = vpop.f32.mrf.mxu0
      %v3393 = vadd.f32 0.0, %v3392
      %3394 = vmatmul.bf16.gmra.mxu0 %v1840
      %v3395 = vpop.f32.mrf.mxu0
      %v3396 = vadd.f32 0.0, %v3395
      %v3397 = vpop.f32.mrf.mxu0
      %3398 = vmatmul.bf16.gmra.mxu0 %v1843
      %v3399 = vpop.f32.mrf.mxu0
      %v3400 = vadd.f32 0.0, %v3399
      %v3401 = vpop.f32.mrf.mxu0
      %v3402 = vadd.f32 0.0, %v3401
      %3403 = vmatmul.bf16.gmra.mxu0 %v1846
      %v3404 = vpop.f32.mrf.mxu0
      %v3405 = vpop.f32.mrf.mxu0
      %v3406 = vadd.f32 0.0, %v3405
      %3407 = vmatmul.bf16.gmra.mxu0 %v1849
      %v3408 = vpop.f32.mrf.mxu0
      %v3409 = vadd.f32 0.0, %v3408
      %v3410 = vpop.f32.mrf.mxu0
      %3411 = vmatmul.bf16.gmra.mxu0 %v1852
      %v3412 = vpop.f32.mrf.mxu0
      %v3413 = vadd.f32 0.0, %v3412
      %v3414 = vpop.f32.mrf.mxu0
      %v3415 = vadd.f32 0.0, %v3414
      %3416 = vmatmul.bf16.gmra.mxu0 %v1855
      %v3417 = vpop.f32.mrf.mxu0
      %v3418 = vpop.f32.mrf.mxu0
      %v3419 = vadd.f32 0.0, %v3418
      %3420 = vmatmul.bf16.gmra.mxu0 %v3311
      %v3421 = vpop.f32.mrf.mxu0
      %v3422 = vadd.f32 0.0, %v3421
      %v3423 = vpop.f32.mrf.mxu0
      %3424 = vmatmul.bf16.gmra.mxu0 %v3314
      %v3425 = vpop.f32.mrf.mxu0
      %v3426 = vadd.f32 0.0, %v3425
      %v3427 = vpop.f32.mrf.mxu0
      %v3428 = vadd.f32 0.0, %v3427
      %3429 = vmatmul.bf16.gmra.mxu0 %v3317
      %v3430 = vpop.f32.mrf.mxu0
      %v3431 = vpop.f32.mrf.mxu0
      %v3432 = vadd.f32 0.0, %v3431
      %3433 = vmatmul.bf16.gmra.mxu0 %v3320
      %v3434 = vpop.f32.mrf.mxu0
      %v3435 = vadd.f32 0.0, %v3434
      %v3436 = vpop.f32.mrf.mxu0
      %3437 = vdwg.mxu0
      %v3438 = vadd.f32 %v3264, %v3335
      %v3439 = vadd.f32 %v3265, %v3337
      %v3440 = vadd.f32 %v3266, %v3341
      %v3441 = vadd.f32 %v3267, %v3344
      %v3442 = vadd.f32 %v3268, %v3348
      %v3443 = vadd.f32 %v3269, %v3350
      %v3444 = vadd.f32 %v3270, %v3354
      %v3445 = vadd.f32 %v3271, %v3357
      %v3446 = vadd.f32 %v3272, %v3361
      %v3447 = vadd.f32 %v3273, %v3363
      %v3448 = vadd.f32 %v3274, %v3367
      %v3449 = vadd.f32 %v3275, %v3370
      %v3450 = vadd.f32 %v3276, %v3374
      %v3451 = vadd.f32 %v3277, %v3376
      %v3452 = vadd.f32 %v3278, %v3380
      %v3453 = vadd.f32 %v3279, %v3383
      %v3454 = vadd.f32 %v3280, %v3387
      %v3455 = vadd.f32 %v3281, %v3389
      %v3456 = vadd.f32 %v3282, %v3393
      %v3457 = vadd.f32 %v3283, %v3396
      %v3458 = vadd.f32 %v3284, %v3400
      %v3459 = vadd.f32 %v3285, %v3402
      %v3460 = vadd.f32 %v3286, %v3406
      %v3461 = vadd.f32 %v3287, %v3409
      %v3462 = vadd.f32 %v3288, %v3413
      %v3463 = vadd.f32 %v3289, %v3415
      %v3464 = vadd.f32 %v3290, %v3419
      %v3465 = vadd.f32 %v3291, %v3422
      %v3466 = vadd.f32 %v3292, %v3426
      %v3467 = vadd.f32 %v3293, %v3428
      %v3468 = vadd.f32 %v3294, %v3432
      %v3469 = vadd.f32 %v3295, %v3435
      %v3470 = vld [vmem:[%s6] sm:$0x1]
      %v3472 = vperm.slane %v3470, 0
      %v3474 = vadd.f32 %v3438, %v3472
      %v3475 = vadd.f32 %v3439, %v3472
      %v3476 = vadd.f32 %v3440, %v3472
      %v3477 = vadd.f32 %v3441, %v3472
      %v3478 = vadd.f32 %v3442, %v3472
      %v3479 = vadd.f32 %v3443, %v3472
      %v3480 = vadd.f32 %v3444, %v3472
      %v3481 = vadd.f32 %v3445, %v3472
      %v3482 = vadd.f32 %v3446, %v3472
      %v3483 = vadd.f32 %v3447, %v3472
      %v3484 = vadd.f32 %v3448, %v3472
      %v3485 = vadd.f32 %v3449, %v3472
      %v3486 = vadd.f32 %v3450, %v3472
      %v3487 = vadd.f32 %v3451, %v3472
      %v3488 = vadd.f32 %v3452, %v3472
      %v3489 = vadd.f32 %v3453, %v3472
      %v3490 = vadd.f32 %v3454, %v3472
      %v3491 = vadd.f32 %v3455, %v3472
      %v3492 = vadd.f32 %v3456, %v3472
      %v3493 = vadd.f32 %v3457, %v3472
      %v3494 = vadd.f32 %v3458, %v3472
      %v3495 = vadd.f32 %v3459, %v3472
      %v3496 = vadd.f32 %v3460, %v3472
      %v3497 = vadd.f32 %v3461, %v3472
      %v3498 = vadd.f32 %v3462, %v3472
      %v3499 = vadd.f32 %v3463, %v3472
      %v3500 = vadd.f32 %v3464, %v3472
      %v3501 = vadd.f32 %v3465, %v3472
      %v3502 = vadd.f32 %v3466, %v3472
      %v3503 = vadd.f32 %v3467, %v3472
      %v3504 = vadd.f32 %v3468, %v3472
      %v3505 = vadd.f32 %v3469, %v3472
      %v3506 = vmax.f32 %v3474, 0.0
      %v3507 = vmax.f32 %v3475, 0.0
      %v3508 = vmax.f32 %v3476, 0.0
      %v3509 = vmax.f32 %v3477, 0.0
      %v3510 = vmax.f32 %v3478, 0.0
      %v3511 = vmax.f32 %v3479, 0.0
      %v3512 = vmax.f32 %v3480, 0.0
      %v3513 = vmax.f32 %v3481, 0.0
      %v3514 = vmax.f32 %v3482, 0.0
      %v3515 = vmax.f32 %v3483, 0.0
      %v3516 = vmax.f32 %v3484, 0.0
      %v3517 = vmax.f32 %v3485, 0.0
      %v3518 = vmax.f32 %v3486, 0.0
      %v3519 = vmax.f32 %v3487, 0.0
      %v3520 = vmax.f32 %v3488, 0.0
      %v3521 = vmax.f32 %v3489, 0.0
      %v3522 = vmax.f32 %v3490, 0.0
      %v3523 = vmax.f32 %v3491, 0.0
      %v3524 = vmax.f32 %v3492, 0.0
      %v3525 = vmax.f32 %v3493, 0.0
      %v3526 = vmax.f32 %v3494, 0.0
      %v3527 = vmax.f32 %v3495, 0.0
      %v3528 = vmax.f32 %v3496, 0.0
      %v3529 = vmax.f32 %v3497, 0.0
      %v3530 = vmax.f32 %v3498, 0.0
      %v3531 = vmax.f32 %v3499, 0.0
      %v3532 = vmax.f32 %v3500, 0.0
      %v3533 = vmax.f32 %v3501, 0.0
      %v3534 = vmax.f32 %v3502, 0.0
      %v3535 = vmax.f32 %v3503, 0.0
      %v3536 = vmax.f32 %v3504, 0.0
      %v3537 = vmax.f32 %v3505, 0.0
      %s3538 = scalar_lea.vmem [#allocation3], 24
      %3539 = vst.msk [vmem:[%s3538 + $0x1] sm:$0xff] %vm354, %v3506
      %3540 = vst.msk [vmem:[%s3538 + $0x9] sm:$0xff] %vm354, %v3507
      %3541 = vst.msk [vmem:[%s3538 + $0x19] sm:$0xff] %vm354, %v3508
      %3542 = vst.msk [vmem:[%s3538 + $0x21] sm:$0xff] %vm354, %v3509
      %3543 = vst.msk [vmem:[%s3538 + $0x31] sm:$0xff] %vm354, %v3510
      %3544 = vst.msk [vmem:[%s3538 + $0x39] sm:$0xff] %vm354, %v3511
      %3545 = vst.msk [vmem:[%s3538 + $0x49] sm:$0xff] %vm354, %v3512
      %3546 = vst.msk [vmem:[%s3538 + $0x51] sm:$0xff] %vm354, %v3513
      %3547 = vst.msk [vmem:[%s3538 + $0x61] sm:$0xff] %vm354, %v3514
      %3548 = vst.msk [vmem:[%s3538 + $0x69] sm:$0xff] %vm354, %v3515
      %3549 = vst.msk [vmem:[%s3538 + $0x79] sm:$0xff] %vm354, %v3516
      %3550 = vst.msk [vmem:[%s3538 + $0x81] sm:$0xff] %vm354, %v3517
      %3551 = vst.msk [vmem:[%s3538 + $0x91] sm:$0xff] %vm354, %v3518
      %3552 = vst.msk [vmem:[%s3538 + $0x99] sm:$0xff] %vm354, %v3519
      %3553 = vst.msk [vmem:[%s3538 + $0xa9] sm:$0xff] %vm354, %v3520
      %3554 = vst.msk [vmem:[%s3538 + $0xb1] sm:$0xff] %vm354, %v3521
      %3555 = vst.msk [vmem:[%s3538 + $0xc1] sm:$0xff] %vm354, %v3522
      %3556 = vst.msk [vmem:[%s3538 + $0xc9] sm:$0xff] %vm354, %v3523
      %3557 = vst.msk [vmem:[%s3538 + $0xd9] sm:$0xff] %vm354, %v3524
      %3558 = vst.msk [vmem:[%s3538 + $0xe1] sm:$0xff] %vm354, %v3525
      %3559 = vst.msk [vmem:[%s3538 + $0xf1] sm:$0xff] %vm354, %v3526
      %3560 = vst.msk [vmem:[%s3538 + $0xf9] sm:$0xff] %vm354, %v3527
      %3561 = vst.msk [vmem:[%s3538 + $0x109] sm:$0xff] %vm354, %v3528
      %3562 = vst.msk [vmem:[%s3538 + $0x111] sm:$0xff] %vm354, %v3529
      %3563 = vst.msk [vmem:[%s3538 + $0x121] sm:$0xff] %vm354, %v3530
      %3564 = vst.msk [vmem:[%s3538 + $0x129] sm:$0xff] %vm354, %v3531
      %3565 = vst.msk [vmem:[%s3538 + $0x139] sm:$0xff] %vm354, %v3532
      %3566 = vst.msk [vmem:[%s3538 + $0x141] sm:$0xff] %vm354, %v3533
      %3567 = vst.msk [vmem:[%s3538 + $0x151] sm:$0xff] %vm354, %v3534
      %3568 = vst.msk [vmem:[%s3538 + $0x159] sm:$0xff] %vm354, %v3535
      %3569 = vst.msk [vmem:[%s3538 + $0x169] sm:$0xff] %vm354, %v3536
      %3570 = vst.msk [vmem:[%s3538 + $0x171] sm:$0xff] %vm354, %v3537
      %v3571 = vld [vmem:[#allocation3] sm:$0xff]
      %v3572 = vld [vmem:[#allocation3 + $0x8] sm:$0xff]
      %v3573 = vld [vmem:[#allocation3 + $0x10] sm:$0xff]
      %v3574 = vld [vmem:[#allocation3 + $0x18] sm:$0xff]
      %v3575 = vld [vmem:[#allocation3 + $0x20] sm:$0xff]
      %v3576 = vld [vmem:[#allocation3 + $0x28] sm:$0xff]
      %v3577 = vld [vmem:[#allocation3 + $0x30] sm:$0xff]
      %v3578 = vld [vmem:[#allocation3 + $0x38] sm:$0xff]
      %v3579 = vld [vmem:[#allocation3 + $0x40] sm:$0xff]
      %v3580 = vld [vmem:[#allocation3 + $0x48] sm:$0xff]
      %v3581 = vld [vmem:[#allocation3 + $0x50] sm:$0xff]
      %v3582 = vld [vmem:[#allocation3 + $0x58] sm:$0xff]
      %v3583 = vld [vmem:[#allocation3 + $0x60] sm:$0xff]
      %v3584 = vld [vmem:[#allocation3 + $0x68] sm:$0xff]
      %v3585 = vld [vmem:[#allocation3 + $0x70] sm:$0xff]
      %v3586 = vld [vmem:[#allocation3 + $0x78] sm:$0xff]
      %v3587 = vld [vmem:[#allocation3 + $0x80] sm:$0xff]
      %v3588 = vld [vmem:[#allocation3 + $0x88] sm:$0xff]
      %v3589 = vld [vmem:[#allocation3 + $0x90] sm:$0xff]
      %v3590 = vld [vmem:[#allocation3 + $0x98] sm:$0xff]
      %v3591 = vld [vmem:[#allocation3 + $0xa0] sm:$0xff]
      %v3592 = vld [vmem:[#allocation3 + $0xa8] sm:$0xff]
      %v3593 = vld [vmem:[#allocation3 + $0xb0] sm:$0xff]
      %v3594 = vld [vmem:[#allocation3 + $0xb8] sm:$0xff]
      %v3595 = vld [vmem:[#allocation3 + $0xc0] sm:$0xff]
      %v3596 = vld [vmem:[#allocation3 + $0xc8] sm:$0xff]
      %v3597 = vld [vmem:[#allocation3 + $0xd0] sm:$0xff]
      %v3598 = vld [vmem:[#allocation3 + $0xd8] sm:$0xff]
      %v3599 = vld [vmem:[#allocation3 + $0xe0] sm:$0xff]
      %v3600 = vld [vmem:[#allocation3 + $0xe8] sm:$0xff]
      %v3601 = vld [vmem:[#allocation3 + $0xf0] sm:$0xff]
      %v3602 = vld [vmem:[#allocation3 + $0xf8] sm:$0xff]
      %v3603 = vld [vmem:[#allocation3 + $0x100] sm:$0xff]
      %v3604 = vld [vmem:[#allocation3 + $0x108] sm:$0xff]
      %v3605 = vld [vmem:[#allocation3 + $0x110] sm:$0xff]
      %v3606 = vld [vmem:[#allocation3 + $0x118] sm:$0xff]
      %v3607 = vld [vmem:[#allocation3 + $0x120] sm:$0xff]
      %v3608 = vld [vmem:[#allocation3 + $0x128] sm:$0xff]
      %v3609 = vld [vmem:[#allocation3 + $0x130] sm:$0xff]
      %v3610 = vld [vmem:[#allocation3 + $0x138] sm:$0xff]
      %v3611 = vld [vmem:[#allocation3 + $0x140] sm:$0xff]
      %v3612 = vld [vmem:[#allocation3 + $0x148] sm:$0xff]
      %v3613 = vld [vmem:[#allocation3 + $0x150] sm:$0xff]
      %v3614 = vld [vmem:[#allocation3 + $0x158] sm:$0xff]
      %v3615 = vld [vmem:[#allocation3 + $0x160] sm:$0xff]
      %v3616 = vld [vmem:[#allocation3 + $0x168] sm:$0xff]
      %v3617 = vld [vmem:[#allocation3 + $0x170] sm:$0xff]
      %v3618 = vld [vmem:[#allocation3 + $0x178] sm:$0xff]
      %v3619 = vld [vmem:[#allocation3 + $0x180] sm:$0xff]
      %v3620 = vld [vmem:[#allocation3 + $0x188] sm:$0xff]
      %v3621 = vld [vmem:[#allocation3 + $0x190] sm:$0xff]
      %v3622 = vld [vmem:[#allocation3 + $0x198] sm:$0xff]
      %v3623 = vld [vmem:[#allocation3 + $0x1a0] sm:$0xff]
      %v3624 = vld [vmem:[#allocation3 + $0x1a8] sm:$0xff]
      %v3625 = vld [vmem:[#allocation3 + $0x1b0] sm:$0xff]
      %v3626 = vpack.c.bf16 %v3572, %v3571
      %v3627 = vpack.c.bf16 %v3574, %v3573
      %v3628 = vpack.c.bf16 %v3576, %v3575
      %v3629 = vpack.c.bf16 %v3578, %v3577
      %v3630 = vpack.c.bf16 %v3580, %v3579
      %v3631 = vpack.c.bf16 %v3582, %v3581
      %v3632 = vpack.c.bf16 %v3584, %v3583
      %v3633 = vpack.c.bf16 %v3586, %v3585
      %v3634 = vpack.c.bf16 %v3588, %v3587
      %v3635 = vpack.c.bf16 %v3590, %v3589
      %v3636 = vpack.c.bf16 %v3592, %v3591
      %v3637 = vpack.c.bf16 %v3594, %v3593
      %v3638 = vpack.c.bf16 %v3596, %v3595
      %v3639 = vpack.c.bf16 %v3598, %v3597
      %v3640 = vpack.c.bf16 %v3600, %v3599
      %v3641 = vpack.c.bf16 %v3602, %v3601
      %v3642 = vpack.c.bf16 %v3604, %v3603
      %v3643 = vpack.c.bf16 %v3606, %v3605
      %v3644 = vpack.c.bf16 %v3608, %v3607
      %v3645 = vpack.c.bf16 %v3610, %v3609
      %v3646 = vpack.c.bf16 %v3612, %v3611
      %v3647 = vpack.c.bf16 %v3614, %v3613
      %v3648 = vpack.c.bf16 %v3616, %v3615
      %v3649 = vpack.c.bf16 %v3618, %v3617
      %v3650 = vld [vmem:[%s7] sm:$0x3]
      %v3651 = vpack.c.bf16 %v3619, %v3619
      %s3652 = scalar_lea.vmem %s7, 2
      %v3653 = vld [vmem:[%s3652] sm:$0x3]
      %v3655 = vshrl.u32 %v3626, 16
      %v3657 = vshll.u32 %v3626, 16
      %v3659 = vrot.slane %v3657, 1
      %v3660 = vor.u32 %v3655, %v3659
      %v3662 = vshll.u32 %v3627, 16
      %v3664 = vrot.slane %v3662, 1
      %v3665 = vsel %vm1161, %v3660, %v3664
      %v3666 = vshrl.u32 %v3627, 16
      %v3668 = vor.u32 %v3666, %v3664
      %v3670 = vshll.u32 %v3628, 16
      %v3672 = vrot.slane %v3670, 1
      %v3673 = vsel %vm1161, %v3668, %v3672
      %v3674 = vshrl.u32 %v3628, 16
      %v3676 = vor.u32 %v3674, %v3672
      %v3678 = vshll.u32 %v3629, 16
      %v3680 = vrot.slane %v3678, 1
      %v3681 = vsel %vm1161, %v3676, %v3680
      %v3682 = vshrl.u32 %v3629, 16
      %v3684 = vor.u32 %v3682, %v3680
      %v3686 = vshll.u32 %v3630, 16
      %v3688 = vrot.slane %v3686, 1
      %v3689 = vsel %vm1161, %v3684, %v3688
      %v3690 = vshrl.u32 %v3630, 16
      %v3692 = vor.u32 %v3690, %v3688
      %v3694 = vshll.u32 %v3631, 16
      %v3696 = vrot.slane %v3694, 1
      %v3697 = vsel %vm1161, %v3692, %v3696
      %v3698 = vshrl.u32 %v3631, 16
      %v3700 = vor.u32 %v3698, %v3696
      %v3702 = vshll.u32 %v3632, 16
      %v3704 = vrot.slane %v3702, 1
      %v3705 = vsel %vm1161, %v3700, %v3704
      %v3706 = vshrl.u32 %v3632, 16
      %v3708 = vor.u32 %v3706, %v3704
      %v3710 = vshll.u32 %v3633, 16
      %v3712 = vrot.slane %v3710, 1
      %v3713 = vsel %vm1161, %v3708, %v3712
      %v3714 = vshrl.u32 %v3633, 16
      %v3716 = vor.u32 %v3714, %v3712
      %v3718 = vshll.u32 %v3634, 16
      %v3720 = vrot.slane %v3718, 1
      %v3721 = vsel %vm1161, %v3716, %v3720
      %v3722 = vshrl.u32 %v3634, 16
      %v3724 = vor.u32 %v3722, %v3720
      %v3726 = vshll.u32 %v3635, 16
      %v3728 = vrot.slane %v3726, 1
      %v3729 = vsel %vm1161, %v3724, %v3728
      %v3730 = vshrl.u32 %v3635, 16
      %v3732 = vor.u32 %v3730, %v3728
      %v3734 = vshll.u32 %v3636, 16
      %v3736 = vrot.slane %v3734, 1
      %v3737 = vsel %vm1161, %v3732, %v3736
      %v3738 = vshrl.u32 %v3636, 16
      %v3740 = vor.u32 %v3738, %v3736
      %v3742 = vshll.u32 %v3637, 16
      %v3744 = vrot.slane %v3742, 1
      %v3745 = vsel %vm1161, %v3740, %v3744
      %v3746 = vshrl.u32 %v3637, 16
      %v3748 = vor.u32 %v3746, %v3744
      %v3750 = vshll.u32 %v3638, 16
      %v3752 = vrot.slane %v3750, 1
      %v3753 = vsel %vm1161, %v3748, %v3752
      %v3754 = vshrl.u32 %v3638, 16
      %v3756 = vor.u32 %v3754, %v3752
      %v3758 = vshll.u32 %v3639, 16
      %v3760 = vrot.slane %v3758, 1
      %v3761 = vsel %vm1161, %v3756, %v3760
      %v3762 = vshrl.u32 %v3639, 16
      %v3764 = vor.u32 %v3762, %v3760
      %v3766 = vshll.u32 %v3640, 16
      %v3768 = vrot.slane %v3766, 1
      %v3769 = vsel %vm1161, %v3764, %v3768
      %v3770 = vshrl.u32 %v3640, 16
      %v3772 = vor.u32 %v3770, %v3768
      %v3774 = vshll.u32 %v3641, 16
      %v3776 = vrot.slane %v3774, 1
      %v3777 = vsel %vm1161, %v3772, %v3776
      %v3778 = vshrl.u32 %v3641, 16
      %v3780 = vor.u32 %v3778, %v3776
      %v3782 = vshll.u32 %v3642, 16
      %v3784 = vrot.slane %v3782, 1
      %v3785 = vsel %vm1161, %v3780, %v3784
      %v3786 = vshrl.u32 %v3642, 16
      %v3788 = vor.u32 %v3786, %v3784
      %v3790 = vshll.u32 %v3643, 16
      %v3792 = vrot.slane %v3790, 1
      %v3793 = vsel %vm1161, %v3788, %v3792
      %v3794 = vshrl.u32 %v3643, 16
      %v3796 = vor.u32 %v3794, %v3792
      %v3798 = vshll.u32 %v3644, 16
      %v3800 = vrot.slane %v3798, 1
      %v3801 = vsel %vm1161, %v3796, %v3800
      %v3802 = vshrl.u32 %v3644, 16
      %v3804 = vor.u32 %v3802, %v3800
      %v3806 = vshll.u32 %v3645, 16
      %v3808 = vrot.slane %v3806, 1
      %v3809 = vsel %vm1161, %v3804, %v3808
      %v3810 = vshrl.u32 %v3645, 16
      %v3812 = vor.u32 %v3810, %v3808
      %v3814 = vshll.u32 %v3646, 16
      %v3816 = vrot.slane %v3814, 1
      %v3817 = vsel %vm1161, %v3812, %v3816
      %v3818 = vshrl.u32 %v3646, 16
      %v3820 = vor.u32 %v3818, %v3816
      %v3822 = vshll.u32 %v3647, 16
      %v3824 = vrot.slane %v3822, 1
      %v3825 = vsel %vm1161, %v3820, %v3824
      %v3826 = vshrl.u32 %v3647, 16
      %v3828 = vor.u32 %v3826, %v3824
      %v3830 = vshll.u32 %v3648, 16
      %v3832 = vrot.slane %v3830, 1
      %v3833 = vsel %vm1161, %v3828, %v3832
      %v3834 = vshrl.u32 %v3648, 16
      %v3836 = vor.u32 %v3834, %v3832
      %v3838 = vshll.u32 %v3649, 16
      %v3840 = vrot.slane %v3838, 1
      %v3841 = vsel %vm1161, %v3836, %v3840
      %v3842 = vshrl.u32 %v3649, 16
      %v3844 = vor.u32 %v3842, %v3840
      %v3846 = vshll.u32 %v3651, 16
      %v3848 = vrot.slane %v3846, 1
      %v3849 = vsel %vm1161, %v3844, %v3848
      %v3851 = vsel %vm354, %v3665, 0
      %v3854 = vsel %vm354, %v3673, 0
      %v3857 = vsel %vm354, %v3681, 0
      %v3860 = vsel %vm354, %v3689, 0
      %v3863 = vsel %vm354, %v3697, 0
      %v3866 = vsel %vm354, %v3705, 0
      %v3869 = vsel %vm354, %v3713, 0
      %v3872 = vsel %vm354, %v3721, 0
      %v3875 = vsel %vm354, %v3729, 0
      %v3878 = vsel %vm354, %v3737, 0
      %v3881 = vsel %vm354, %v3745, 0
      %v3884 = vsel %vm354, %v3753, 0
      %v3887 = vsel %vm354, %v3761, 0
      %v3890 = vsel %vm354, %v3769, 0
      %v3893 = vsel %vm354, %v3777, 0
      %v3896 = vsel %vm354, %v3785, 0
      %v3899 = vsel %vm354, %v3793, 0
      %v3902 = vsel %vm354, %v3801, 0
      %v3905 = vsel %vm354, %v3809, 0
      %v3908 = vsel %vm354, %v3817, 0
      %v3911 = vsel %vm354, %v3825, 0
      %v3914 = vsel %vm354, %v3833, 0
      %v3917 = vsel %vm354, %v3841, 0
      %v3920 = vsel %vm354, %v3849, 0
      %v3923 = vsel %vm1430, %v3653, 0
      %3925 = vmatpush.bf16.msra.mxu0 0
      %3926 = vmatpush.bf16.msra.mxu0 0
      %3927 = vmatpush.bf16.msra.mxu0 0
      %3928 = vmatpush.bf16.msra.mxu0 0
      %3929 = vmatpush.bf16.msra.mxu0 0
      %3930 = vmatpush.bf16.msra.mxu0 0
      %3931 = vmatpush.bf16.msra.mxu0 0
      %3932 = vmatpush.bf16.msra.mxu0 %v3923
      %3933 = vmatmul.bf16.gmra.mxu0 %v3851
      %v3934 = vpop.f32.mrf.mxu0
      %v3935 = vadd.f32 0.0, %v3934
      %v3936 = vpop.f32.mrf.mxu0
      %v3937 = vadd.f32 0.0, %v3936
      %3938 = vmatmul.bf16.gmra.mxu0 %v3854
      %v3939 = vpop.f32.mrf.mxu0
      %v3940 = vadd.f32 0.0, %v3939
      %v3941 = vpop.f32.mrf.mxu0
      %v3942 = vadd.f32 0.0, %v3941
      %3943 = vmatmul.bf16.gmra.mxu0 %v3857
      %v3944 = vpop.f32.mrf.mxu0
      %v3945 = vadd.f32 0.0, %v3944
      %v3946 = vpop.f32.mrf.mxu0
      %v3947 = vadd.f32 0.0, %v3946
      %3948 = vmatmul.bf16.gmra.mxu0 %v3860
      %v3949 = vpop.f32.mrf.mxu0
      %v3950 = vadd.f32 0.0, %v3949
      %v3951 = vpop.f32.mrf.mxu0
      %v3952 = vadd.f32 0.0, %v3951
      %3953 = vmatmul.bf16.gmra.mxu0 %v3863
      %v3954 = vpop.f32.mrf.mxu0
      %v3955 = vadd.f32 0.0, %v3954
      %v3956 = vpop.f32.mrf.mxu0
      %v3957 = vadd.f32 0.0, %v3956
      %3958 = vmatmul.bf16.gmra.mxu0 %v3866
      %v3959 = vpop.f32.mrf.mxu0
      %v3960 = vadd.f32 0.0, %v3959
      %v3961 = vpop.f32.mrf.mxu0
      %v3962 = vadd.f32 0.0, %v3961
      %3963 = vmatmul.bf16.gmra.mxu0 %v3869
      %v3964 = vpop.f32.mrf.mxu0
      %v3965 = vadd.f32 0.0, %v3964
      %v3966 = vpop.f32.mrf.mxu0
      %v3967 = vadd.f32 0.0, %v3966
      %3968 = vmatmul.bf16.gmra.mxu0 %v3872
      %v3969 = vpop.f32.mrf.mxu0
      %v3970 = vadd.f32 0.0, %v3969
      %v3971 = vpop.f32.mrf.mxu0
      %v3972 = vadd.f32 0.0, %v3971
      %3973 = vmatmul.bf16.gmra.mxu0 %v3875
      %v3974 = vpop.f32.mrf.mxu0
      %v3975 = vadd.f32 0.0, %v3974
      %v3976 = vpop.f32.mrf.mxu0
      %v3977 = vadd.f32 0.0, %v3976
      %3978 = vmatmul.bf16.gmra.mxu0 %v3878
      %v3979 = vpop.f32.mrf.mxu0
      %v3980 = vadd.f32 0.0, %v3979
      %v3981 = vpop.f32.mrf.mxu0
      %v3982 = vadd.f32 0.0, %v3981
      %3983 = vmatmul.bf16.gmra.mxu0 %v3881
      %v3984 = vpop.f32.mrf.mxu0
      %v3985 = vadd.f32 0.0, %v3984
      %v3986 = vpop.f32.mrf.mxu0
      %v3987 = vadd.f32 0.0, %v3986
      %3988 = vmatmul.bf16.gmra.mxu0 %v3884
      %v3989 = vpop.f32.mrf.mxu0
      %v3990 = vadd.f32 0.0, %v3989
      %v3991 = vpop.f32.mrf.mxu0
      %v3992 = vadd.f32 0.0, %v3991
      %3993 = vmatmul.bf16.gmra.mxu0 %v3887
      %v3994 = vpop.f32.mrf.mxu0
      %v3995 = vadd.f32 0.0, %v3994
      %v3996 = vpop.f32.mrf.mxu0
      %v3997 = vadd.f32 0.0, %v3996
      %3998 = vmatmul.bf16.gmra.mxu0 %v3890
      %v3999 = vpop.f32.mrf.mxu0
      %v4000 = vadd.f32 0.0, %v3999
      %v4001 = vpop.f32.mrf.mxu0
      %v4002 = vadd.f32 0.0, %v4001
      %4003 = vmatmul.bf16.gmra.mxu0 %v3893
      %v4004 = vpop.f32.mrf.mxu0
      %v4005 = vadd.f32 0.0, %v4004
      %v4006 = vpop.f32.mrf.mxu0
      %v4007 = vadd.f32 0.0, %v4006
      %4008 = vmatmul.bf16.gmra.mxu0 %v3896
      %v4009 = vpop.f32.mrf.mxu0
      %v4010 = vadd.f32 0.0, %v4009
      %v4011 = vpop.f32.mrf.mxu0
      %v4012 = vadd.f32 0.0, %v4011
      %4013 = vmatmul.bf16.gmra.mxu0 %v3899
      %v4014 = vpop.f32.mrf.mxu0
      %v4015 = vadd.f32 0.0, %v4014
      %v4016 = vpop.f32.mrf.mxu0
      %v4017 = vadd.f32 0.0, %v4016
      %4018 = vmatmul.bf16.gmra.mxu0 %v3902
      %v4019 = vpop.f32.mrf.mxu0
      %v4020 = vadd.f32 0.0, %v4019
      %v4021 = vpop.f32.mrf.mxu0
      %v4022 = vadd.f32 0.0, %v4021
      %4023 = vmatmul.bf16.gmra.mxu0 %v3905
      %v4024 = vpop.f32.mrf.mxu0
      %v4025 = vadd.f32 0.0, %v4024
      %v4026 = vpop.f32.mrf.mxu0
      %v4027 = vadd.f32 0.0, %v4026
      %4028 = vmatmul.bf16.gmra.mxu0 %v3908
      %v4029 = vpop.f32.mrf.mxu0
      %v4030 = vadd.f32 0.0, %v4029
      %v4031 = vpop.f32.mrf.mxu0
      %v4032 = vadd.f32 0.0, %v4031
      %4033 = vmatmul.bf16.gmra.mxu0 %v3911
      %v4034 = vpop.f32.mrf.mxu0
      %v4035 = vadd.f32 0.0, %v4034
      %v4036 = vpop.f32.mrf.mxu0
      %v4037 = vadd.f32 0.0, %v4036
      %4038 = vmatmul.bf16.gmra.mxu0 %v3914
      %v4039 = vpop.f32.mrf.mxu0
      %v4040 = vadd.f32 0.0, %v4039
      %v4041 = vpop.f32.mrf.mxu0
      %v4042 = vadd.f32 0.0, %v4041
      %4043 = vmatmul.bf16.gmra.mxu0 %v3917
      %v4044 = vpop.f32.mrf.mxu0
      %v4045 = vadd.f32 0.0, %v4044
      %v4046 = vpop.f32.mrf.mxu0
      %v4047 = vadd.f32 0.0, %v4046
      %4048 = vmatmul.bf16.gmra.mxu0 %v3920
      %v4049 = vpop.f32.mrf.mxu0
      %v4050 = vadd.f32 0.0, %v4049
      %v4051 = vpop.f32.mrf.mxu0
      %v4052 = vadd.f32 0.0, %v4051
      %4053 = vdwg.mxu0
      %v4054 = vsel %vm354, %v3626, 0
      %v4056 = vsel %vm354, %v3627, 0
      %v4058 = vsel %vm354, %v3628, 0
      %v4060 = vsel %vm354, %v3629, 0
      %v4062 = vsel %vm354, %v3630, 0
      %v4064 = vsel %vm354, %v3631, 0
      %v4066 = vsel %vm354, %v3632, 0
      %v4068 = vsel %vm354, %v3633, 0
      %v4070 = vsel %vm354, %v3634, 0
      %v4072 = vsel %vm354, %v3635, 0
      %v4074 = vsel %vm354, %v3636, 0
      %v4076 = vsel %vm354, %v3637, 0
      %v4078 = vsel %vm354, %v3638, 0
      %v4080 = vsel %vm354, %v3639, 0
      %v4082 = vsel %vm354, %v3640, 0
      %v4084 = vsel %vm354, %v3641, 0
      %v4086 = vsel %vm354, %v3642, 0
      %v4088 = vsel %vm354, %v3643, 0
      %v4090 = vsel %vm354, %v3644, 0
      %v4092 = vsel %vm354, %v3645, 0
      %v4094 = vsel %vm354, %v3646, 0
      %v4096 = vsel %vm354, %v3647, 0
      %v4098 = vsel %vm354, %v3648, 0
      %v4100 = vsel %vm354, %v3649, 0
      %v4103 = vsel %vm1430, %v3650, 0
      %4105 = vmatpush.bf16.msra.mxu0 0
      %4106 = vmatpush.bf16.msra.mxu0 0
      %4107 = vmatpush.bf16.msra.mxu0 0
      %4108 = vmatpush.bf16.msra.mxu0 0
      %4109 = vmatpush.bf16.msra.mxu0 0
      %4110 = vmatpush.bf16.msra.mxu0 0
      %4111 = vmatpush.bf16.msra.mxu0 0
      %4112 = vmatpush.bf16.msra.mxu0 %v4103
      %4113 = vmatmul.bf16.gmra.mxu0 %v4054
      %v4114 = vpop.f32.mrf.mxu0
      %v4115 = vadd.f32 %v3935, %v4114
      %v4116 = vpop.f32.mrf.mxu0
      %v4117 = vadd.f32 %v3937, %v4116
      %4118 = vmatmul.bf16.gmra.mxu0 %v4056
      %v4119 = vpop.f32.mrf.mxu0
      %v4120 = vadd.f32 %v3940, %v4119
      %v4121 = vpop.f32.mrf.mxu0
      %v4122 = vadd.f32 %v3942, %v4121
      %4123 = vmatmul.bf16.gmra.mxu0 %v4058
      %v4124 = vpop.f32.mrf.mxu0
      %v4125 = vadd.f32 %v3945, %v4124
      %v4126 = vpop.f32.mrf.mxu0
      %v4127 = vadd.f32 %v3947, %v4126
      %4128 = vmatmul.bf16.gmra.mxu0 %v4060
      %v4129 = vpop.f32.mrf.mxu0
      %v4130 = vadd.f32 %v3950, %v4129
      %v4131 = vpop.f32.mrf.mxu0
      %v4132 = vadd.f32 %v3952, %v4131
      %4133 = vmatmul.bf16.gmra.mxu0 %v4062
      %v4134 = vpop.f32.mrf.mxu0
      %v4135 = vadd.f32 %v3955, %v4134
      %v4136 = vpop.f32.mrf.mxu0
      %v4137 = vadd.f32 %v3957, %v4136
      %4138 = vmatmul.bf16.gmra.mxu0 %v4064
      %v4139 = vpop.f32.mrf.mxu0
      %v4140 = vadd.f32 %v3960, %v4139
      %v4141 = vpop.f32.mrf.mxu0
      %v4142 = vadd.f32 %v3962, %v4141
      %4143 = vmatmul.bf16.gmra.mxu0 %v4066
      %v4144 = vpop.f32.mrf.mxu0
      %v4145 = vadd.f32 %v3965, %v4144
      %v4146 = vpop.f32.mrf.mxu0
      %v4147 = vadd.f32 %v3967, %v4146
      %4148 = vmatmul.bf16.gmra.mxu0 %v4068
      %v4149 = vpop.f32.mrf.mxu0
      %v4150 = vadd.f32 %v3970, %v4149
      %v4151 = vpop.f32.mrf.mxu0
      %v4152 = vadd.f32 %v3972, %v4151
      %4153 = vmatmul.bf16.gmra.mxu0 %v4070
      %v4154 = vpop.f32.mrf.mxu0
      %v4155 = vadd.f32 %v3975, %v4154
      %v4156 = vpop.f32.mrf.mxu0
      %v4157 = vadd.f32 %v3977, %v4156
      %4158 = vmatmul.bf16.gmra.mxu0 %v4072
      %v4159 = vpop.f32.mrf.mxu0
      %v4160 = vadd.f32 %v3980, %v4159
      %v4161 = vpop.f32.mrf.mxu0
      %v4162 = vadd.f32 %v3982, %v4161
      %4163 = vmatmul.bf16.gmra.mxu0 %v4074
      %v4164 = vpop.f32.mrf.mxu0
      %v4165 = vadd.f32 %v3985, %v4164
      %v4166 = vpop.f32.mrf.mxu0
      %v4167 = vadd.f32 %v3987, %v4166
      %4168 = vmatmul.bf16.gmra.mxu0 %v4076
      %v4169 = vpop.f32.mrf.mxu0
      %v4170 = vadd.f32 %v3990, %v4169
      %v4171 = vpop.f32.mrf.mxu0
      %v4172 = vadd.f32 %v3992, %v4171
      %4173 = vmatmul.bf16.gmra.mxu0 %v4078
      %v4174 = vpop.f32.mrf.mxu0
      %v4175 = vadd.f32 %v3995, %v4174
      %v4176 = vpop.f32.mrf.mxu0
      %v4177 = vadd.f32 %v3997, %v4176
      %4178 = vmatmul.bf16.gmra.mxu0 %v4080
      %v4179 = vpop.f32.mrf.mxu0
      %v4180 = vadd.f32 %v4000, %v4179
      %v4181 = vpop.f32.mrf.mxu0
      %v4182 = vadd.f32 %v4002, %v4181
      %4183 = vmatmul.bf16.gmra.mxu0 %v4082
      %v4184 = vpop.f32.mrf.mxu0
      %v4185 = vadd.f32 %v4005, %v4184
      %v4186 = vpop.f32.mrf.mxu0
      %v4187 = vadd.f32 %v4007, %v4186
      %4188 = vmatmul.bf16.gmra.mxu0 %v4084
      %v4189 = vpop.f32.mrf.mxu0
      %v4190 = vadd.f32 %v4010, %v4189
      %v4191 = vpop.f32.mrf.mxu0
      %v4192 = vadd.f32 %v4012, %v4191
      %4193 = vmatmul.bf16.gmra.mxu0 %v4086
      %v4194 = vpop.f32.mrf.mxu0
      %v4195 = vadd.f32 %v4015, %v4194
      %v4196 = vpop.f32.mrf.mxu0
      %v4197 = vadd.f32 %v4017, %v4196
      %4198 = vmatmul.bf16.gmra.mxu0 %v4088
      %v4199 = vpop.f32.mrf.mxu0
      %v4200 = vadd.f32 %v4020, %v4199
      %v4201 = vpop.f32.mrf.mxu0
      %v4202 = vadd.f32 %v4022, %v4201
      %4203 = vmatmul.bf16.gmra.mxu0 %v4090
      %v4204 = vpop.f32.mrf.mxu0
      %v4205 = vadd.f32 %v4025, %v4204
      %v4206 = vpop.f32.mrf.mxu0
      %v4207 = vadd.f32 %v4027, %v4206
      %4208 = vmatmul.bf16.gmra.mxu0 %v4092
      %v4209 = vpop.f32.mrf.mxu0
      %v4210 = vadd.f32 %v4030, %v4209
      %v4211 = vpop.f32.mrf.mxu0
      %v4212 = vadd.f32 %v4032, %v4211
      %4213 = vmatmul.bf16.gmra.mxu0 %v4094
      %v4214 = vpop.f32.mrf.mxu0
      %v4215 = vadd.f32 %v4035, %v4214
      %v4216 = vpop.f32.mrf.mxu0
      %v4217 = vadd.f32 %v4037, %v4216
      %4218 = vmatmul.bf16.gmra.mxu0 %v4096
      %v4219 = vpop.f32.mrf.mxu0
      %v4220 = vadd.f32 %v4040, %v4219
      %v4221 = vpop.f32.mrf.mxu0
      %v4222 = vadd.f32 %v4042, %v4221
      %4223 = vmatmul.bf16.gmra.mxu0 %v4098
      %v4224 = vpop.f32.mrf.mxu0
      %v4225 = vadd.f32 %v4045, %v4224
      %v4226 = vpop.f32.mrf.mxu0
      %v4227 = vadd.f32 %v4047, %v4226
      %4228 = vmatmul.bf16.gmra.mxu0 %v4100
      %v4229 = vpop.f32.mrf.mxu0
      %v4230 = vadd.f32 %v4050, %v4229
      %v4231 = vpop.f32.mrf.mxu0
      %v4232 = vadd.f32 %v4052, %v4231
      %4233 = vdwg.mxu0
      %s4234 = scalar_lea.vmem %s7, 4
      %v4235 = vld [vmem:[%s4234] sm:$0x3]
      %v4261 = vrot.slane %v3626, 1
      %v4262 = vrot.slane %v3627, 1
      %v4263 = vsel %vm1738, %v4261, %v4262
      %v4264 = vrot.slane %v3628, 1
      %v4265 = vsel %vm1738, %v4262, %v4264
      %v4266 = vrot.slane %v3629, 1
      %v4267 = vsel %vm1738, %v4264, %v4266
      %v4268 = vrot.slane %v3630, 1
      %v4269 = vsel %vm1738, %v4266, %v4268
      %v4270 = vrot.slane %v3631, 1
      %v4271 = vsel %vm1738, %v4268, %v4270
      %v4272 = vrot.slane %v3632, 1
      %v4273 = vsel %vm1738, %v4270, %v4272
      %v4274 = vrot.slane %v3633, 1
      %v4275 = vsel %vm1738, %v4272, %v4274
      %v4276 = vrot.slane %v3634, 1
      %v4277 = vsel %vm1738, %v4274, %v4276
      %v4278 = vrot.slane %v3635, 1
      %v4279 = vsel %vm1738, %v4276, %v4278
      %v4280 = vrot.slane %v3636, 1
      %v4281 = vsel %vm1738, %v4278, %v4280
      %v4282 = vrot.slane %v3637, 1
      %v4283 = vsel %vm1738, %v4280, %v4282
      %v4284 = vrot.slane %v3638, 1
      %v4285 = vsel %vm1738, %v4282, %v4284
      %v4286 = vrot.slane %v3639, 1
      %v4287 = vsel %vm1738, %v4284, %v4286
      %v4288 = vrot.slane %v3640, 1
      %v4289 = vsel %vm1738, %v4286, %v4288
      %v4290 = vrot.slane %v3641, 1
      %v4291 = vsel %vm1738, %v4288, %v4290
      %v4292 = vrot.slane %v3642, 1
      %v4293 = vsel %vm1738, %v4290, %v4292
      %v4294 = vrot.slane %v3643, 1
      %v4295 = vsel %vm1738, %v4292, %v4294
      %v4296 = vrot.slane %v3644, 1
      %v4297 = vsel %vm1738, %v4294, %v4296
      %v4298 = vrot.slane %v3645, 1
      %v4299 = vsel %vm1738, %v4296, %v4298
      %v4300 = vrot.slane %v3646, 1
      %v4301 = vsel %vm1738, %v4298, %v4300
      %v4302 = vrot.slane %v3647, 1
      %v4303 = vsel %vm1738, %v4300, %v4302
      %v4304 = vrot.slane %v3648, 1
      %v4305 = vsel %vm1738, %v4302, %v4304
      %v4306 = vrot.slane %v3649, 1
      %v4307 = vsel %vm1738, %v4304, %v4306
      %v4308 = vrot.slane %v3651, 1
      %v4309 = vsel %vm1738, %v4306, %v4308
      %v4311 = vsel %vm354, %v4263, 0
      %v4314 = vsel %vm354, %v4265, 0
      %v4317 = vsel %vm354, %v4267, 0
      %v4320 = vsel %vm354, %v4269, 0
      %v4323 = vsel %vm354, %v4271, 0
      %v4326 = vsel %vm354, %v4273, 0
      %v4329 = vsel %vm354, %v4275, 0
      %v4332 = vsel %vm354, %v4277, 0
      %v4335 = vsel %vm354, %v4279, 0
      %v4338 = vsel %vm354, %v4281, 0
      %v4341 = vsel %vm354, %v4283, 0
      %v4344 = vsel %vm354, %v4285, 0
      %v4347 = vsel %vm354, %v4287, 0
      %v4350 = vsel %vm354, %v4289, 0
      %v4353 = vsel %vm354, %v4291, 0
      %v4356 = vsel %vm354, %v4293, 0
      %v4359 = vsel %vm354, %v4295, 0
      %v4362 = vsel %vm354, %v4297, 0
      %v4365 = vsel %vm354, %v4299, 0
      %v4368 = vsel %vm354, %v4301, 0
      %v4371 = vsel %vm354, %v4303, 0
      %v4374 = vsel %vm354, %v4305, 0
      %v4377 = vsel %vm354, %v4307, 0
      %v4380 = vsel %vm354, %v4309, 0
      %v4383 = vsel %vm1430, %v4235, 0
      %4385 = vmatpush.bf16.msra.mxu0 0
      %4386 = vmatpush.bf16.msra.mxu0 0
      %4387 = vmatpush.bf16.msra.mxu0 0
      %4388 = vmatpush.bf16.msra.mxu0 0
      %4389 = vmatpush.bf16.msra.mxu0 0
      %4390 = vmatpush.bf16.msra.mxu0 0
      %4391 = vmatpush.bf16.msra.mxu0 0
      %4392 = vmatpush.bf16.msra.mxu0 %v4383
      %4393 = vmatmul.bf16.gmra.mxu0 %v4311
      %v4394 = vpop.f32.mrf.mxu0
      %v4395 = vadd.f32 0.0, %v4394
      %v4396 = vpop.f32.mrf.mxu0
      %v4397 = vadd.f32 0.0, %v4396
      %4398 = vmatmul.bf16.gmra.mxu0 %v4314
      %v4399 = vpop.f32.mrf.mxu0
      %v4400 = vadd.f32 0.0, %v4399
      %v4401 = vpop.f32.mrf.mxu0
      %v4402 = vadd.f32 0.0, %v4401
      %4403 = vmatmul.bf16.gmra.mxu0 %v4317
      %v4404 = vpop.f32.mrf.mxu0
      %v4405 = vadd.f32 0.0, %v4404
      %v4406 = vpop.f32.mrf.mxu0
      %v4407 = vadd.f32 0.0, %v4406
      %4408 = vmatmul.bf16.gmra.mxu0 %v4320
      %v4409 = vpop.f32.mrf.mxu0
      %v4410 = vadd.f32 0.0, %v4409
      %v4411 = vpop.f32.mrf.mxu0
      %v4412 = vadd.f32 0.0, %v4411
      %4413 = vmatmul.bf16.gmra.mxu0 %v4323
      %v4414 = vpop.f32.mrf.mxu0
      %v4415 = vadd.f32 0.0, %v4414
      %v4416 = vpop.f32.mrf.mxu0
      %v4417 = vadd.f32 0.0, %v4416
      %4418 = vmatmul.bf16.gmra.mxu0 %v4326
      %v4419 = vpop.f32.mrf.mxu0
      %v4420 = vadd.f32 0.0, %v4419
      %v4421 = vpop.f32.mrf.mxu0
      %v4422 = vadd.f32 0.0, %v4421
      %4423 = vmatmul.bf16.gmra.mxu0 %v4329
      %v4424 = vpop.f32.mrf.mxu0
      %v4425 = vadd.f32 0.0, %v4424
      %v4426 = vpop.f32.mrf.mxu0
      %v4427 = vadd.f32 0.0, %v4426
      %4428 = vmatmul.bf16.gmra.mxu0 %v4332
      %v4429 = vpop.f32.mrf.mxu0
      %v4430 = vadd.f32 0.0, %v4429
      %v4431 = vpop.f32.mrf.mxu0
      %v4432 = vadd.f32 0.0, %v4431
      %4433 = vmatmul.bf16.gmra.mxu0 %v4335
      %v4434 = vpop.f32.mrf.mxu0
      %v4435 = vadd.f32 0.0, %v4434
      %v4436 = vpop.f32.mrf.mxu0
      %v4437 = vadd.f32 0.0, %v4436
      %4438 = vmatmul.bf16.gmra.mxu0 %v4338
      %v4439 = vpop.f32.mrf.mxu0
      %v4440 = vadd.f32 0.0, %v4439
      %v4441 = vpop.f32.mrf.mxu0
      %v4442 = vadd.f32 0.0, %v4441
      %4443 = vmatmul.bf16.gmra.mxu0 %v4341
      %v4444 = vpop.f32.mrf.mxu0
      %v4445 = vadd.f32 0.0, %v4444
      %v4446 = vpop.f32.mrf.mxu0
      %v4447 = vadd.f32 0.0, %v4446
      %4448 = vmatmul.bf16.gmra.mxu0 %v4344
      %v4449 = vpop.f32.mrf.mxu0
      %v4450 = vadd.f32 0.0, %v4449
      %v4451 = vpop.f32.mrf.mxu0
      %v4452 = vadd.f32 0.0, %v4451
      %4453 = vmatmul.bf16.gmra.mxu0 %v4347
      %v4454 = vpop.f32.mrf.mxu0
      %v4455 = vadd.f32 0.0, %v4454
      %v4456 = vpop.f32.mrf.mxu0
      %v4457 = vadd.f32 0.0, %v4456
      %4458 = vmatmul.bf16.gmra.mxu0 %v4350
      %v4459 = vpop.f32.mrf.mxu0
      %v4460 = vadd.f32 0.0, %v4459
      %v4461 = vpop.f32.mrf.mxu0
      %v4462 = vadd.f32 0.0, %v4461
      %4463 = vmatmul.bf16.gmra.mxu0 %v4353
      %v4464 = vpop.f32.mrf.mxu0
      %v4465 = vadd.f32 0.0, %v4464
      %v4466 = vpop.f32.mrf.mxu0
      %v4467 = vadd.f32 0.0, %v4466
      %4468 = vmatmul.bf16.gmra.mxu0 %v4356
      %v4469 = vpop.f32.mrf.mxu0
      %v4470 = vadd.f32 0.0, %v4469
      %v4471 = vpop.f32.mrf.mxu0
      %v4472 = vadd.f32 0.0, %v4471
      %4473 = vmatmul.bf16.gmra.mxu0 %v4359
      %v4474 = vpop.f32.mrf.mxu0
      %v4475 = vadd.f32 0.0, %v4474
      %v4476 = vpop.f32.mrf.mxu0
      %v4477 = vadd.f32 0.0, %v4476
      %4478 = vmatmul.bf16.gmra.mxu0 %v4362
      %v4479 = vpop.f32.mrf.mxu0
      %v4480 = vadd.f32 0.0, %v4479
      %v4481 = vpop.f32.mrf.mxu0
      %v4482 = vadd.f32 0.0, %v4481
      %4483 = vmatmul.bf16.gmra.mxu0 %v4365
      %v4484 = vpop.f32.mrf.mxu0
      %v4485 = vadd.f32 0.0, %v4484
      %v4486 = vpop.f32.mrf.mxu0
      %v4487 = vadd.f32 0.0, %v4486
      %4488 = vmatmul.bf16.gmra.mxu0 %v4368
      %v4489 = vpop.f32.mrf.mxu0
      %v4490 = vadd.f32 0.0, %v4489
      %v4491 = vpop.f32.mrf.mxu0
      %v4492 = vadd.f32 0.0, %v4491
      %4493 = vmatmul.bf16.gmra.mxu0 %v4371
      %v4494 = vpop.f32.mrf.mxu0
      %v4495 = vadd.f32 0.0, %v4494
      %v4496 = vpop.f32.mrf.mxu0
      %v4497 = vadd.f32 0.0, %v4496
      %4498 = vmatmul.bf16.gmra.mxu0 %v4374
      %v4499 = vpop.f32.mrf.mxu0
      %v4500 = vadd.f32 0.0, %v4499
      %v4501 = vpop.f32.mrf.mxu0
      %v4502 = vadd.f32 0.0, %v4501
      %4503 = vmatmul.bf16.gmra.mxu0 %v4377
      %v4504 = vpop.f32.mrf.mxu0
      %v4505 = vadd.f32 0.0, %v4504
      %v4506 = vpop.f32.mrf.mxu0
      %v4507 = vadd.f32 0.0, %v4506
      %4508 = vmatmul.bf16.gmra.mxu0 %v4380
      %v4509 = vpop.f32.mrf.mxu0
      %v4510 = vadd.f32 0.0, %v4509
      %v4511 = vpop.f32.mrf.mxu0
      %v4512 = vadd.f32 0.0, %v4511
      %4513 = vdwg.mxu0
      %v4514 = vadd.f32 %v4115, %v4395
      %v4515 = vadd.f32 %v4117, %v4397
      %v4516 = vadd.f32 %v4120, %v4400
      %v4517 = vadd.f32 %v4122, %v4402
      %v4518 = vadd.f32 %v4125, %v4405
      %v4519 = vadd.f32 %v4127, %v4407
      %v4520 = vadd.f32 %v4130, %v4410
      %v4521 = vadd.f32 %v4132, %v4412
      %v4522 = vadd.f32 %v4135, %v4415
      %v4523 = vadd.f32 %v4137, %v4417
      %v4524 = vadd.f32 %v4140, %v4420
      %v4525 = vadd.f32 %v4142, %v4422
      %v4526 = vadd.f32 %v4145, %v4425
      %v4527 = vadd.f32 %v4147, %v4427
      %v4528 = vadd.f32 %v4150, %v4430
      %v4529 = vadd.f32 %v4152, %v4432
      %v4530 = vadd.f32 %v4155, %v4435
      %v4531 = vadd.f32 %v4157, %v4437
      %v4532 = vadd.f32 %v4160, %v4440
      %v4533 = vadd.f32 %v4162, %v4442
      %v4534 = vadd.f32 %v4165, %v4445
      %v4535 = vadd.f32 %v4167, %v4447
      %v4536 = vadd.f32 %v4170, %v4450
      %v4537 = vadd.f32 %v4172, %v4452
      %v4538 = vadd.f32 %v4175, %v4455
      %v4539 = vadd.f32 %v4177, %v4457
      %v4540 = vadd.f32 %v4180, %v4460
      %v4541 = vadd.f32 %v4182, %v4462
      %v4542 = vadd.f32 %v4185, %v4465
      %v4543 = vadd.f32 %v4187, %v4467
      %v4544 = vadd.f32 %v4190, %v4470
      %v4545 = vadd.f32 %v4192, %v4472
      %v4546 = vadd.f32 %v4195, %v4475
      %v4547 = vadd.f32 %v4197, %v4477
      %v4548 = vadd.f32 %v4200, %v4480
      %v4549 = vadd.f32 %v4202, %v4482
      %v4550 = vadd.f32 %v4205, %v4485
      %v4551 = vadd.f32 %v4207, %v4487
      %v4552 = vadd.f32 %v4210, %v4490
      %v4553 = vadd.f32 %v4212, %v4492
      %v4554 = vadd.f32 %v4215, %v4495
      %v4555 = vadd.f32 %v4217, %v4497
      %v4556 = vadd.f32 %v4220, %v4500
      %v4557 = vadd.f32 %v4222, %v4502
      %v4558 = vadd.f32 %v4225, %v4505
      %v4559 = vadd.f32 %v4227, %v4507
      %v4560 = vadd.f32 %v4230, %v4510
      %v4561 = vadd.f32 %v4232, %v4512
      %v4562 = vpack.c.bf16 %v3575, %v3574
      %v4563 = vpack.c.bf16 %v3577, %v3576
      %v4564 = vpack.c.bf16 %v3579, %v3578
      %v4565 = vpack.c.bf16 %v3581, %v3580
      %v4566 = vpack.c.bf16 %v3583, %v3582
      %v4567 = vpack.c.bf16 %v3585, %v3584
      %v4568 = vpack.c.bf16 %v3587, %v3586
      %v4569 = vpack.c.bf16 %v3589, %v3588
      %v4570 = vpack.c.bf16 %v3591, %v3590
      %v4571 = vpack.c.bf16 %v3593, %v3592
      %v4572 = vpack.c.bf16 %v3595, %v3594
      %v4573 = vpack.c.bf16 %v3597, %v3596
      %v4574 = vpack.c.bf16 %v3599, %v3598
      %v4575 = vpack.c.bf16 %v3601, %v3600
      %v4576 = vpack.c.bf16 %v3603, %v3602
      %v4577 = vpack.c.bf16 %v3605, %v3604
      %v4578 = vpack.c.bf16 %v3607, %v3606
      %v4579 = vpack.c.bf16 %v3609, %v3608
      %v4580 = vpack.c.bf16 %v3611, %v3610
      %v4581 = vpack.c.bf16 %v3613, %v3612
      %v4582 = vpack.c.bf16 %v3615, %v3614
      %v4583 = vpack.c.bf16 %v3617, %v3616
      %v4584 = vpack.c.bf16 %v3619, %v3618
      %v4585 = vpack.c.bf16 %v3621, %v3620
      %s4586 = scalar_lea.vmem %s7, 6
      %v4587 = vld [vmem:[%s4586] sm:$0x3]
      %v4589 = vsel %vm354, %v4562, 0
      %v4592 = vsel %vm354, %v4563, 0
      %v4595 = vsel %vm354, %v4564, 0
      %v4598 = vsel %vm354, %v4565, 0
      %v4601 = vsel %vm354, %v4566, 0
      %v4604 = vsel %vm354, %v4567, 0
      %v4607 = vsel %vm354, %v4568, 0
      %v4610 = vsel %vm354, %v4569, 0
      %v4613 = vsel %vm354, %v4570, 0
      %v4616 = vsel %vm354, %v4571, 0
      %v4619 = vsel %vm354, %v4572, 0
      %v4622 = vsel %vm354, %v4573, 0
      %v4625 = vsel %vm354, %v4574, 0
      %v4628 = vsel %vm354, %v4575, 0
      %v4631 = vsel %vm354, %v4576, 0
      %v4634 = vsel %vm354, %v4577, 0
      %v4637 = vsel %vm354, %v4578, 0
      %v4640 = vsel %vm354, %v4579, 0
      %v4643 = vsel %vm354, %v4580, 0
      %v4646 = vsel %vm354, %v4581, 0
      %v4649 = vsel %vm354, %v4582, 0
      %v4652 = vsel %vm354, %v4583, 0
      %v4655 = vsel %vm354, %v4584, 0
      %v4658 = vsel %vm354, %v4585, 0
      %v4661 = vsel %vm1430, %v4587, 0
      %4663 = vmatpush.bf16.msra.mxu0 0
      %4664 = vmatpush.bf16.msra.mxu0 0
      %4665 = vmatpush.bf16.msra.mxu0 0
      %4666 = vmatpush.bf16.msra.mxu0 0
      %4667 = vmatpush.bf16.msra.mxu0 0
      %4668 = vmatpush.bf16.msra.mxu0 0
      %4669 = vmatpush.bf16.msra.mxu0 0
      %4670 = vmatpush.bf16.msra.mxu0 %v4661
      %4671 = vmatmul.bf16.gmra.mxu0 %v4589
      %v4672 = vpop.f32.mrf.mxu0
      %v4673 = vadd.f32 0.0, %v4672
      %v4674 = vpop.f32.mrf.mxu0
      %v4675 = vadd.f32 0.0, %v4674
      %4676 = vmatmul.bf16.gmra.mxu0 %v4592
      %v4677 = vpop.f32.mrf.mxu0
      %v4678 = vadd.f32 0.0, %v4677
      %v4679 = vpop.f32.mrf.mxu0
      %v4680 = vadd.f32 0.0, %v4679
      %4681 = vmatmul.bf16.gmra.mxu0 %v4595
      %v4682 = vpop.f32.mrf.mxu0
      %v4683 = vadd.f32 0.0, %v4682
      %v4684 = vpop.f32.mrf.mxu0
      %v4685 = vadd.f32 0.0, %v4684
      %4686 = vmatmul.bf16.gmra.mxu0 %v4598
      %v4687 = vpop.f32.mrf.mxu0
      %v4688 = vadd.f32 0.0, %v4687
      %v4689 = vpop.f32.mrf.mxu0
      %v4690 = vadd.f32 0.0, %v4689
      %4691 = vmatmul.bf16.gmra.mxu0 %v4601
      %v4692 = vpop.f32.mrf.mxu0
      %v4693 = vadd.f32 0.0, %v4692
      %v4694 = vpop.f32.mrf.mxu0
      %v4695 = vadd.f32 0.0, %v4694
      %4696 = vmatmul.bf16.gmra.mxu0 %v4604
      %v4697 = vpop.f32.mrf.mxu0
      %v4698 = vadd.f32 0.0, %v4697
      %v4699 = vpop.f32.mrf.mxu0
      %v4700 = vadd.f32 0.0, %v4699
      %4701 = vmatmul.bf16.gmra.mxu0 %v4607
      %v4702 = vpop.f32.mrf.mxu0
      %v4703 = vadd.f32 0.0, %v4702
      %v4704 = vpop.f32.mrf.mxu0
      %v4705 = vadd.f32 0.0, %v4704
      %4706 = vmatmul.bf16.gmra.mxu0 %v4610
      %v4707 = vpop.f32.mrf.mxu0
      %v4708 = vadd.f32 0.0, %v4707
      %v4709 = vpop.f32.mrf.mxu0
      %v4710 = vadd.f32 0.0, %v4709
      %4711 = vmatmul.bf16.gmra.mxu0 %v4613
      %v4712 = vpop.f32.mrf.mxu0
      %v4713 = vadd.f32 0.0, %v4712
      %v4714 = vpop.f32.mrf.mxu0
      %v4715 = vadd.f32 0.0, %v4714
      %4716 = vmatmul.bf16.gmra.mxu0 %v4616
      %v4717 = vpop.f32.mrf.mxu0
      %v4718 = vadd.f32 0.0, %v4717
      %v4719 = vpop.f32.mrf.mxu0
      %v4720 = vadd.f32 0.0, %v4719
      %4721 = vmatmul.bf16.gmra.mxu0 %v4619
      %v4722 = vpop.f32.mrf.mxu0
      %v4723 = vadd.f32 0.0, %v4722
      %v4724 = vpop.f32.mrf.mxu0
      %v4725 = vadd.f32 0.0, %v4724
      %4726 = vmatmul.bf16.gmra.mxu0 %v4622
      %v4727 = vpop.f32.mrf.mxu0
      %v4728 = vadd.f32 0.0, %v4727
      %v4729 = vpop.f32.mrf.mxu0
      %v4730 = vadd.f32 0.0, %v4729
      %4731 = vmatmul.bf16.gmra.mxu0 %v4625
      %v4732 = vpop.f32.mrf.mxu0
      %v4733 = vadd.f32 0.0, %v4732
      %v4734 = vpop.f32.mrf.mxu0
      %v4735 = vadd.f32 0.0, %v4734
      %4736 = vmatmul.bf16.gmra.mxu0 %v4628
      %v4737 = vpop.f32.mrf.mxu0
      %v4738 = vadd.f32 0.0, %v4737
      %v4739 = vpop.f32.mrf.mxu0
      %v4740 = vadd.f32 0.0, %v4739
      %4741 = vmatmul.bf16.gmra.mxu0 %v4631
      %v4742 = vpop.f32.mrf.mxu0
      %v4743 = vadd.f32 0.0, %v4742
      %v4744 = vpop.f32.mrf.mxu0
      %v4745 = vadd.f32 0.0, %v4744
      %4746 = vmatmul.bf16.gmra.mxu0 %v4634
      %v4747 = vpop.f32.mrf.mxu0
      %v4748 = vadd.f32 0.0, %v4747
      %v4749 = vpop.f32.mrf.mxu0
      %v4750 = vadd.f32 0.0, %v4749
      %4751 = vmatmul.bf16.gmra.mxu0 %v4637
      %v4752 = vpop.f32.mrf.mxu0
      %v4753 = vadd.f32 0.0, %v4752
      %v4754 = vpop.f32.mrf.mxu0
      %v4755 = vadd.f32 0.0, %v4754
      %4756 = vmatmul.bf16.gmra.mxu0 %v4640
      %v4757 = vpop.f32.mrf.mxu0
      %v4758 = vadd.f32 0.0, %v4757
      %v4759 = vpop.f32.mrf.mxu0
      %v4760 = vadd.f32 0.0, %v4759
      %4761 = vmatmul.bf16.gmra.mxu0 %v4643
      %v4762 = vpop.f32.mrf.mxu0
      %v4763 = vadd.f32 0.0, %v4762
      %v4764 = vpop.f32.mrf.mxu0
      %v4765 = vadd.f32 0.0, %v4764
      %4766 = vmatmul.bf16.gmra.mxu0 %v4646
      %v4767 = vpop.f32.mrf.mxu0
      %v4768 = vadd.f32 0.0, %v4767
      %v4769 = vpop.f32.mrf.mxu0
      %v4770 = vadd.f32 0.0, %v4769
      %4771 = vmatmul.bf16.gmra.mxu0 %v4649
      %v4772 = vpop.f32.mrf.mxu0
      %v4773 = vadd.f32 0.0, %v4772
      %v4774 = vpop.f32.mrf.mxu0
      %v4775 = vadd.f32 0.0, %v4774
      %4776 = vmatmul.bf16.gmra.mxu0 %v4652
      %v4777 = vpop.f32.mrf.mxu0
      %v4778 = vadd.f32 0.0, %v4777
      %v4779 = vpop.f32.mrf.mxu0
      %v4780 = vadd.f32 0.0, %v4779
      %4781 = vmatmul.bf16.gmra.mxu0 %v4655
      %v4782 = vpop.f32.mrf.mxu0
      %v4783 = vadd.f32 0.0, %v4782
      %v4784 = vpop.f32.mrf.mxu0
      %v4785 = vadd.f32 0.0, %v4784
      %4786 = vmatmul.bf16.gmra.mxu0 %v4658
      %v4787 = vpop.f32.mrf.mxu0
      %v4788 = vadd.f32 0.0, %v4787
      %v4789 = vpop.f32.mrf.mxu0
      %v4790 = vadd.f32 0.0, %v4789
      %4791 = vdwg.mxu0
      %v4792 = vadd.f32 %v4514, %v4673
      %v4793 = vadd.f32 %v4515, %v4675
      %v4794 = vadd.f32 %v4516, %v4678
      %v4795 = vadd.f32 %v4517, %v4680
      %v4796 = vadd.f32 %v4518, %v4683
      %v4797 = vadd.f32 %v4519, %v4685
      %v4798 = vadd.f32 %v4520, %v4688
      %v4799 = vadd.f32 %v4521, %v4690
      %v4800 = vadd.f32 %v4522, %v4693
      %v4801 = vadd.f32 %v4523, %v4695
      %v4802 = vadd.f32 %v4524, %v4698
      %v4803 = vadd.f32 %v4525, %v4700
      %v4804 = vadd.f32 %v4526, %v4703
      %v4805 = vadd.f32 %v4527, %v4705
      %v4806 = vadd.f32 %v4528, %v4708
      %v4807 = vadd.f32 %v4529, %v4710
      %v4808 = vadd.f32 %v4530, %v4713
      %v4809 = vadd.f32 %v4531, %v4715
      %v4810 = vadd.f32 %v4532, %v4718
      %v4811 = vadd.f32 %v4533, %v4720
      %v4812 = vadd.f32 %v4534, %v4723
      %v4813 = vadd.f32 %v4535, %v4725
      %v4814 = vadd.f32 %v4536, %v4728
      %v4815 = vadd.f32 %v4537, %v4730
      %v4816 = vadd.f32 %v4538, %v4733
      %v4817 = vadd.f32 %v4539, %v4735
      %v4818 = vadd.f32 %v4540, %v4738
      %v4819 = vadd.f32 %v4541, %v4740
      %v4820 = vadd.f32 %v4542, %v4743
      %v4821 = vadd.f32 %v4543, %v4745
      %v4822 = vadd.f32 %v4544, %v4748
      %v4823 = vadd.f32 %v4545, %v4750
      %v4824 = vadd.f32 %v4546, %v4753
      %v4825 = vadd.f32 %v4547, %v4755
      %v4826 = vadd.f32 %v4548, %v4758
      %v4827 = vadd.f32 %v4549, %v4760
      %v4828 = vadd.f32 %v4550, %v4763
      %v4829 = vadd.f32 %v4551, %v4765
      %v4830 = vadd.f32 %v4552, %v4768
      %v4831 = vadd.f32 %v4553, %v4770
      %v4832 = vadd.f32 %v4554, %v4773
      %v4833 = vadd.f32 %v4555, %v4775
      %v4834 = vadd.f32 %v4556, %v4778
      %v4835 = vadd.f32 %v4557, %v4780
      %v4836 = vadd.f32 %v4558, %v4783
      %v4837 = vadd.f32 %v4559, %v4785
      %v4838 = vadd.f32 %v4560, %v4788
      %v4839 = vadd.f32 %v4561, %v4790
      %v4840 = vpack.c.bf16 %v3622, %v3622
      %s4841 = scalar_lea.vmem %s7, 8
      %v4842 = vld [vmem:[%s4841] sm:$0x3]
      %v4843 = vshrl.u32 %v4562, 16
      %v4845 = vshll.u32 %v4562, 16
      %v4847 = vrot.slane %v4845, 1
      %v4848 = vor.u32 %v4843, %v4847
      %v4849 = vshll.u32 %v4563, 16
      %v4851 = vrot.slane %v4849, 1
      %v4852 = vsel %vm1161, %v4848, %v4851
      %v4853 = vshrl.u32 %v4563, 16
      %v4855 = vor.u32 %v4853, %v4851
      %v4856 = vshll.u32 %v4564, 16
      %v4858 = vrot.slane %v4856, 1
      %v4859 = vsel %vm1161, %v4855, %v4858
      %v4860 = vshrl.u32 %v4564, 16
      %v4862 = vor.u32 %v4860, %v4858
      %v4863 = vshll.u32 %v4565, 16
      %v4865 = vrot.slane %v4863, 1
      %v4866 = vsel %vm1161, %v4862, %v4865
      %v4867 = vshrl.u32 %v4565, 16
      %v4869 = vor.u32 %v4867, %v4865
      %v4870 = vshll.u32 %v4566, 16
      %v4872 = vrot.slane %v4870, 1
      %v4873 = vsel %vm1161, %v4869, %v4872
      %v4874 = vshrl.u32 %v4566, 16
      %v4876 = vor.u32 %v4874, %v4872
      %v4877 = vshll.u32 %v4567, 16
      %v4879 = vrot.slane %v4877, 1
      %v4880 = vsel %vm1161, %v4876, %v4879
      %v4881 = vshrl.u32 %v4567, 16
      %v4883 = vor.u32 %v4881, %v4879
      %v4884 = vshll.u32 %v4568, 16
      %v4886 = vrot.slane %v4884, 1
      %v4887 = vsel %vm1161, %v4883, %v4886
      %v4888 = vshrl.u32 %v4568, 16
      %v4890 = vor.u32 %v4888, %v4886
      %v4891 = vshll.u32 %v4569, 16
      %v4893 = vrot.slane %v4891, 1
      %v4894 = vsel %vm1161, %v4890, %v4893
      %v4895 = vshrl.u32 %v4569, 16
      %v4897 = vor.u32 %v4895, %v4893
      %v4898 = vshll.u32 %v4570, 16
      %v4900 = vrot.slane %v4898, 1
      %v4901 = vsel %vm1161, %v4897, %v4900
      %v4902 = vshrl.u32 %v4570, 16
      %v4904 = vor.u32 %v4902, %v4900
      %v4905 = vshll.u32 %v4571, 16
      %v4907 = vrot.slane %v4905, 1
      %v4908 = vsel %vm1161, %v4904, %v4907
      %v4909 = vshrl.u32 %v4571, 16
      %v4911 = vor.u32 %v4909, %v4907
      %v4912 = vshll.u32 %v4572, 16
      %v4914 = vrot.slane %v4912, 1
      %v4915 = vsel %vm1161, %v4911, %v4914
      %v4916 = vshrl.u32 %v4572, 16
      %v4918 = vor.u32 %v4916, %v4914
      %v4919 = vshll.u32 %v4573, 16
      %v4921 = vrot.slane %v4919, 1
      %v4922 = vsel %vm1161, %v4918, %v4921
      %v4923 = vshrl.u32 %v4573, 16
      %v4925 = vor.u32 %v4923, %v4921
      %v4926 = vshll.u32 %v4574, 16
      %v4928 = vrot.slane %v4926, 1
      %v4929 = vsel %vm1161, %v4925, %v4928
      %v4930 = vshrl.u32 %v4574, 16
      %v4932 = vor.u32 %v4930, %v4928
      %v4933 = vshll.u32 %v4575, 16
      %v4935 = vrot.slane %v4933, 1
      %v4936 = vsel %vm1161, %v4932, %v4935
      %v4937 = vshrl.u32 %v4575, 16
      %v4939 = vor.u32 %v4937, %v4935
      %v4940 = vshll.u32 %v4576, 16
      %v4942 = vrot.slane %v4940, 1
      %v4943 = vsel %vm1161, %v4939, %v4942
      %v4944 = vshrl.u32 %v4576, 16
      %v4946 = vor.u32 %v4944, %v4942
      %v4947 = vshll.u32 %v4577, 16
      %v4949 = vrot.slane %v4947, 1
      %v4950 = vsel %vm1161, %v4946, %v4949
      %v4951 = vshrl.u32 %v4577, 16
      %v4953 = vor.u32 %v4951, %v4949
      %v4954 = vshll.u32 %v4578, 16
      %v4956 = vrot.slane %v4954, 1
      %v4957 = vsel %vm1161, %v4953, %v4956
      %v4958 = vshrl.u32 %v4578, 16
      %v4960 = vor.u32 %v4958, %v4956
      %v4961 = vshll.u32 %v4579, 16
      %v4963 = vrot.slane %v4961, 1
      %v4964 = vsel %vm1161, %v4960, %v4963
      %v4965 = vshrl.u32 %v4579, 16
      %v4967 = vor.u32 %v4965, %v4963
      %v4968 = vshll.u32 %v4580, 16
      %v4970 = vrot.slane %v4968, 1
      %v4971 = vsel %vm1161, %v4967, %v4970
      %v4972 = vshrl.u32 %v4580, 16
      %v4974 = vor.u32 %v4972, %v4970
      %v4975 = vshll.u32 %v4581, 16
      %v4977 = vrot.slane %v4975, 1
      %v4978 = vsel %vm1161, %v4974, %v4977
      %v4979 = vshrl.u32 %v4581, 16
      %v4981 = vor.u32 %v4979, %v4977
      %v4982 = vshll.u32 %v4582, 16
      %v4984 = vrot.slane %v4982, 1
      %v4985 = vsel %vm1161, %v4981, %v4984
      %v4986 = vshrl.u32 %v4582, 16
      %v4988 = vor.u32 %v4986, %v4984
      %v4989 = vshll.u32 %v4583, 16
      %v4991 = vrot.slane %v4989, 1
      %v4992 = vsel %vm1161, %v4988, %v4991
      %v4993 = vshrl.u32 %v4583, 16
      %v4995 = vor.u32 %v4993, %v4991
      %v4996 = vshll.u32 %v4584, 16
      %v4998 = vrot.slane %v4996, 1
      %v4999 = vsel %vm1161, %v4995, %v4998
      %v5000 = vshrl.u32 %v4584, 16
      %v5002 = vor.u32 %v5000, %v4998
      %v5003 = vshll.u32 %v4585, 16
      %v5005 = vrot.slane %v5003, 1
      %v5006 = vsel %vm1161, %v5002, %v5005
      %v5007 = vshrl.u32 %v4585, 16
      %v5009 = vor.u32 %v5007, %v5005
      %v5011 = vshll.u32 %v4840, 16
      %v5013 = vrot.slane %v5011, 1
      %v5014 = vsel %vm1161, %v5009, %v5013
      %v5016 = vsel %vm354, %v4852, 0
      %v5019 = vsel %vm354, %v4859, 0
      %v5022 = vsel %vm354, %v4866, 0
      %v5025 = vsel %vm354, %v4873, 0
      %v5028 = vsel %vm354, %v4880, 0
      %v5031 = vsel %vm354, %v4887, 0
      %v5034 = vsel %vm354, %v4894, 0
      %v5037 = vsel %vm354, %v4901, 0
      %v5040 = vsel %vm354, %v4908, 0
      %v5043 = vsel %vm354, %v4915, 0
      %v5046 = vsel %vm354, %v4922, 0
      %v5049 = vsel %vm354, %v4929, 0
      %v5052 = vsel %vm354, %v4936, 0
      %v5055 = vsel %vm354, %v4943, 0
      %v5058 = vsel %vm354, %v4950, 0
      %v5061 = vsel %vm354, %v4957, 0
      %v5064 = vsel %vm354, %v4964, 0
      %v5067 = vsel %vm354, %v4971, 0
      %v5070 = vsel %vm354, %v4978, 0
      %v5073 = vsel %vm354, %v4985, 0
      %v5076 = vsel %vm354, %v4992, 0
      %v5079 = vsel %vm354, %v4999, 0
      %v5082 = vsel %vm354, %v5006, 0
      %v5085 = vsel %vm354, %v5014, 0
      %v5088 = vsel %vm1430, %v4842, 0
      %5090 = vmatpush.bf16.msra.mxu0 0
      %5091 = vmatpush.bf16.msra.mxu0 0
      %5092 = vmatpush.bf16.msra.mxu0 0
      %5093 = vmatpush.bf16.msra.mxu0 0
      %5094 = vmatpush.bf16.msra.mxu0 0
      %5095 = vmatpush.bf16.msra.mxu0 0
      %5096 = vmatpush.bf16.msra.mxu0 0
      %5097 = vmatpush.bf16.msra.mxu0 %v5088
      %5098 = vmatmul.bf16.gmra.mxu0 %v5016
      %v5099 = vpop.f32.mrf.mxu0
      %v5100 = vadd.f32 0.0, %v5099
      %v5101 = vpop.f32.mrf.mxu0
      %v5102 = vadd.f32 0.0, %v5101
      %5103 = vmatmul.bf16.gmra.mxu0 %v5019
      %v5104 = vpop.f32.mrf.mxu0
      %v5105 = vadd.f32 0.0, %v5104
      %v5106 = vpop.f32.mrf.mxu0
      %v5107 = vadd.f32 0.0, %v5106
      %5108 = vmatmul.bf16.gmra.mxu0 %v5022
      %v5109 = vpop.f32.mrf.mxu0
      %v5110 = vadd.f32 0.0, %v5109
      %v5111 = vpop.f32.mrf.mxu0
      %v5112 = vadd.f32 0.0, %v5111
      %5113 = vmatmul.bf16.gmra.mxu0 %v5025
      %v5114 = vpop.f32.mrf.mxu0
      %v5115 = vadd.f32 0.0, %v5114
      %v5116 = vpop.f32.mrf.mxu0
      %v5117 = vadd.f32 0.0, %v5116
      %5118 = vmatmul.bf16.gmra.mxu0 %v5028
      %v5119 = vpop.f32.mrf.mxu0
      %v5120 = vadd.f32 0.0, %v5119
      %v5121 = vpop.f32.mrf.mxu0
      %v5122 = vadd.f32 0.0, %v5121
      %5123 = vmatmul.bf16.gmra.mxu0 %v5031
      %v5124 = vpop.f32.mrf.mxu0
      %v5125 = vadd.f32 0.0, %v5124
      %v5126 = vpop.f32.mrf.mxu0
      %v5127 = vadd.f32 0.0, %v5126
      %5128 = vmatmul.bf16.gmra.mxu0 %v5034
      %v5129 = vpop.f32.mrf.mxu0
      %v5130 = vadd.f32 0.0, %v5129
      %v5131 = vpop.f32.mrf.mxu0
      %v5132 = vadd.f32 0.0, %v5131
      %5133 = vmatmul.bf16.gmra.mxu0 %v5037
      %v5134 = vpop.f32.mrf.mxu0
      %v5135 = vadd.f32 0.0, %v5134
      %v5136 = vpop.f32.mrf.mxu0
      %v5137 = vadd.f32 0.0, %v5136
      %5138 = vmatmul.bf16.gmra.mxu0 %v5040
      %v5139 = vpop.f32.mrf.mxu0
      %v5140 = vadd.f32 0.0, %v5139
      %v5141 = vpop.f32.mrf.mxu0
      %v5142 = vadd.f32 0.0, %v5141
      %5143 = vmatmul.bf16.gmra.mxu0 %v5043
      %v5144 = vpop.f32.mrf.mxu0
      %v5145 = vadd.f32 0.0, %v5144
      %v5146 = vpop.f32.mrf.mxu0
      %v5147 = vadd.f32 0.0, %v5146
      %5148 = vmatmul.bf16.gmra.mxu0 %v5046
      %v5149 = vpop.f32.mrf.mxu0
      %v5150 = vadd.f32 0.0, %v5149
      %v5151 = vpop.f32.mrf.mxu0
      %v5152 = vadd.f32 0.0, %v5151
      %5153 = vmatmul.bf16.gmra.mxu0 %v5049
      %v5154 = vpop.f32.mrf.mxu0
      %v5155 = vadd.f32 0.0, %v5154
      %v5156 = vpop.f32.mrf.mxu0
      %v5157 = vadd.f32 0.0, %v5156
      %5158 = vmatmul.bf16.gmra.mxu0 %v5052
      %v5159 = vpop.f32.mrf.mxu0
      %v5160 = vadd.f32 0.0, %v5159
      %v5161 = vpop.f32.mrf.mxu0
      %v5162 = vadd.f32 0.0, %v5161
      %5163 = vmatmul.bf16.gmra.mxu0 %v5055
      %v5164 = vpop.f32.mrf.mxu0
      %v5165 = vadd.f32 0.0, %v5164
      %v5166 = vpop.f32.mrf.mxu0
      %v5167 = vadd.f32 0.0, %v5166
      %5168 = vmatmul.bf16.gmra.mxu0 %v5058
      %v5169 = vpop.f32.mrf.mxu0
      %v5170 = vadd.f32 0.0, %v5169
      %v5171 = vpop.f32.mrf.mxu0
      %v5172 = vadd.f32 0.0, %v5171
      %5173 = vmatmul.bf16.gmra.mxu0 %v5061
      %v5174 = vpop.f32.mrf.mxu0
      %v5175 = vadd.f32 0.0, %v5174
      %v5176 = vpop.f32.mrf.mxu0
      %v5177 = vadd.f32 0.0, %v5176
      %5178 = vmatmul.bf16.gmra.mxu0 %v5064
      %v5179 = vpop.f32.mrf.mxu0
      %v5180 = vadd.f32 0.0, %v5179
      %v5181 = vpop.f32.mrf.mxu0
      %v5182 = vadd.f32 0.0, %v5181
      %5183 = vmatmul.bf16.gmra.mxu0 %v5067
      %v5184 = vpop.f32.mrf.mxu0
      %v5185 = vadd.f32 0.0, %v5184
      %v5186 = vpop.f32.mrf.mxu0
      %v5187 = vadd.f32 0.0, %v5186
      %5188 = vmatmul.bf16.gmra.mxu0 %v5070
      %v5189 = vpop.f32.mrf.mxu0
      %v5190 = vadd.f32 0.0, %v5189
      %v5191 = vpop.f32.mrf.mxu0
      %v5192 = vadd.f32 0.0, %v5191
      %5193 = vmatmul.bf16.gmra.mxu0 %v5073
      %v5194 = vpop.f32.mrf.mxu0
      %v5195 = vadd.f32 0.0, %v5194
      %v5196 = vpop.f32.mrf.mxu0
      %v5197 = vadd.f32 0.0, %v5196
      %5198 = vmatmul.bf16.gmra.mxu0 %v5076
      %v5199 = vpop.f32.mrf.mxu0
      %v5200 = vadd.f32 0.0, %v5199
      %v5201 = vpop.f32.mrf.mxu0
      %v5202 = vadd.f32 0.0, %v5201
      %5203 = vmatmul.bf16.gmra.mxu0 %v5079
      %v5204 = vpop.f32.mrf.mxu0
      %v5205 = vadd.f32 0.0, %v5204
      %v5206 = vpop.f32.mrf.mxu0
      %v5207 = vadd.f32 0.0, %v5206
      %5208 = vmatmul.bf16.gmra.mxu0 %v5082
      %v5209 = vpop.f32.mrf.mxu0
      %v5210 = vadd.f32 0.0, %v5209
      %v5211 = vpop.f32.mrf.mxu0
      %v5212 = vadd.f32 0.0, %v5211
      %5213 = vmatmul.bf16.gmra.mxu0 %v5085
      %v5214 = vpop.f32.mrf.mxu0
      %v5215 = vadd.f32 0.0, %v5214
      %v5216 = vpop.f32.mrf.mxu0
      %v5217 = vadd.f32 0.0, %v5216
      %5218 = vdwg.mxu0
      %v5219 = vadd.f32 %v4792, %v5100
      %v5220 = vadd.f32 %v4793, %v5102
      %v5221 = vadd.f32 %v4794, %v5105
      %v5222 = vadd.f32 %v4795, %v5107
      %v5223 = vadd.f32 %v4796, %v5110
      %v5224 = vadd.f32 %v4797, %v5112
      %v5225 = vadd.f32 %v4798, %v5115
      %v5226 = vadd.f32 %v4799, %v5117
      %v5227 = vadd.f32 %v4800, %v5120
      %v5228 = vadd.f32 %v4801, %v5122
      %v5229 = vadd.f32 %v4802, %v5125
      %v5230 = vadd.f32 %v4803, %v5127
      %v5231 = vadd.f32 %v4804, %v5130
      %v5232 = vadd.f32 %v4805, %v5132
      %v5233 = vadd.f32 %v4806, %v5135
      %v5234 = vadd.f32 %v4807, %v5137
      %v5235 = vadd.f32 %v4808, %v5140
      %v5236 = vadd.f32 %v4809, %v5142
      %v5237 = vadd.f32 %v4810, %v5145
      %v5238 = vadd.f32 %v4811, %v5147
      %v5239 = vadd.f32 %v4812, %v5150
      %v5240 = vadd.f32 %v4813, %v5152
      %v5241 = vadd.f32 %v4814, %v5155
      %v5242 = vadd.f32 %v4815, %v5157
      %v5243 = vadd.f32 %v4816, %v5160
      %v5244 = vadd.f32 %v4817, %v5162
      %v5245 = vadd.f32 %v4818, %v5165
      %v5246 = vadd.f32 %v4819, %v5167
      %v5247 = vadd.f32 %v4820, %v5170
      %v5248 = vadd.f32 %v4821, %v5172
      %v5249 = vadd.f32 %v4822, %v5175
      %v5250 = vadd.f32 %v4823, %v5177
      %v5251 = vadd.f32 %v4824, %v5180
      %v5252 = vadd.f32 %v4825, %v5182
      %v5253 = vadd.f32 %v4826, %v5185
      %v5254 = vadd.f32 %v4827, %v5187
      %v5255 = vadd.f32 %v4828, %v5190
      %v5256 = vadd.f32 %v4829, %v5192
      %v5257 = vadd.f32 %v4830, %v5195
      %v5258 = vadd.f32 %v4831, %v5197
      %v5259 = vadd.f32 %v4832, %v5200
      %v5260 = vadd.f32 %v4833, %v5202
      %v5261 = vadd.f32 %v4834, %v5205
      %v5262 = vadd.f32 %v4835, %v5207
      %v5263 = vadd.f32 %v4836, %v5210
      %v5264 = vadd.f32 %v4837, %v5212
      %v5265 = vadd.f32 %v4838, %v5215
      %v5266 = vadd.f32 %v4839, %v5217
      %s5267 = scalar_lea.vmem %s7, 10
      %v5268 = vld [vmem:[%s5267] sm:$0x3]
      %v5294 = vrot.slane %v4562, 1
      %v5295 = vrot.slane %v4563, 1
      %v5296 = vsel %vm1738, %v5294, %v5295
      %v5297 = vrot.slane %v4564, 1
      %v5298 = vsel %vm1738, %v5295, %v5297
      %v5299 = vrot.slane %v4565, 1
      %v5300 = vsel %vm1738, %v5297, %v5299
      %v5301 = vrot.slane %v4566, 1
      %v5302 = vsel %vm1738, %v5299, %v5301
      %v5303 = vrot.slane %v4567, 1
      %v5304 = vsel %vm1738, %v5301, %v5303
      %v5305 = vrot.slane %v4568, 1
      %v5306 = vsel %vm1738, %v5303, %v5305
      %v5307 = vrot.slane %v4569, 1
      %v5308 = vsel %vm1738, %v5305, %v5307
      %v5309 = vrot.slane %v4570, 1
      %v5310 = vsel %vm1738, %v5307, %v5309
      %v5311 = vrot.slane %v4571, 1
      %v5312 = vsel %vm1738, %v5309, %v5311
      %v5313 = vrot.slane %v4572, 1
      %v5314 = vsel %vm1738, %v5311, %v5313
      %v5315 = vrot.slane %v4573, 1
      %v5316 = vsel %vm1738, %v5313, %v5315
      %v5317 = vrot.slane %v4574, 1
      %v5318 = vsel %vm1738, %v5315, %v5317
      %v5319 = vrot.slane %v4575, 1
      %v5320 = vsel %vm1738, %v5317, %v5319
      %v5321 = vrot.slane %v4576, 1
      %v5322 = vsel %vm1738, %v5319, %v5321
      %v5323 = vrot.slane %v4577, 1
      %v5324 = vsel %vm1738, %v5321, %v5323
      %v5325 = vrot.slane %v4578, 1
      %v5326 = vsel %vm1738, %v5323, %v5325
      %v5327 = vrot.slane %v4579, 1
      %v5328 = vsel %vm1738, %v5325, %v5327
      %v5329 = vrot.slane %v4580, 1
      %v5330 = vsel %vm1738, %v5327, %v5329
      %v5331 = vrot.slane %v4581, 1
      %v5332 = vsel %vm1738, %v5329, %v5331
      %v5333 = vrot.slane %v4582, 1
      %v5334 = vsel %vm1738, %v5331, %v5333
      %v5335 = vrot.slane %v4583, 1
      %v5336 = vsel %vm1738, %v5333, %v5335
      %v5337 = vrot.slane %v4584, 1
      %v5338 = vsel %vm1738, %v5335, %v5337
      %v5339 = vrot.slane %v4585, 1
      %v5340 = vsel %vm1738, %v5337, %v5339
      %v5341 = vrot.slane %v4840, 1
      %v5342 = vsel %vm1738, %v5339, %v5341
      %v5344 = vsel %vm354, %v5296, 0
      %v5347 = vsel %vm354, %v5298, 0
      %v5350 = vsel %vm354, %v5300, 0
      %v5353 = vsel %vm354, %v5302, 0
      %v5356 = vsel %vm354, %v5304, 0
      %v5359 = vsel %vm354, %v5306, 0
      %v5362 = vsel %vm354, %v5308, 0
      %v5365 = vsel %vm354, %v5310, 0
      %v5368 = vsel %vm354, %v5312, 0
      %v5371 = vsel %vm354, %v5314, 0
      %v5374 = vsel %vm354, %v5316, 0
      %v5377 = vsel %vm354, %v5318, 0
      %v5380 = vsel %vm354, %v5320, 0
      %v5383 = vsel %vm354, %v5322, 0
      %v5386 = vsel %vm354, %v5324, 0
      %v5389 = vsel %vm354, %v5326, 0
      %v5392 = vsel %vm354, %v5328, 0
      %v5395 = vsel %vm354, %v5330, 0
      %v5398 = vsel %vm354, %v5332, 0
      %v5401 = vsel %vm354, %v5334, 0
      %v5404 = vsel %vm354, %v5336, 0
      %v5407 = vsel %vm354, %v5338, 0
      %v5410 = vsel %vm354, %v5340, 0
      %v5413 = vsel %vm354, %v5342, 0
      %v5416 = vsel %vm1430, %v5268, 0
      %5418 = vmatpush.bf16.msra.mxu0 0
      %5419 = vmatpush.bf16.msra.mxu0 0
      %5420 = vmatpush.bf16.msra.mxu0 0
      %5421 = vmatpush.bf16.msra.mxu0 0
      %5422 = vmatpush.bf16.msra.mxu0 0
      %5423 = vmatpush.bf16.msra.mxu0 0
      %5424 = vmatpush.bf16.msra.mxu0 0
      %5425 = vmatpush.bf16.msra.mxu0 %v5416
      %5426 = vmatmul.bf16.gmra.mxu0 %v5344
      %v5427 = vpop.f32.mrf.mxu0
      %v5428 = vadd.f32 0.0, %v5427
      %v5429 = vpop.f32.mrf.mxu0
      %v5430 = vadd.f32 0.0, %v5429
      %5431 = vmatmul.bf16.gmra.mxu0 %v5347
      %v5432 = vpop.f32.mrf.mxu0
      %v5433 = vadd.f32 0.0, %v5432
      %v5434 = vpop.f32.mrf.mxu0
      %v5435 = vadd.f32 0.0, %v5434
      %5436 = vmatmul.bf16.gmra.mxu0 %v5350
      %v5437 = vpop.f32.mrf.mxu0
      %v5438 = vadd.f32 0.0, %v5437
      %v5439 = vpop.f32.mrf.mxu0
      %v5440 = vadd.f32 0.0, %v5439
      %5441 = vmatmul.bf16.gmra.mxu0 %v5353
      %v5442 = vpop.f32.mrf.mxu0
      %v5443 = vadd.f32 0.0, %v5442
      %v5444 = vpop.f32.mrf.mxu0
      %v5445 = vadd.f32 0.0, %v5444
      %5446 = vmatmul.bf16.gmra.mxu0 %v5356
      %v5447 = vpop.f32.mrf.mxu0
      %v5448 = vadd.f32 0.0, %v5447
      %v5449 = vpop.f32.mrf.mxu0
      %v5450 = vadd.f32 0.0, %v5449
      %5451 = vmatmul.bf16.gmra.mxu0 %v5359
      %v5452 = vpop.f32.mrf.mxu0
      %v5453 = vadd.f32 0.0, %v5452
      %v5454 = vpop.f32.mrf.mxu0
      %v5455 = vadd.f32 0.0, %v5454
      %5456 = vmatmul.bf16.gmra.mxu0 %v5362
      %v5457 = vpop.f32.mrf.mxu0
      %v5458 = vadd.f32 0.0, %v5457
      %v5459 = vpop.f32.mrf.mxu0
      %v5460 = vadd.f32 0.0, %v5459
      %5461 = vmatmul.bf16.gmra.mxu0 %v5365
      %v5462 = vpop.f32.mrf.mxu0
      %v5463 = vadd.f32 0.0, %v5462
      %v5464 = vpop.f32.mrf.mxu0
      %v5465 = vadd.f32 0.0, %v5464
      %5466 = vmatmul.bf16.gmra.mxu0 %v5368
      %v5467 = vpop.f32.mrf.mxu0
      %v5468 = vadd.f32 0.0, %v5467
      %v5469 = vpop.f32.mrf.mxu0
      %v5470 = vadd.f32 0.0, %v5469
      %5471 = vmatmul.bf16.gmra.mxu0 %v5371
      %v5472 = vpop.f32.mrf.mxu0
      %v5473 = vadd.f32 0.0, %v5472
      %v5474 = vpop.f32.mrf.mxu0
      %v5475 = vadd.f32 0.0, %v5474
      %5476 = vmatmul.bf16.gmra.mxu0 %v5374
      %v5477 = vpop.f32.mrf.mxu0
      %v5478 = vadd.f32 0.0, %v5477
      %v5479 = vpop.f32.mrf.mxu0
      %v5480 = vadd.f32 0.0, %v5479
      %5481 = vmatmul.bf16.gmra.mxu0 %v5377
      %v5482 = vpop.f32.mrf.mxu0
      %v5483 = vadd.f32 0.0, %v5482
      %v5484 = vpop.f32.mrf.mxu0
      %v5485 = vadd.f32 0.0, %v5484
      %5486 = vmatmul.bf16.gmra.mxu0 %v5380
      %v5487 = vpop.f32.mrf.mxu0
      %v5488 = vadd.f32 0.0, %v5487
      %v5489 = vpop.f32.mrf.mxu0
      %v5490 = vadd.f32 0.0, %v5489
      %5491 = vmatmul.bf16.gmra.mxu0 %v5383
      %v5492 = vpop.f32.mrf.mxu0
      %v5493 = vadd.f32 0.0, %v5492
      %v5494 = vpop.f32.mrf.mxu0
      %v5495 = vadd.f32 0.0, %v5494
      %5496 = vmatmul.bf16.gmra.mxu0 %v5386
      %v5497 = vpop.f32.mrf.mxu0
      %v5498 = vadd.f32 0.0, %v5497
      %v5499 = vpop.f32.mrf.mxu0
      %v5500 = vadd.f32 0.0, %v5499
      %5501 = vmatmul.bf16.gmra.mxu0 %v5389
      %v5502 = vpop.f32.mrf.mxu0
      %v5503 = vadd.f32 0.0, %v5502
      %v5504 = vpop.f32.mrf.mxu0
      %v5505 = vadd.f32 0.0, %v5504
      %5506 = vmatmul.bf16.gmra.mxu0 %v5392
      %v5507 = vpop.f32.mrf.mxu0
      %v5508 = vadd.f32 0.0, %v5507
      %v5509 = vpop.f32.mrf.mxu0
      %v5510 = vadd.f32 0.0, %v5509
      %5511 = vmatmul.bf16.gmra.mxu0 %v5395
      %v5512 = vpop.f32.mrf.mxu0
      %v5513 = vadd.f32 0.0, %v5512
      %v5514 = vpop.f32.mrf.mxu0
      %v5515 = vadd.f32 0.0, %v5514
      %5516 = vmatmul.bf16.gmra.mxu0 %v5398
      %v5517 = vpop.f32.mrf.mxu0
      %v5518 = vadd.f32 0.0, %v5517
      %v5519 = vpop.f32.mrf.mxu0
      %v5520 = vadd.f32 0.0, %v5519
      %5521 = vmatmul.bf16.gmra.mxu0 %v5401
      %v5522 = vpop.f32.mrf.mxu0
      %v5523 = vadd.f32 0.0, %v5522
      %v5524 = vpop.f32.mrf.mxu0
      %v5525 = vadd.f32 0.0, %v5524
      %5526 = vmatmul.bf16.gmra.mxu0 %v5404
      %v5527 = vpop.f32.mrf.mxu0
      %v5528 = vadd.f32 0.0, %v5527
      %v5529 = vpop.f32.mrf.mxu0
      %v5530 = vadd.f32 0.0, %v5529
      %5531 = vmatmul.bf16.gmra.mxu0 %v5407
      %v5532 = vpop.f32.mrf.mxu0
      %v5533 = vadd.f32 0.0, %v5532
      %v5534 = vpop.f32.mrf.mxu0
      %v5535 = vadd.f32 0.0, %v5534
      %5536 = vmatmul.bf16.gmra.mxu0 %v5410
      %v5537 = vpop.f32.mrf.mxu0
      %v5538 = vadd.f32 0.0, %v5537
      %v5539 = vpop.f32.mrf.mxu0
      %v5540 = vadd.f32 0.0, %v5539
      %5541 = vmatmul.bf16.gmra.mxu0 %v5413
      %v5542 = vpop.f32.mrf.mxu0
      %v5543 = vadd.f32 0.0, %v5542
      %v5544 = vpop.f32.mrf.mxu0
      %v5545 = vadd.f32 0.0, %v5544
      %5546 = vdwg.mxu0
      %v5547 = vadd.f32 %v5219, %v5428
      %v5548 = vadd.f32 %v5220, %v5430
      %v5549 = vadd.f32 %v5221, %v5433
      %v5550 = vadd.f32 %v5222, %v5435
      %v5551 = vadd.f32 %v5223, %v5438
      %v5552 = vadd.f32 %v5224, %v5440
      %v5553 = vadd.f32 %v5225, %v5443
      %v5554 = vadd.f32 %v5226, %v5445
      %v5555 = vadd.f32 %v5227, %v5448
      %v5556 = vadd.f32 %v5228, %v5450
      %v5557 = vadd.f32 %v5229, %v5453
      %v5558 = vadd.f32 %v5230, %v5455
      %v5559 = vadd.f32 %v5231, %v5458
      %v5560 = vadd.f32 %v5232, %v5460
      %v5561 = vadd.f32 %v5233, %v5463
      %v5562 = vadd.f32 %v5234, %v5465
      %v5563 = vadd.f32 %v5235, %v5468
      %v5564 = vadd.f32 %v5236, %v5470
      %v5565 = vadd.f32 %v5237, %v5473
      %v5566 = vadd.f32 %v5238, %v5475
      %v5567 = vadd.f32 %v5239, %v5478
      %v5568 = vadd.f32 %v5240, %v5480
      %v5569 = vadd.f32 %v5241, %v5483
      %v5570 = vadd.f32 %v5242, %v5485
      %v5571 = vadd.f32 %v5243, %v5488
      %v5572 = vadd.f32 %v5244, %v5490
      %v5573 = vadd.f32 %v5245, %v5493
      %v5574 = vadd.f32 %v5246, %v5495
      %v5575 = vadd.f32 %v5247, %v5498
      %v5576 = vadd.f32 %v5248, %v5500
      %v5577 = vadd.f32 %v5249, %v5503
      %v5578 = vadd.f32 %v5250, %v5505
      %v5579 = vadd.f32 %v5251, %v5508
      %v5580 = vadd.f32 %v5252, %v5510
      %v5581 = vadd.f32 %v5253, %v5513
      %v5582 = vadd.f32 %v5254, %v5515
      %v5583 = vadd.f32 %v5255, %v5518
      %v5584 = vadd.f32 %v5256, %v5520
      %v5585 = vadd.f32 %v5257, %v5523
      %v5586 = vadd.f32 %v5258, %v5525
      %v5587 = vadd.f32 %v5259, %v5528
      %v5588 = vadd.f32 %v5260, %v5530
      %v5589 = vadd.f32 %v5261, %v5533
      %v5590 = vadd.f32 %v5262, %v5535
      %v5591 = vadd.f32 %v5263, %v5538
      %v5592 = vadd.f32 %v5264, %v5540
      %v5593 = vadd.f32 %v5265, %v5543
      %v5594 = vadd.f32 %v5266, %v5545
      %v5595 = vpack.c.bf16 %v3620, %v3619
      %v5596 = vpack.c.bf16 %v3622, %v3621
      %v5597 = vpack.c.bf16 %v3624, %v3623
      %s5598 = scalar_lea.vmem %s7, 12
      %v5599 = vld [vmem:[%s5598] sm:$0x3]
      %v5601 = vsel %vm354, %v5595, 0
      %v5604 = vsel %vm354, %v5596, 0
      %v5607 = vsel %vm354, %v5597, 0
      %v5610 = vsel %vm1430, %v5599, 0
      %5612 = vmatpush.bf16.msra.mxu0 0
      %5613 = vmatpush.bf16.msra.mxu0 0
      %5614 = vmatpush.bf16.msra.mxu0 0
      %5615 = vmatpush.bf16.msra.mxu0 0
      %5616 = vmatpush.bf16.msra.mxu0 0
      %5617 = vmatpush.bf16.msra.mxu0 0
      %5618 = vmatpush.bf16.msra.mxu0 0
      %5619 = vmatpush.bf16.msra.mxu0 %v5610
      %5620 = vmatmul.bf16.gmra.mxu0 %v4060
      %v5621 = vpop.f32.mrf.mxu0
      %v5622 = vadd.f32 0.0, %v5621
      %v5623 = vpop.f32.mrf.mxu0
      %v5624 = vadd.f32 0.0, %v5623
      %5625 = vmatmul.bf16.gmra.mxu0 %v4062
      %v5626 = vpop.f32.mrf.mxu0
      %v5627 = vadd.f32 0.0, %v5626
      %v5628 = vpop.f32.mrf.mxu0
      %v5629 = vadd.f32 0.0, %v5628
      %5630 = vmatmul.bf16.gmra.mxu0 %v4064
      %v5631 = vpop.f32.mrf.mxu0
      %v5632 = vadd.f32 0.0, %v5631
      %v5633 = vpop.f32.mrf.mxu0
      %v5634 = vadd.f32 0.0, %v5633
      %5635 = vmatmul.bf16.gmra.mxu0 %v4066
      %v5636 = vpop.f32.mrf.mxu0
      %v5637 = vadd.f32 0.0, %v5636
      %v5638 = vpop.f32.mrf.mxu0
      %v5639 = vadd.f32 0.0, %v5638
      %5640 = vmatmul.bf16.gmra.mxu0 %v4068
      %v5641 = vpop.f32.mrf.mxu0
      %v5642 = vadd.f32 0.0, %v5641
      %v5643 = vpop.f32.mrf.mxu0
      %v5644 = vadd.f32 0.0, %v5643
      %5645 = vmatmul.bf16.gmra.mxu0 %v4070
      %v5646 = vpop.f32.mrf.mxu0
      %v5647 = vadd.f32 0.0, %v5646
      %v5648 = vpop.f32.mrf.mxu0
      %v5649 = vadd.f32 0.0, %v5648
      %5650 = vmatmul.bf16.gmra.mxu0 %v4072
      %v5651 = vpop.f32.mrf.mxu0
      %v5652 = vadd.f32 0.0, %v5651
      %v5653 = vpop.f32.mrf.mxu0
      %v5654 = vadd.f32 0.0, %v5653
      %5655 = vmatmul.bf16.gmra.mxu0 %v4074
      %v5656 = vpop.f32.mrf.mxu0
      %v5657 = vadd.f32 0.0, %v5656
      %v5658 = vpop.f32.mrf.mxu0
      %v5659 = vadd.f32 0.0, %v5658
      %5660 = vmatmul.bf16.gmra.mxu0 %v4076
      %v5661 = vpop.f32.mrf.mxu0
      %v5662 = vadd.f32 0.0, %v5661
      %v5663 = vpop.f32.mrf.mxu0
      %v5664 = vadd.f32 0.0, %v5663
      %5665 = vmatmul.bf16.gmra.mxu0 %v4078
      %v5666 = vpop.f32.mrf.mxu0
      %v5667 = vadd.f32 0.0, %v5666
      %v5668 = vpop.f32.mrf.mxu0
      %v5669 = vadd.f32 0.0, %v5668
      %5670 = vmatmul.bf16.gmra.mxu0 %v4080
      %v5671 = vpop.f32.mrf.mxu0
      %v5672 = vadd.f32 0.0, %v5671
      %v5673 = vpop.f32.mrf.mxu0
      %v5674 = vadd.f32 0.0, %v5673
      %5675 = vmatmul.bf16.gmra.mxu0 %v4082
      %v5676 = vpop.f32.mrf.mxu0
      %v5677 = vadd.f32 0.0, %v5676
      %v5678 = vpop.f32.mrf.mxu0
      %v5679 = vadd.f32 0.0, %v5678
      %5680 = vmatmul.bf16.gmra.mxu0 %v4084
      %v5681 = vpop.f32.mrf.mxu0
      %v5682 = vadd.f32 0.0, %v5681
      %v5683 = vpop.f32.mrf.mxu0
      %v5684 = vadd.f32 0.0, %v5683
      %5685 = vmatmul.bf16.gmra.mxu0 %v4086
      %v5686 = vpop.f32.mrf.mxu0
      %v5687 = vadd.f32 0.0, %v5686
      %v5688 = vpop.f32.mrf.mxu0
      %v5689 = vadd.f32 0.0, %v5688
      %5690 = vmatmul.bf16.gmra.mxu0 %v4088
      %v5691 = vpop.f32.mrf.mxu0
      %v5692 = vadd.f32 0.0, %v5691
      %v5693 = vpop.f32.mrf.mxu0
      %v5694 = vadd.f32 0.0, %v5693
      %5695 = vmatmul.bf16.gmra.mxu0 %v4090
      %v5696 = vpop.f32.mrf.mxu0
      %v5697 = vadd.f32 0.0, %v5696
      %v5698 = vpop.f32.mrf.mxu0
      %v5699 = vadd.f32 0.0, %v5698
      %5700 = vmatmul.bf16.gmra.mxu0 %v4092
      %v5701 = vpop.f32.mrf.mxu0
      %v5702 = vadd.f32 0.0, %v5701
      %v5703 = vpop.f32.mrf.mxu0
      %v5704 = vadd.f32 0.0, %v5703
      %5705 = vmatmul.bf16.gmra.mxu0 %v4094
      %v5706 = vpop.f32.mrf.mxu0
      %v5707 = vadd.f32 0.0, %v5706
      %v5708 = vpop.f32.mrf.mxu0
      %v5709 = vadd.f32 0.0, %v5708
      %5710 = vmatmul.bf16.gmra.mxu0 %v4096
      %v5711 = vpop.f32.mrf.mxu0
      %v5712 = vadd.f32 0.0, %v5711
      %v5713 = vpop.f32.mrf.mxu0
      %v5714 = vadd.f32 0.0, %v5713
      %5715 = vmatmul.bf16.gmra.mxu0 %v4098
      %v5716 = vpop.f32.mrf.mxu0
      %v5717 = vadd.f32 0.0, %v5716
      %v5718 = vpop.f32.mrf.mxu0
      %v5719 = vadd.f32 0.0, %v5718
      %5720 = vmatmul.bf16.gmra.mxu0 %v4100
      %v5721 = vpop.f32.mrf.mxu0
      %v5722 = vadd.f32 0.0, %v5721
      %v5723 = vpop.f32.mrf.mxu0
      %v5724 = vadd.f32 0.0, %v5723
      %5725 = vmatmul.bf16.gmra.mxu0 %v5601
      %v5726 = vpop.f32.mrf.mxu0
      %v5727 = vadd.f32 0.0, %v5726
      %v5728 = vpop.f32.mrf.mxu0
      %v5729 = vadd.f32 0.0, %v5728
      %5730 = vmatmul.bf16.gmra.mxu0 %v5604
      %v5731 = vpop.f32.mrf.mxu0
      %v5732 = vadd.f32 0.0, %v5731
      %v5733 = vpop.f32.mrf.mxu0
      %v5734 = vadd.f32 0.0, %v5733
      %5735 = vmatmul.bf16.gmra.mxu0 %v5607
      %v5736 = vpop.f32.mrf.mxu0
      %v5737 = vadd.f32 0.0, %v5736
      %v5738 = vpop.f32.mrf.mxu0
      %v5739 = vadd.f32 0.0, %v5738
      %5740 = vdwg.mxu0
      %v5741 = vadd.f32 %v5547, %v5622
      %v5742 = vadd.f32 %v5548, %v5624
      %v5743 = vadd.f32 %v5549, %v5627
      %v5744 = vadd.f32 %v5550, %v5629
      %v5745 = vadd.f32 %v5551, %v5632
      %v5746 = vadd.f32 %v5552, %v5634
      %v5747 = vadd.f32 %v5553, %v5637
      %v5748 = vadd.f32 %v5554, %v5639
      %v5749 = vadd.f32 %v5555, %v5642
      %v5750 = vadd.f32 %v5556, %v5644
      %v5751 = vadd.f32 %v5557, %v5647
      %v5752 = vadd.f32 %v5558, %v5649
      %v5753 = vadd.f32 %v5559, %v5652
      %v5754 = vadd.f32 %v5560, %v5654
      %v5755 = vadd.f32 %v5561, %v5657
      %v5756 = vadd.f32 %v5562, %v5659
      %v5757 = vadd.f32 %v5563, %v5662
      %v5758 = vadd.f32 %v5564, %v5664
      %v5759 = vadd.f32 %v5565, %v5667
      %v5760 = vadd.f32 %v5566, %v5669
      %v5761 = vadd.f32 %v5567, %v5672
      %v5762 = vadd.f32 %v5568, %v5674
      %v5763 = vadd.f32 %v5569, %v5677
      %v5764 = vadd.f32 %v5570, %v5679
      %v5765 = vadd.f32 %v5571, %v5682
      %v5766 = vadd.f32 %v5572, %v5684
      %v5767 = vadd.f32 %v5573, %v5687
      %v5768 = vadd.f32 %v5574, %v5689
      %v5769 = vadd.f32 %v5575, %v5692
      %v5770 = vadd.f32 %v5576, %v5694
      %v5771 = vadd.f32 %v5577, %v5697
      %v5772 = vadd.f32 %v5578, %v5699
      %v5773 = vadd.f32 %v5579, %v5702
      %v5774 = vadd.f32 %v5580, %v5704
      %v5775 = vadd.f32 %v5581, %v5707
      %v5776 = vadd.f32 %v5582, %v5709
      %v5777 = vadd.f32 %v5583, %v5712
      %v5778 = vadd.f32 %v5584, %v5714
      %v5779 = vadd.f32 %v5585, %v5717
      %v5780 = vadd.f32 %v5586, %v5719
      %v5781 = vadd.f32 %v5587, %v5722
      %v5782 = vadd.f32 %v5588, %v5724
      %v5783 = vadd.f32 %v5589, %v5727
      %v5784 = vadd.f32 %v5590, %v5729
      %v5785 = vadd.f32 %v5591, %v5732
      %v5786 = vadd.f32 %v5592, %v5734
      %v5787 = vadd.f32 %v5593, %v5737
      %v5788 = vadd.f32 %v5594, %v5739
      %v5789 = vpack.c.bf16 %v3625, %v3625
      %s5790 = scalar_lea.vmem %s7, 14
      %v5791 = vld [vmem:[%s5790] sm:$0x3]
      %v5792 = vshll.u32 %v5595, 16
      %v5794 = vrot.slane %v5792, 1
      %v5795 = vsel %vm1161, %v3844, %v5794
      %v5796 = vshrl.u32 %v5595, 16
      %v5798 = vor.u32 %v5796, %v5794
      %v5799 = vshll.u32 %v5596, 16
      %v5801 = vrot.slane %v5799, 1
      %v5802 = vsel %vm1161, %v5798, %v5801
      %v5803 = vshrl.u32 %v5596, 16
      %v5805 = vor.u32 %v5803, %v5801
      %v5806 = vshll.u32 %v5597, 16
      %v5808 = vrot.slane %v5806, 1
      %v5809 = vsel %vm1161, %v5805, %v5808
      %v5810 = vshrl.u32 %v5597, 16
      %v5812 = vor.u32 %v5810, %v5808
      %v5814 = vshll.u32 %v5789, 16
      %v5816 = vrot.slane %v5814, 1
      %v5817 = vsel %vm1161, %v5812, %v5816
      %v5819 = vsel %vm354, %v5795, 0
      %v5822 = vsel %vm354, %v5802, 0
      %v5825 = vsel %vm354, %v5809, 0
      %v5828 = vsel %vm354, %v5817, 0
      %v5831 = vsel %vm1430, %v5791, 0
      %5833 = vmatpush.bf16.msra.mxu0 0
      %5834 = vmatpush.bf16.msra.mxu0 0
      %5835 = vmatpush.bf16.msra.mxu0 0
      %5836 = vmatpush.bf16.msra.mxu0 0
      %5837 = vmatpush.bf16.msra.mxu0 0
      %5838 = vmatpush.bf16.msra.mxu0 0
      %5839 = vmatpush.bf16.msra.mxu0 0
      %5840 = vmatpush.bf16.msra.mxu0 %v5831
      %5841 = vmatmul.bf16.gmra.mxu0 %v3860
      %v5842 = vpop.f32.mrf.mxu0
      %v5843 = vadd.f32 0.0, %v5842
      %v5844 = vpop.f32.mrf.mxu0
      %v5845 = vadd.f32 0.0, %v5844
      %5846 = vmatmul.bf16.gmra.mxu0 %v3863
      %v5847 = vpop.f32.mrf.mxu0
      %v5848 = vadd.f32 0.0, %v5847
      %v5849 = vpop.f32.mrf.mxu0
      %v5850 = vadd.f32 0.0, %v5849
      %5851 = vmatmul.bf16.gmra.mxu0 %v3866
      %v5852 = vpop.f32.mrf.mxu0
      %v5853 = vadd.f32 0.0, %v5852
      %v5854 = vpop.f32.mrf.mxu0
      %v5855 = vadd.f32 0.0, %v5854
      %5856 = vmatmul.bf16.gmra.mxu0 %v3869
      %v5857 = vpop.f32.mrf.mxu0
      %v5858 = vadd.f32 0.0, %v5857
      %v5859 = vpop.f32.mrf.mxu0
      %v5860 = vadd.f32 0.0, %v5859
      %5861 = vmatmul.bf16.gmra.mxu0 %v3872
      %v5862 = vpop.f32.mrf.mxu0
      %v5863 = vadd.f32 0.0, %v5862
      %v5864 = vpop.f32.mrf.mxu0
      %v5865 = vadd.f32 0.0, %v5864
      %5866 = vmatmul.bf16.gmra.mxu0 %v3875
      %v5867 = vpop.f32.mrf.mxu0
      %v5868 = vadd.f32 0.0, %v5867
      %v5869 = vpop.f32.mrf.mxu0
      %v5870 = vadd.f32 0.0, %v5869
      %5871 = vmatmul.bf16.gmra.mxu0 %v3878
      %v5872 = vpop.f32.mrf.mxu0
      %v5873 = vadd.f32 0.0, %v5872
      %v5874 = vpop.f32.mrf.mxu0
      %v5875 = vadd.f32 0.0, %v5874
      %5876 = vmatmul.bf16.gmra.mxu0 %v3881
      %v5877 = vpop.f32.mrf.mxu0
      %v5878 = vadd.f32 0.0, %v5877
      %v5879 = vpop.f32.mrf.mxu0
      %v5880 = vadd.f32 0.0, %v5879
      %5881 = vmatmul.bf16.gmra.mxu0 %v3884
      %v5882 = vpop.f32.mrf.mxu0
      %v5883 = vadd.f32 0.0, %v5882
      %v5884 = vpop.f32.mrf.mxu0
      %v5885 = vadd.f32 0.0, %v5884
      %5886 = vmatmul.bf16.gmra.mxu0 %v3887
      %v5887 = vpop.f32.mrf.mxu0
      %v5888 = vadd.f32 0.0, %v5887
      %v5889 = vpop.f32.mrf.mxu0
      %v5890 = vadd.f32 0.0, %v5889
      %5891 = vmatmul.bf16.gmra.mxu0 %v3890
      %v5892 = vpop.f32.mrf.mxu0
      %v5893 = vadd.f32 0.0, %v5892
      %v5894 = vpop.f32.mrf.mxu0
      %v5895 = vadd.f32 0.0, %v5894
      %5896 = vmatmul.bf16.gmra.mxu0 %v3893
      %v5897 = vpop.f32.mrf.mxu0
      %v5898 = vadd.f32 0.0, %v5897
      %v5899 = vpop.f32.mrf.mxu0
      %v5900 = vadd.f32 0.0, %v5899
      %5901 = vmatmul.bf16.gmra.mxu0 %v3896
      %v5902 = vpop.f32.mrf.mxu0
      %v5903 = vadd.f32 0.0, %v5902
      %v5904 = vpop.f32.mrf.mxu0
      %v5905 = vadd.f32 0.0, %v5904
      %5906 = vmatmul.bf16.gmra.mxu0 %v3899
      %v5907 = vpop.f32.mrf.mxu0
      %v5908 = vadd.f32 0.0, %v5907
      %v5909 = vpop.f32.mrf.mxu0
      %v5910 = vadd.f32 0.0, %v5909
      %5911 = vmatmul.bf16.gmra.mxu0 %v3902
      %v5912 = vpop.f32.mrf.mxu0
      %v5913 = vadd.f32 0.0, %v5912
      %v5914 = vpop.f32.mrf.mxu0
      %v5915 = vadd.f32 0.0, %v5914
      %5916 = vmatmul.bf16.gmra.mxu0 %v3905
      %v5917 = vpop.f32.mrf.mxu0
      %v5918 = vadd.f32 0.0, %v5917
      %v5919 = vpop.f32.mrf.mxu0
      %v5920 = vadd.f32 0.0, %v5919
      %5921 = vmatmul.bf16.gmra.mxu0 %v3908
      %v5922 = vpop.f32.mrf.mxu0
      %v5923 = vadd.f32 0.0, %v5922
      %v5924 = vpop.f32.mrf.mxu0
      %v5925 = vadd.f32 0.0, %v5924
      %5926 = vmatmul.bf16.gmra.mxu0 %v3911
      %v5927 = vpop.f32.mrf.mxu0
      %v5928 = vadd.f32 0.0, %v5927
      %v5929 = vpop.f32.mrf.mxu0
      %v5930 = vadd.f32 0.0, %v5929
      %5931 = vmatmul.bf16.gmra.mxu0 %v3914
      %v5932 = vpop.f32.mrf.mxu0
      %v5933 = vadd.f32 0.0, %v5932
      %v5934 = vpop.f32.mrf.mxu0
      %v5935 = vadd.f32 0.0, %v5934
      %5936 = vmatmul.bf16.gmra.mxu0 %v3917
      %v5937 = vpop.f32.mrf.mxu0
      %v5938 = vadd.f32 0.0, %v5937
      %v5939 = vpop.f32.mrf.mxu0
      %v5940 = vadd.f32 0.0, %v5939
      %5941 = vmatmul.bf16.gmra.mxu0 %v5819
      %v5942 = vpop.f32.mrf.mxu0
      %v5943 = vadd.f32 0.0, %v5942
      %v5944 = vpop.f32.mrf.mxu0
      %v5945 = vadd.f32 0.0, %v5944
      %5946 = vmatmul.bf16.gmra.mxu0 %v5822
      %v5947 = vpop.f32.mrf.mxu0
      %v5948 = vadd.f32 0.0, %v5947
      %v5949 = vpop.f32.mrf.mxu0
      %v5950 = vadd.f32 0.0, %v5949
      %5951 = vmatmul.bf16.gmra.mxu0 %v5825
      %v5952 = vpop.f32.mrf.mxu0
      %v5953 = vadd.f32 0.0, %v5952
      %v5954 = vpop.f32.mrf.mxu0
      %v5955 = vadd.f32 0.0, %v5954
      %5956 = vmatmul.bf16.gmra.mxu0 %v5828
      %v5957 = vpop.f32.mrf.mxu0
      %v5958 = vadd.f32 0.0, %v5957
      %v5959 = vpop.f32.mrf.mxu0
      %v5960 = vadd.f32 0.0, %v5959
      %5961 = vdwg.mxu0
      %v5962 = vadd.f32 %v5741, %v5843
      %v5963 = vadd.f32 %v5742, %v5845
      %v5964 = vadd.f32 %v5743, %v5848
      %v5965 = vadd.f32 %v5744, %v5850
      %v5966 = vadd.f32 %v5745, %v5853
      %v5967 = vadd.f32 %v5746, %v5855
      %v5968 = vadd.f32 %v5747, %v5858
      %v5969 = vadd.f32 %v5748, %v5860
      %v5970 = vadd.f32 %v5749, %v5863
      %v5971 = vadd.f32 %v5750, %v5865
      %v5972 = vadd.f32 %v5751, %v5868
      %v5973 = vadd.f32 %v5752, %v5870
      %v5974 = vadd.f32 %v5753, %v5873
      %v5975 = vadd.f32 %v5754, %v5875
      %v5976 = vadd.f32 %v5755, %v5878
      %v5977 = vadd.f32 %v5756, %v5880
      %v5978 = vadd.f32 %v5757, %v5883
      %v5979 = vadd.f32 %v5758, %v5885
      %v5980 = vadd.f32 %v5759, %v5888
      %v5981 = vadd.f32 %v5760, %v5890
      %v5982 = vadd.f32 %v5761, %v5893
      %v5983 = vadd.f32 %v5762, %v5895
      %v5984 = vadd.f32 %v5763, %v5898
      %v5985 = vadd.f32 %v5764, %v5900
      %v5986 = vadd.f32 %v5765, %v5903
      %v5987 = vadd.f32 %v5766, %v5905
      %v5988 = vadd.f32 %v5767, %v5908
      %v5989 = vadd.f32 %v5768, %v5910
      %v5990 = vadd.f32 %v5769, %v5913
      %v5991 = vadd.f32 %v5770, %v5915
      %v5992 = vadd.f32 %v5771, %v5918
      %v5993 = vadd.f32 %v5772, %v5920
      %v5994 = vadd.f32 %v5773, %v5923
      %v5995 = vadd.f32 %v5774, %v5925
      %v5996 = vadd.f32 %v5775, %v5928
      %v5997 = vadd.f32 %v5776, %v5930
      %v5998 = vadd.f32 %v5777, %v5933
      %v5999 = vadd.f32 %v5778, %v5935
      %v6000 = vadd.f32 %v5779, %v5938
      %v6001 = vadd.f32 %v5780, %v5940
      %v6002 = vadd.f32 %v5781, %v5943
      %v6003 = vadd.f32 %v5782, %v5945
      %v6004 = vadd.f32 %v5783, %v5948
      %v6005 = vadd.f32 %v5784, %v5950
      %v6006 = vadd.f32 %v5785, %v5953
      %v6007 = vadd.f32 %v5786, %v5955
      %v6008 = vadd.f32 %v5787, %v5958
      %v6009 = vadd.f32 %v5788, %v5960
      %s6010 = scalar_lea.vmem %s7, 16
      %v6011 = vld [vmem:[%s6010] sm:$0x3]
      %v6016 = vrot.slane %v5595, 1
      %v6017 = vsel %vm1738, %v4306, %v6016
      %v6018 = vrot.slane %v5596, 1
      %v6019 = vsel %vm1738, %v6016, %v6018
      %v6020 = vrot.slane %v5597, 1
      %v6021 = vsel %vm1738, %v6018, %v6020
      %v6022 = vrot.slane %v5789, 1
      %v6023 = vsel %vm1738, %v6020, %v6022
      %v6025 = vsel %vm354, %v6017, 0
      %v6028 = vsel %vm354, %v6019, 0
      %v6031 = vsel %vm354, %v6021, 0
      %v6034 = vsel %vm354, %v6023, 0
      %v6037 = vsel %vm1430, %v6011, 0
      %6039 = vmatpush.bf16.msra.mxu0 0
      %6040 = vmatpush.bf16.msra.mxu0 0
      %6041 = vmatpush.bf16.msra.mxu0 0
      %6042 = vmatpush.bf16.msra.mxu0 0
      %6043 = vmatpush.bf16.msra.mxu0 0
      %6044 = vmatpush.bf16.msra.mxu0 0
      %6045 = vmatpush.bf16.msra.mxu0 0
      %6046 = vmatpush.bf16.msra.mxu0 %v6037
      %6047 = vmatmul.bf16.gmra.mxu0 %v4320
      %v6048 = vpop.f32.mrf.mxu0
      %v6049 = vadd.f32 0.0, %v6048
      %v6050 = vpop.f32.mrf.mxu0
      %v6051 = vadd.f32 0.0, %v6050
      %6052 = vmatmul.bf16.gmra.mxu0 %v4323
      %v6053 = vpop.f32.mrf.mxu0
      %v6054 = vadd.f32 0.0, %v6053
      %v6055 = vpop.f32.mrf.mxu0
      %v6056 = vadd.f32 0.0, %v6055
      %6057 = vmatmul.bf16.gmra.mxu0 %v4326
      %v6058 = vpop.f32.mrf.mxu0
      %v6059 = vadd.f32 0.0, %v6058
      %v6060 = vpop.f32.mrf.mxu0
      %v6061 = vadd.f32 0.0, %v6060
      %6062 = vmatmul.bf16.gmra.mxu0 %v4329
      %v6063 = vpop.f32.mrf.mxu0
      %v6064 = vadd.f32 0.0, %v6063
      %v6065 = vpop.f32.mrf.mxu0
      %v6066 = vadd.f32 0.0, %v6065
      %6067 = vmatmul.bf16.gmra.mxu0 %v4332
      %v6068 = vpop.f32.mrf.mxu0
      %v6069 = vadd.f32 0.0, %v6068
      %v6070 = vpop.f32.mrf.mxu0
      %v6071 = vadd.f32 0.0, %v6070
      %6072 = vmatmul.bf16.gmra.mxu0 %v4335
      %v6073 = vpop.f32.mrf.mxu0
      %v6074 = vadd.f32 0.0, %v6073
      %v6075 = vpop.f32.mrf.mxu0
      %v6076 = vadd.f32 0.0, %v6075
      %6077 = vmatmul.bf16.gmra.mxu0 %v4338
      %v6078 = vpop.f32.mrf.mxu0
      %v6079 = vadd.f32 0.0, %v6078
      %v6080 = vpop.f32.mrf.mxu0
      %v6081 = vadd.f32 0.0, %v6080
      %6082 = vmatmul.bf16.gmra.mxu0 %v4341
      %v6083 = vpop.f32.mrf.mxu0
      %v6084 = vadd.f32 0.0, %v6083
      %v6085 = vpop.f32.mrf.mxu0
      %v6086 = vadd.f32 0.0, %v6085
      %6087 = vmatmul.bf16.gmra.mxu0 %v4344
      %v6088 = vpop.f32.mrf.mxu0
      %v6089 = vadd.f32 0.0, %v6088
      %v6090 = vpop.f32.mrf.mxu0
      %v6091 = vadd.f32 0.0, %v6090
      %6092 = vmatmul.bf16.gmra.mxu0 %v4347
      %v6093 = vpop.f32.mrf.mxu0
      %v6094 = vadd.f32 0.0, %v6093
      %v6095 = vpop.f32.mrf.mxu0
      %v6096 = vadd.f32 0.0, %v6095
      %6097 = vmatmul.bf16.gmra.mxu0 %v4350
      %v6098 = vpop.f32.mrf.mxu0
      %v6099 = vadd.f32 0.0, %v6098
      %v6100 = vpop.f32.mrf.mxu0
      %v6101 = vadd.f32 0.0, %v6100
      %6102 = vmatmul.bf16.gmra.mxu0 %v4353
      %v6103 = vpop.f32.mrf.mxu0
      %v6104 = vadd.f32 0.0, %v6103
      %v6105 = vpop.f32.mrf.mxu0
      %v6106 = vadd.f32 0.0, %v6105
      %6107 = vmatmul.bf16.gmra.mxu0 %v4356
      %v6108 = vpop.f32.mrf.mxu0
      %v6109 = vadd.f32 0.0, %v6108
      %v6110 = vpop.f32.mrf.mxu0
      %v6111 = vadd.f32 0.0, %v6110
      %6112 = vmatmul.bf16.gmra.mxu0 %v4359
      %v6113 = vpop.f32.mrf.mxu0
      %v6114 = vadd.f32 0.0, %v6113
      %v6115 = vpop.f32.mrf.mxu0
      %v6116 = vadd.f32 0.0, %v6115
      %6117 = vmatmul.bf16.gmra.mxu0 %v4362
      %v6118 = vpop.f32.mrf.mxu0
      %v6119 = vadd.f32 0.0, %v6118
      %v6120 = vpop.f32.mrf.mxu0
      %v6121 = vadd.f32 0.0, %v6120
      %6122 = vmatmul.bf16.gmra.mxu0 %v4365
      %v6123 = vpop.f32.mrf.mxu0
      %v6124 = vadd.f32 0.0, %v6123
      %v6125 = vpop.f32.mrf.mxu0
      %v6126 = vadd.f32 0.0, %v6125
      %6127 = vmatmul.bf16.gmra.mxu0 %v4368
      %v6128 = vpop.f32.mrf.mxu0
      %v6129 = vadd.f32 0.0, %v6128
      %v6130 = vpop.f32.mrf.mxu0
      %v6131 = vadd.f32 0.0, %v6130
      %6132 = vmatmul.bf16.gmra.mxu0 %v4371
      %v6133 = vpop.f32.mrf.mxu0
      %v6134 = vadd.f32 0.0, %v6133
      %v6135 = vpop.f32.mrf.mxu0
      %v6136 = vadd.f32 0.0, %v6135
      %6137 = vmatmul.bf16.gmra.mxu0 %v4374
      %v6138 = vpop.f32.mrf.mxu0
      %v6139 = vadd.f32 0.0, %v6138
      %v6140 = vpop.f32.mrf.mxu0
      %v6141 = vadd.f32 0.0, %v6140
      %6142 = vmatmul.bf16.gmra.mxu0 %v4377
      %v6143 = vpop.f32.mrf.mxu0
      %v6144 = vadd.f32 0.0, %v6143
      %v6145 = vpop.f32.mrf.mxu0
      %v6146 = vadd.f32 0.0, %v6145
      %6147 = vmatmul.bf16.gmra.mxu0 %v6025
      %v6148 = vpop.f32.mrf.mxu0
      %v6149 = vadd.f32 0.0, %v6148
      %v6150 = vpop.f32.mrf.mxu0
      %v6151 = vadd.f32 0.0, %v6150
      %6152 = vmatmul.bf16.gmra.mxu0 %v6028
      %v6153 = vpop.f32.mrf.mxu0
      %v6154 = vadd.f32 0.0, %v6153
      %v6155 = vpop.f32.mrf.mxu0
      %v6156 = vadd.f32 0.0, %v6155
      %6157 = vmatmul.bf16.gmra.mxu0 %v6031
      %v6158 = vpop.f32.mrf.mxu0
      %v6159 = vadd.f32 0.0, %v6158
      %v6160 = vpop.f32.mrf.mxu0
      %v6161 = vadd.f32 0.0, %v6160
      %6162 = vmatmul.bf16.gmra.mxu0 %v6034
      %v6163 = vpop.f32.mrf.mxu0
      %v6164 = vadd.f32 0.0, %v6163
      %v6165 = vpop.f32.mrf.mxu0
      %v6166 = vadd.f32 0.0, %v6165
      %6167 = vdwg.mxu0
      %v6168 = vadd.f32 %v5962, %v6049
      %v6169 = vadd.f32 %v5963, %v6051
      %v6170 = vadd.f32 %v5964, %v6054
      %v6171 = vadd.f32 %v5965, %v6056
      %v6172 = vadd.f32 %v5966, %v6059
      %v6173 = vadd.f32 %v5967, %v6061
      %v6174 = vadd.f32 %v5968, %v6064
      %v6175 = vadd.f32 %v5969, %v6066
      %v6176 = vadd.f32 %v5970, %v6069
      %v6177 = vadd.f32 %v5971, %v6071
      %v6178 = vadd.f32 %v5972, %v6074
      %v6179 = vadd.f32 %v5973, %v6076
      %v6180 = vadd.f32 %v5974, %v6079
      %v6181 = vadd.f32 %v5975, %v6081
      %v6182 = vadd.f32 %v5976, %v6084
      %v6183 = vadd.f32 %v5977, %v6086
      %v6184 = vadd.f32 %v5978, %v6089
      %v6185 = vadd.f32 %v5979, %v6091
      %v6186 = vadd.f32 %v5980, %v6094
      %v6187 = vadd.f32 %v5981, %v6096
      %v6188 = vadd.f32 %v5982, %v6099
      %v6189 = vadd.f32 %v5983, %v6101
      %v6190 = vadd.f32 %v5984, %v6104
      %v6191 = vadd.f32 %v5985, %v6106
      %v6192 = vadd.f32 %v5986, %v6109
      %v6193 = vadd.f32 %v5987, %v6111
      %v6194 = vadd.f32 %v5988, %v6114
      %v6195 = vadd.f32 %v5989, %v6116
      %v6196 = vadd.f32 %v5990, %v6119
      %v6197 = vadd.f32 %v5991, %v6121
      %v6198 = vadd.f32 %v5992, %v6124
      %v6199 = vadd.f32 %v5993, %v6126
      %v6200 = vadd.f32 %v5994, %v6129
      %v6201 = vadd.f32 %v5995, %v6131
      %v6202 = vadd.f32 %v5996, %v6134
      %v6203 = vadd.f32 %v5997, %v6136
      %v6204 = vadd.f32 %v5998, %v6139
      %v6205 = vadd.f32 %v5999, %v6141
      %v6206 = vadd.f32 %v6000, %v6144
      %v6207 = vadd.f32 %v6001, %v6146
      %v6208 = vadd.f32 %v6002, %v6149
      %v6209 = vadd.f32 %v6003, %v6151
      %v6210 = vadd.f32 %v6004, %v6154
      %v6211 = vadd.f32 %v6005, %v6156
      %v6212 = vadd.f32 %v6006, %v6159
      %v6213 = vadd.f32 %v6007, %v6161
      %v6214 = vadd.f32 %v6008, %v6164
      %v6215 = vadd.f32 %v6009, %v6166
      %v6216 = vld [vmem:[%s8] sm:$0x1]
      %v6218 = vperm.slane %v6216, 0
      %v6220 = vadd.f32 %v6168, %v6218
      %v6221 = vadd.f32 %v6169, %v6218
      %v6222 = vadd.f32 %v6170, %v6218
      %v6223 = vadd.f32 %v6171, %v6218
      %v6224 = vadd.f32 %v6172, %v6218
      %v6225 = vadd.f32 %v6173, %v6218
      %v6226 = vadd.f32 %v6174, %v6218
      %v6227 = vadd.f32 %v6175, %v6218
      %v6228 = vadd.f32 %v6176, %v6218
      %v6229 = vadd.f32 %v6177, %v6218
      %v6230 = vadd.f32 %v6178, %v6218
      %v6231 = vadd.f32 %v6179, %v6218
      %v6232 = vadd.f32 %v6180, %v6218
      %v6233 = vadd.f32 %v6181, %v6218
      %v6234 = vadd.f32 %v6182, %v6218
      %v6235 = vadd.f32 %v6183, %v6218
      %v6236 = vadd.f32 %v6184, %v6218
      %v6237 = vadd.f32 %v6185, %v6218
      %v6238 = vadd.f32 %v6186, %v6218
      %v6239 = vadd.f32 %v6187, %v6218
      %v6240 = vadd.f32 %v6188, %v6218
      %v6241 = vadd.f32 %v6189, %v6218
      %v6242 = vadd.f32 %v6190, %v6218
      %v6243 = vadd.f32 %v6191, %v6218
      %v6244 = vadd.f32 %v6192, %v6218
      %v6245 = vadd.f32 %v6193, %v6218
      %v6246 = vadd.f32 %v6194, %v6218
      %v6247 = vadd.f32 %v6195, %v6218
      %v6248 = vadd.f32 %v6196, %v6218
      %v6249 = vadd.f32 %v6197, %v6218
      %v6250 = vadd.f32 %v6198, %v6218
      %v6251 = vadd.f32 %v6199, %v6218
      %v6252 = vadd.f32 %v6200, %v6218
      %v6253 = vadd.f32 %v6201, %v6218
      %v6254 = vadd.f32 %v6202, %v6218
      %v6255 = vadd.f32 %v6203, %v6218
      %v6256 = vadd.f32 %v6204, %v6218
      %v6257 = vadd.f32 %v6205, %v6218
      %v6258 = vadd.f32 %v6206, %v6218
      %v6259 = vadd.f32 %v6207, %v6218
      %v6260 = vadd.f32 %v6208, %v6218
      %v6261 = vadd.f32 %v6209, %v6218
      %v6262 = vadd.f32 %v6210, %v6218
      %v6263 = vadd.f32 %v6211, %v6218
      %v6264 = vadd.f32 %v6212, %v6218
      %v6265 = vadd.f32 %v6213, %v6218
      %v6266 = vadd.f32 %v6214, %v6218
      %v6267 = vadd.f32 %v6215, %v6218
      %vm6268 = vcmask 130048
      %6269 = vst.msk [vmem:[%s352] sm:$0xff] %vm6268, %v6220
      %6270 = vst.msk [vmem:[%s352 + $0x8] sm:$0xff] %vm6268, %v6221
      %6271 = vst.msk [vmem:[%s352 + $0x10] sm:$0xff] %vm6268, %v6222
      %6272 = vst.msk [vmem:[%s352 + $0x18] sm:$0xff] %vm6268, %v6223
      %6273 = vst.msk [vmem:[%s352 + $0x20] sm:$0xff] %vm6268, %v6224
      %6274 = vst.msk [vmem:[%s352 + $0x28] sm:$0xff] %vm6268, %v6225
      %6275 = vst.msk [vmem:[%s352 + $0x30] sm:$0xff] %vm6268, %v6226
      %6276 = vst.msk [vmem:[%s352 + $0x38] sm:$0xff] %vm6268, %v6227
      %6277 = vst.msk [vmem:[%s352 + $0x40] sm:$0xff] %vm6268, %v6228
      %6278 = vst.msk [vmem:[%s352 + $0x48] sm:$0xff] %vm6268, %v6229
      %6279 = vst.msk [vmem:[%s352 + $0x50] sm:$0xff] %vm6268, %v6230
      %6280 = vst.msk [vmem:[%s352 + $0x58] sm:$0xff] %vm6268, %v6231
      %6281 = vst.msk [vmem:[%s352 + $0x60] sm:$0xff] %vm6268, %v6232
      %6282 = vst.msk [vmem:[%s352 + $0x68] sm:$0xff] %vm6268, %v6233
      %6283 = vst.msk [vmem:[%s352 + $0x70] sm:$0xff] %vm6268, %v6234
      %6284 = vst.msk [vmem:[%s352 + $0x78] sm:$0xff] %vm6268, %v6235
      %6285 = vst.msk [vmem:[%s352 + $0x80] sm:$0xff] %vm6268, %v6236
      %6286 = vst.msk [vmem:[%s352 + $0x88] sm:$0xff] %vm6268, %v6237
      %6287 = vst.msk [vmem:[%s352 + $0x90] sm:$0xff] %vm6268, %v6238
      %6288 = vst.msk [vmem:[%s352 + $0x98] sm:$0xff] %vm6268, %v6239
      %6289 = vst.msk [vmem:[%s352 + $0xa0] sm:$0xff] %vm6268, %v6240
      %6290 = vst.msk [vmem:[%s352 + $0xa8] sm:$0xff] %vm6268, %v6241
      %6291 = vst.msk [vmem:[%s352 + $0xb0] sm:$0xff] %vm6268, %v6242
      %6292 = vst.msk [vmem:[%s352 + $0xb8] sm:$0xff] %vm6268, %v6243
      %6293 = vst.msk [vmem:[%s352 + $0xc0] sm:$0xff] %vm6268, %v6244
      %6294 = vst.msk [vmem:[%s352 + $0xc8] sm:$0xff] %vm6268, %v6245
      %6295 = vst.msk [vmem:[%s352 + $0xd0] sm:$0xff] %vm6268, %v6246
      %6296 = vst.msk [vmem:[%s352 + $0xd8] sm:$0xff] %vm6268, %v6247
      %6297 = vst.msk [vmem:[%s352 + $0xe0] sm:$0xff] %vm6268, %v6248
      %6298 = vst.msk [vmem:[%s352 + $0xe8] sm:$0xff] %vm6268, %v6249
      %6299 = vst.msk [vmem:[%s352 + $0xf0] sm:$0xff] %vm6268, %v6250
      %6300 = vst.msk [vmem:[%s352 + $0xf8] sm:$0xff] %vm6268, %v6251
      %6301 = vst.msk [vmem:[%s352 + $0x100] sm:$0xff] %vm6268, %v6252
      %6302 = vst.msk [vmem:[%s352 + $0x108] sm:$0xff] %vm6268, %v6253
      %6303 = vst.msk [vmem:[%s352 + $0x110] sm:$0xff] %vm6268, %v6254
      %6304 = vst.msk [vmem:[%s352 + $0x118] sm:$0xff] %vm6268, %v6255
      %6305 = vst.msk [vmem:[%s352 + $0x120] sm:$0xff] %vm6268, %v6256
      %6306 = vst.msk [vmem:[%s352 + $0x128] sm:$0xff] %vm6268, %v6257
      %6307 = vst.msk [vmem:[%s352 + $0x130] sm:$0xff] %vm6268, %v6258
      %6308 = vst.msk [vmem:[%s352 + $0x138] sm:$0xff] %vm6268, %v6259
      %6309 = vst.msk [vmem:[%s352 + $0x140] sm:$0xff] %vm6268, %v6260
      %6310 = vst.msk [vmem:[%s352 + $0x148] sm:$0xff] %vm6268, %v6261
      %6311 = vst.msk [vmem:[%s352 + $0x150] sm:$0xff] %vm6268, %v6262
      %6312 = vst.msk [vmem:[%s352 + $0x158] sm:$0xff] %vm6268, %v6263
      %6313 = vst.msk [vmem:[%s352 + $0x160] sm:$0xff] %vm6268, %v6264
      %6314 = vst.msk [vmem:[%s352 + $0x168] sm:$0xff] %vm6268, %v6265
      %6315 = vst.msk [vmem:[%s352 + $0x170] sm:$0xff] %vm6268, %v6266
      %6316 = vst.msk [vmem:[%s352 + $0x178] sm:$0xff] %vm6268, %v6267
      %p6317 = scmp.lt.s32.totalorder %s20, 1
      %s6318 = scalar_select %p6317, %s20, 1
      %s6319 = smul.addr %s6318, 48
      %s6320 = smul.addr %s6319, 8
      %s6321 = scalar_lea.vmem %s9, %s6320
      // Predicated region
      $region57: #{upsample_forward.1} parent=55 // pred_check
        %p6322 = pneg %p237
      $region58: #{upsample_forward.1} parent=55 // pred_check_branch
        %6324 = sbr.rel (%p6322) target = $region60
      $region59: #{upsample_forward.1} parent=55 // pred_region
        _
      $region60: #{upsample_forward.1} parent=55 // pred_fallthru
        _
    $region56: #{upsample_forward.1} parent=5 // pred_fallthru
      _
    %p6325 = scmp.le.s32.totalorder 2, %s15
    // Predicated region
    $region61: #{upsample_forward.1} parent=5 // pred_check
      %p6326 = pneg %p6325
    $region62: #{upsample_forward.1} parent=5 // pred_check_branch
      %6328 = sbr.rel (%p6326) target = $region64
    $region63: #{upsample_forward.1} parent=5 // pred_region
      %s6329 = ssub.s32 %s15, 2
      // Predicated region
      $region65: #{upsample_forward.1} parent=63 // pred_check
        %p6330 = pneg %p243
      $region66: #{upsample_forward.1} parent=63 // pred_check_branch
        %6332 = sbr.rel (%p6330) target = $region68
      $region67: #{upsample_forward.1} parent=63 // pred_region
        %p6333 = scmp.lt.s32.totalorder %s21, 1
        %s6334 = scalar_select %p6333, %s21, 1
        %s6335 = smul.addr %s6334, 48
        %s6336 = smul.addr %s6335, 8
        %s6337 = scalar_lea.vmem %s9, %s6336
      $region68: #{upsample_forward.1} parent=63 // pred_fallthru
        _
    $region64: #{upsample_forward.1} parent=5 // pred_fallthru
      _
  $region6: #{upsample_forward.1} parent=0 // loop_footer
    %s19 = sadd.s32 1, %s15
  $region7: #{upsample_forward.1} parent=0 // loop_footer_branch
    %14 = sbr.rel target = $region3
  $region8: #{upsample_forward.1} parent=0 // loop_exit
    _

</llo_original>
